<compile_context>
chip_gen: v6e
topology: v6e:2x2x1
jax: 0.10.0
libtpu: 0.0.40
codegen_flags: <defaults>
</compile_context>

<pallas_src>
import functools

import jax
import jax.numpy as jnp
from jax.experimental import pallas as pl
from jax.experimental.pallas import tpu as pltpu

D = 128            # association hidden size (RecursiveAssociationNeuralNetworks(128, 128))
G = 3 * D          # GRU gate width
N_CLASSES = 62     # main task: Classification(128, 62)
N_CLASSES_PAD = 128


def _round_up(x, m):
    return (x + m - 1) // m * m


def _aann_kernel(x_ref,      # [sc, bt, Fin_pad]  bf16  node features (time-major chunk)
                 wfe_ref,    # [Fin_pad, D]       bf16  feature-extraction weight
                 bfe_ref,    # [1, D]             f32
                 wih_ref,    # [D, 3D]            bf16  GRU input->gates
                 whh_ref,    # [D, 3D]            bf16  GRU hidden->gates
                 bih_ref,    # [1, 3D]            f32   b_ih with b_hr/b_hz folded in
                 bhn_ref,    # [1, D]             f32   hidden n-gate bias (stays in r*(.))
                 wcls_ref,   # [D, 128]           bf16  classification head (padded)
                 bcls_ref,   # [1, 128]           f32
                 logits_ref, # [bt, 128]          f32
                 hroot_ref,  # [bt, D]            f32
                 h_scratch,  # VMEM [bt, D]       f32   carried hidden state
                 gx_scratch, # VMEM [slots*sc, bt, 3D] f32  staged input-side gates
                 *, sc, bt, s_valid, s_pad):
    s = pl.program_id(1)
    slot = s % 2
    has_pad = s_pad != s_valid   # static

    @pl.when(s == 0)
    def _():
        h_scratch[...] = jnp.zeros_like(h_scratch)

    def run_recurrence(chunk_idx, slot_idx):
        """Serial GRU steps over one staged chunk; only h @ W_hh per step."""
        whh = whh_ref[...]                       # bf16 [D, 3D]
        bhn = bhn_ref[...]                       # f32  [1, D]
        base = slot_idx * sc
        h = h_scratch[...]                       # [bt, D] f32
        for t in range(sc):                      # sc <= 16: fully unrolled, low live set
            gx_t = gx_scratch[base + t]          # [bt, 3D] f32 (read from scratch per step)
            gh = jnp.dot(h.astype(jnp.bfloat16), whh,
                         preferred_element_type=jnp.float32)      # [bt, 3D] f32, no bias
            rz = jax.nn.sigmoid(gx_t[:, :2 * D] + gh[:, :2 * D])  # fused r,z gates
            r = rz[:, :D]
            z = rz[:, D:]
            n = jnp.tanh(gx_t[:, 2 * D:] + r * (gh[:, 2 * D:] + bhn))
            h_new = n + z * (h - n)              # == (1-z)*n + z*h, one fewer VPU op
            if has_pad:
                h = jnp.where(chunk_idx * sc + t < s_valid, h_new, h)
            else:
                h = h_new
        h_scratch[...] = h

    # ---- recurrence for the PREVIOUS chunk (overlaps with this chunk's matmuls) ----
    @pl.when(s > 0)
    def _():
        run_recurrence(s - 1, 1 - slot)

    # ---- hoisted bulk matmuls for the CURRENT chunk (big M = sc*bt fills the MXU) ----
    fin = x_ref.shape[-1]
    x_chunk = x_ref[...].reshape(sc * bt, fin)                       # bf16
    f = jnp.dot(x_chunk, wfe_ref[...], preferred_element_type=jnp.float32)
    f = jnp.maximum(f + bfe_ref[...], 0.0)                           # [sc*bt, D] f32
    gx = jnp.dot(f.astype(jnp.bfloat16), wih_ref[...],
                 preferred_element_type=jnp.float32) + bih_ref[...]  # [sc*bt, 3D] f32
    gx_scratch[pl.ds(slot * sc, sc)] = gx.reshape(sc, bt, G)

    # ---- last chunk has no successor: consume it now, then finalize outputs ----
    @pl.when(s == pl.num_programs(1) - 1)
    def _():
        run_recurrence(s, slot)
        h = h_scratch[...]
        hroot_ref[...] = h
        logits_ref[...] = (
            jnp.dot(h.astype(jnp.bfloat16), wcls_ref[...],
                    preferred_element_type=jnp.float32) + bcls_ref[...])


def _select_tiles(B, S, fin_pad, max_s_chunk):
    """Balanced batch tiles (min padding, >=2 on v7x), VMEM-budgeted S chunk."""
    kind = ""
    try:
        kind = jax.devices()[0].device_kind.lower()
    except Exception:
        pass
    is_v7 = ("v7" in kind) or ("7x" in kind)
    bt_cap = 256 if (("v6" in kind) and not is_v7 and B >= 256) else 128
    n_bt = max(1, -(-B // bt_cap))
    if is_v7 and B >= 32:
        n_bt = max(n_bt, 2)                       # keep both TensorCores busy
    bt = max(16, _round_up(-(-B // n_bt), 16))    # sublane/bf16-friendly batch tile
    b_pad = n_bt * bt

    sc = max(1, min(max_s_chunk, S, 16))
    # keep streamed x (double-buffered bf16) + gx staging scratch within ~12 MiB
    def stream_bytes(c):
        return 2 * c * bt * fin_pad * 2 + 2 * c * bt * G * 4
    while sc > 1 and stream_bytes(sc) > 12 * 1024 * 1024:
        sc -= 1
    n_s = -(-S // sc)
    s_pad = n_s * sc
    return bt, b_pad, n_bt, sc, n_s, s_pad


def aann_forward(x, params, *, max_s_chunk=8):
    """x: [S, B, F_in] float32. Returns (main_task_logits [B,62], h_root [B,128])."""
    S, B, Fin = x.shape
    f32, bf16 = jnp.float32, jnp.bfloat16
    fin_pad = _round_up(Fin, 128)
    bt, b_pad, n_bt, sc, n_s, s_pad = _select_tiles(B, S, fin_pad, max_s_chunk)
    gx_slots = 2 if n_s > 1 else 1

    # --- pad + cast operands (bf16 MXU inputs, f32 biases / accumulation) ---
    xp = jnp.zeros((s_pad, b_pad, fin_pad), bf16).at[:S, :B, :Fin].set(x.astype(bf16))
    wfe = jnp.zeros((fin_pad, D), bf16).at[:Fin].set(params["w_fe"].astype(bf16))
    bfe = params["b_fe"].astype(f32)
    wih = params["w_ih"].astype(bf16)
    whh = params["w_hh"].astype(bf16)
    b_ih = params["b_ih"].astype(f32)
    b_hh = params["b_hh"].astype(f32)
    bih = b_ih.at[:, :2 * D].add(b_hh[:, :2 * D])   # fold b_hr/b_hz (GRU-exact)
    bhn = b_hh[:, 2 * D:]                           # b_hn must stay inside r*(.)
    wcls = jnp.zeros((D, N_CLASSES_PAD), bf16).at[:, :N_CLASSES].set(
        params["w_cls"].astype(bf16))
    bcls = jnp.zeros((1, N_CLASSES_PAD), f32).at[:, :N_CLASSES].set(
        params["b_cls"].astype(f32))

    kernel = functools.partial(_aann_kernel, sc=sc, bt=bt, s_valid=S, s_pad=s_pad)
    full = lambda shape: pl.BlockSpec(shape, lambda b, s: (0,) * len(shape))

    # VMEM budget (double-buffered x + weights, outputs, carried scratches)
    weight_bytes = ((fin_pad * D + 2 * D * G + D * N_CLASSES_PAD) * 2
                    + (D + G + D + N_CLASSES_PAD) * 4)
    vmem_est = (2 * sc * bt * fin_pad * 2
                + 2 * weight_bytes
                + 2 * (bt * N_CLASSES_PAD + bt * D) * 4
                + bt * D * 4
                + gx_slots * sc * bt * G * 4)
    vmem_limit = int(min(max(2 * vmem_est, 16 << 20), 48 << 20))

    cost = pl.CostEstimate(
        flops=int(2 * s_pad * b_pad * (fin_pad * D + 2 * D * G)
                  + 2 * b_pad * D * N_CLASSES_PAD),
        transcendentals=int(3 * s_pad * b_pad * D),
        bytes_accessed=int(s_pad * b_pad * fin_pad * 2 + weight_bytes
                           + b_pad * (N_CLASSES_PAD + D) * 4),
    )

    fn = pl.pallas_call(
        kernel,
        out_shape=(jax.ShapeDtypeStruct((b_pad, N_CLASSES_PAD), f32),
                   jax.ShapeDtypeStruct((b_pad, D), f32)),
        grid_spec=pltpu.PrefetchScalarGridSpec(
            num_scalar_prefetch=0,
            grid=(n_bt, n_s),                                  # (batch tiles, S chunks)
            in_specs=[
                pl.BlockSpec((sc, bt, fin_pad), lambda b, s: (s, b, 0)),  # streamed x
                full((fin_pad, D)),
                full((1, D)),
                full((D, G)),
                full((D, G)),
                full((1, G)),
                full((1, D)),
                full((D, N_CLASSES_PAD)),
                full((1, N_CLASSES_PAD)),
            ],
            out_specs=[
                pl.BlockSpec((bt, N_CLASSES_PAD), lambda b, s: (b, 0)),
                pl.BlockSpec((bt, D), lambda b, s: (b, 0)),
            ],
            scratch_shapes=[
                pltpu.VMEM((bt, D), f32),                      # carried hidden state
                pltpu.VMEM((gx_slots * sc, bt, G), f32),       # staged gates (dbl-buffer)
            ],
        ),
        compiler_params=pltpu.CompilerParams(
            dimension_semantics=("parallel", "arbitrary"),
            vmem_limit_bytes=vmem_limit,
        ),
        cost_estimate=cost,
    )
    logits_pad, h_pad = fn(xp, wfe, bfe, wih, whh, bih, bhn, wcls, bcls)
    return logits_pad[:B, :N_CLASSES], h_pad[:B]


def aann_forward_ref(x, params):
    """Pure-JAX reference (standard GRU; same bf16-operand / f32-accumulate math)."""
    S, B, _ = x.shape
    f32, bf16 = jnp.float32, jnp.bfloat16
    wfe = params["w_fe"].astype(bf16)
    wih = params["w_ih"].astype(bf16)
    whh = params["w_hh"].astype(bf16)
    wcls = params["w_cls"].astype(bf16)
    h = jnp.zeros((B, D), f32)
    for t in range(S):
        f = jnp.maximum(
            jnp.dot(x[t].astype(bf16), wfe, preferred_element_type=f32)
            + params["b_fe"], 0.0)
        gx = jnp.dot(f.astype(bf16), wih, preferred_element_type=f32) + params["b_ih"]
        gh = jnp.dot(h.astype(bf16), whh, preferred_element_type=f32) + params["b_hh"]
        r = jax.nn.sigmoid(gx[:, :D] + gh[:, :D])
        z = jax.nn.sigmoid(gx[:, D:2 * D] + gh[:, D:2 * D])
        n = jnp.tanh(gx[:, 2 * D:] + r * gh[:, 2 * D:])
        h = (1.0 - z) * n + z * h
    logits = jnp.dot(h.astype(bf16), wcls, preferred_element_type=f32) + params["b_cls"]
    return logits, h


def init_params(key, f_in):
    ks = jax.random.split(key, 7)
    s = lambda fan_in: 1.0 / jnp.sqrt(jnp.float32(fan_in))
    return {
        "w_fe":  jax.random.normal(ks[0], (f_in, D), jnp.float32) * s(f_in),
        "b_fe":  jnp.zeros((1, D), jnp.float32),
        "w_ih":  jax.random.normal(ks[1], (D, 3 * D), jnp.float32) * s(D),
        "w_hh":  jax.random.normal(ks[2], (D, 3 * D), jnp.float32) * s(D),
        "b_ih":  jax.random.normal(ks[3], (1, 3 * D), jnp.float32) * s(D),
        "b_hh":  jax.random.normal(ks[4], (1, 3 * D), jnp.float32) * s(D),
        "w_cls": jax.random.normal(ks[5], (D, N_CLASSES), jnp.float32) * s(D),
        "b_cls": jax.random.normal(ks[6], (1, N_CLASSES), jnp.float32) * s(D),
    }


if __name__ == "__main__":
    key = jax.random.PRNGKey(0)
    k_x, k_p = jax.random.split(key)

    S, B, F_IN = 8, 2, 32  # seq(tree nodes)=8, batch(trees)=2, raw node feature dim=32
    x = jax.random.normal(k_x, (S, B, F_IN), jnp.float32)
    params = init_params(k_p, F_IN)

    # max_s_chunk=4 -> two S-chunks: exercises the streamed-x path, the carried
    # hidden state and the cross-chunk gx double-buffer pipeline.
    logits, h_root = aann_forward(x, params, max_s_chunk=4)
    jax.block_until_ready((logits, h_root))

    logits_ref, h_root_ref = aann_forward_ref(x, params)
    assert logits.shape == (B, N_CLASSES) and h_root.shape == (B, D)
    assert jnp.allclose(h_root, h_root_ref, atol=1e-2, rtol=1e-2)
    assert jnp.allclose(logits, logits_ref, atol=1e-2, rtol=1e-2)

    print("KERNEL_OK")
</pallas_src>

<mosaic_0001>
module attributes {stable_mosaic.version = 11 : i64} {
  func.func @_aann_kernel(%arg0: i32, %arg1: i32, %arg2: memref<4x16x128xbf16, #tpu.memory_space<vmem>>, %arg3: memref<128x128xbf16, #tpu.memory_space<vmem>>, %arg4: memref<1x128xf32, #tpu.memory_space<vmem>>, %arg5: memref<128x384xbf16, #tpu.memory_space<vmem>>, %arg6: memref<128x384xbf16, #tpu.memory_space<vmem>>, %arg7: memref<1x384xf32, #tpu.memory_space<vmem>>, %arg8: memref<1x128xf32, #tpu.memory_space<vmem>>, %arg9: memref<128x128xbf16, #tpu.memory_space<vmem>>, %arg10: memref<1x128xf32, #tpu.memory_space<vmem>>, %arg11: memref<16x128xf32, #tpu.memory_space<vmem>>, %arg12: memref<16x128xf32, #tpu.memory_space<vmem>>, %arg13: memref<16x128xf32, #tpu.memory_space<vmem>>, %arg14: memref<8x16x384xf32, #tpu.memory_space<vmem>>) attributes {dimension_semantics = [#tpu.dimension_semantics<parallel>, #tpu.dimension_semantics<arbitrary>], iteration_bounds = array<i64: 1, 2>, scalar_prefetch = 0 : i64, scratch_operands = 2 : i64, tpu.core_type = #tpu.core_type<tc>, window_params = [{transform_indices = @transform_0, window_bounds = array<i64: 4, 16, 128>}, {pipeline_mode = #tpu.pipeline_mode<synchronous>, transform_indices = @transform_1, window_bounds = array<i64: 128, 128>}, {pipeline_mode = #tpu.pipeline_mode<synchronous>, transform_indices = @transform_2, window_bounds = array<i64: 1, 128>}, {pipeline_mode = #tpu.pipeline_mode<synchronous>, transform_indices = @transform_3, window_bounds = array<i64: 128, 384>}, {pipeline_mode = #tpu.pipeline_mode<synchronous>, transform_indices = @transform_4, window_bounds = array<i64: 128, 384>}, {pipeline_mode = #tpu.pipeline_mode<synchronous>, transform_indices = @transform_5, window_bounds = array<i64: 1, 384>}, {pipeline_mode = #tpu.pipeline_mode<synchronous>, transform_indices = @transform_6, window_bounds = array<i64: 1, 128>}, {pipeline_mode = #tpu.pipeline_mode<synchronous>, transform_indices = @transform_7, window_bounds = array<i64: 128, 128>}, {pipeline_mode = #tpu.pipeline_mode<synchronous>, transform_indices = @transform_8, window_bounds = array<i64: 1, 128>}, {transform_indices = @transform_9, window_bounds = array<i64: 16, 128>}, {transform_indices = @transform_10, window_bounds = array<i64: 16, 128>}]} {
    %c2_i32 = arith.constant 2 : i32
    %c0_i32 = arith.constant 0 : i32
    %0 = arith.cmpi eq, %c2_i32, %c0_i32 : i32
    %c1_i32 = arith.constant 1 : i32
    %1 = arith.select %0, %c1_i32, %c2_i32 : i32
    %2 = arith.remsi %arg1, %1 : i32
    %c0_i32_0 = arith.constant 0 : i32
    %3 = arith.cmpi ne, %2, %c0_i32_0 : i32
    %c0_i32_1 = arith.constant 0 : i32
    %4 = arith.cmpi slt, %2, %c0_i32_1 : i32
    %c0_i32_2 = arith.constant 0 : i32
    %5 = arith.cmpi slt, %1, %c0_i32_2 : i32
    %6 = arith.xori %4, %5 : i1
    %7 = arith.andi %6, %3 : i1
    %8 = arith.addi %2, %1 : i32
    %9 = arith.select %7, %8, %2 : i32
    %c0_i32_3 = arith.constant 0 : i32
    %10 = arith.cmpi eq, %arg1, %c0_i32_3 : i32
    %11 = arith.extui %10 : i1 to i32
    %c0_i32_4 = arith.constant 0 : i32
    %12 = arith.cmpi ne, %11, %c0_i32_4 : i32
    scf.if %12 {
      %cst_23 = arith.constant 0.000000e+00 : f32
      %38 = vector.broadcast %cst_23 : f32 to vector<16x128xf32>
      %c0_24 = arith.constant 0 : index
      %c0_25 = arith.constant 0 : index
      %39 = vector.load %arg13[%c0_24, %c0_25] : memref<16x128xf32, #tpu.memory_space<vmem>>, vector<16x128xf32>
      tpu.vector_store %arg13[%c0_24, %c0_25], %38 {strides = array<i32>} : memref<16x128xf32, #tpu.memory_space<vmem>>, vector<16x128xf32>,
    } else {
    }
    %c0_i32_5 = arith.constant 0 : i32
    %13 = arith.cmpi sgt, %arg1, %c0_i32_5 : i32
    %14 = arith.extui %13 : i1 to i32
    %c0_i32_6 = arith.constant 0 : i32
    %15 = arith.cmpi ne, %14, %c0_i32_6 : i32
    scf.if %15 {
      %c1_i32_23 = arith.constant 1 : i32
      %38 = arith.subi %c1_i32_23, %9 : i32
      %c0_24 = arith.constant 0 : index
      %c0_25 = arith.constant 0 : index
      %39 = vector.load %arg6[%c0_24, %c0_25] : memref<128x384xbf16, #tpu.memory_space<vmem>>, vector<128x384xbf16>
      %c0_26 = arith.constant 0 : index
      %c0_27 = arith.constant 0 : index
      %40 = vector.load %arg8[%c0_26, %c0_27] : memref<1x128xf32, #tpu.memory_space<vmem>>, vector<1x128xf32>
      %c4_i32_28 = arith.constant 4 : i32
      %41 = arith.muli %38, %c4_i32_28 : i32
      %c0_29 = arith.constant 0 : index
      %c0_30 = arith.constant 0 : index
      %42 = vector.load %arg13[%c0_29, %c0_30] : memref<16x128xf32, #tpu.memory_space<vmem>>, vector<16x128xf32>
      %c0_i32_31 = arith.constant 0 : i32
      %43 = arith.addi %41, %c0_i32_31 : i32
      %44 = arith.index_cast %43 : i32 to index
      %c0_32 = arith.constant 0 : index
      %c0_33 = arith.constant 0 : index
      %45 = vector.load %arg14[%44, %c0_32, %c0_33] : memref<8x16x384xf32, #tpu.memory_space<vmem>>, vector<1x16x384xf32>
      %46 = vector.shape_cast %45 : vector<1x16x384xf32> to vector<16x384xf32>
      %47 = arith.truncf %42 : vector<16x128xf32> to vector<16x128xbf16>
      %cst_34 = arith.constant dense<0.000000e+00> : vector<16x384xf32>
      %48 = tpu.matmul %47, %39, %cst_34 {dimension_numbers = #tpu.dot_dimension_numbers<[1], [0], [0], [1], [0, 0, 1, 1], [], []>} : vector<16x128xbf16>, vector<128x384xbf16>, vector<16x384xf32> -> vector<16x384xf32>
      %49 = vector.extract_strided_slice %46 {offsets = [0, 0], sizes = [16, 256], strides = [1, 1]} : vector<16x384xf32> to vector<16x256xf32>
      %50 = vector.extract_strided_slice %48 {offsets = [0, 0], sizes = [16, 256], strides = [1, 1]} : vector<16x384xf32> to vector<16x256xf32>
      %51 = arith.addf %49, %50 : vector<16x256xf32>
      %52 = arith.negf %51 : vector<16x256xf32>
      %53 = math.exp %52 : vector<16x256xf32>
      %cst_35 = arith.constant 1.000000e+00 : f32
      %54 = vector.broadcast %cst_35 : f32 to vector<16x256xf32>
      %55 = arith.addf %54, %53 : vector<16x256xf32>
      %56 = arith.divf %54, %55 : vector<16x256xf32>
      %57 = vector.extract_strided_slice %56 {offsets = [0, 0], sizes = [16, 128], strides = [1, 1]} : vector<16x256xf32> to vector<16x128xf32>
      %58 = vector.extract_strided_slice %56 {offsets = [0, 128], sizes = [16, 128], strides = [1, 1]} : vector<16x256xf32> to vector<16x128xf32>
      %59 = vector.extract_strided_slice %46 {offsets = [0, 256], sizes = [16, 128], strides = [1, 1]} : vector<16x384xf32> to vector<16x128xf32>
      %60 = vector.extract_strided_slice %48 {offsets = [0, 256], sizes = [16, 128], strides = [1, 1]} : vector<16x384xf32> to vector<16x128xf32>
      %61 = vector.broadcast %40 : vector<1x128xf32> to vector<16x128xf32>
      %62 = arith.addf %60, %61 : vector<16x128xf32>
      %63 = arith.mulf %57, %62 : vector<16x128xf32>
      %64 = arith.addf %59, %63 : vector<16x128xf32>
      %65 = math.tanh %64 : vector<16x128xf32>
      %66 = arith.subf %42, %65 : vector<16x128xf32>
      %67 = arith.mulf %58, %66 : vector<16x128xf32>
      %68 = arith.addf %65, %67 : vector<16x128xf32>
      %c1_i32_36 = arith.constant 1 : i32
      %69 = arith.addi %41, %c1_i32_36 : i32
      %70 = arith.index_cast %69 : i32 to index
      %c0_37 = arith.constant 0 : index
      %c0_38 = arith.constant 0 : index
      %71 = vector.load %arg14[%70, %c0_37, %c0_38] : memref<8x16x384xf32, #tpu.memory_space<vmem>>, vector<1x16x384xf32>
      %72 = vector.shape_cast %71 : vector<1x16x384xf32> to vector<16x384xf32>
      %73 = arith.truncf %68 : vector<16x128xf32> to vector<16x128xbf16>
      %cst_39 = arith.constant dense<0.000000e+00> : vector<16x384xf32>
      %74 = tpu.matmul %73, %39, %cst_39 {dimension_numbers = #tpu.dot_dimension_numbers<[1], [0], [0], [1], [0, 0, 1, 1], [], []>} : vector<16x128xbf16>, vector<128x384xbf16>, vector<16x384xf32> -> vector<16x384xf32>
      %75 = vector.extract_strided_slice %72 {offsets = [0, 0], sizes = [16, 256], strides = [1, 1]} : vector<16x384xf32> to vector<16x256xf32>
      %76 = vector.extract_strided_slice %74 {offsets = [0, 0], sizes = [16, 256], strides = [1, 1]} : vector<16x384xf32> to vector<16x256xf32>
      %77 = arith.addf %75, %76 : vector<16x256xf32>
      %78 = arith.negf %77 : vector<16x256xf32>
      %79 = math.exp %78 : vector<16x256xf32>
      %cst_40 = arith.constant 1.000000e+00 : f32
      %80 = vector.broadcast %cst_40 : f32 to vector<16x256xf32>
      %81 = arith.addf %80, %79 : vector<16x256xf32>
      %82 = arith.divf %80, %81 : vector<16x256xf32>
      %83 = vector.extract_strided_slice %82 {offsets = [0, 0], sizes = [16, 128], strides = [1, 1]} : vector<16x256xf32> to vector<16x128xf32>
      %84 = vector.extract_strided_slice %82 {offsets = [0, 128], sizes = [16, 128], strides = [1, 1]} : vector<16x256xf32> to vector<16x128xf32>
      %85 = vector.extract_strided_slice %72 {offsets = [0, 256], sizes = [16, 128], strides = [1, 1]} : vector<16x384xf32> to vector<16x128xf32>
      %86 = vector.extract_strided_slice %74 {offsets = [0, 256], sizes = [16, 128], strides = [1, 1]} : vector<16x384xf32> to vector<16x128xf32>
      %87 = vector.broadcast %40 : vector<1x128xf32> to vector<16x128xf32>
      %88 = arith.addf %86, %87 : vector<16x128xf32>
      %89 = arith.mulf %83, %88 : vector<16x128xf32>
      %90 = arith.addf %85, %89 : vector<16x128xf32>
      %91 = math.tanh %90 : vector<16x128xf32>
      %92 = arith.subf %68, %91 : vector<16x128xf32>
      %93 = arith.mulf %84, %92 : vector<16x128xf32>
      %94 = arith.addf %91, %93 : vector<16x128xf32>
      %c2_i32_41 = arith.constant 2 : i32
      %95 = arith.addi %41, %c2_i32_41 : i32
      %96 = arith.index_cast %95 : i32 to index
      %c0_42 = arith.constant 0 : index
      %c0_43 = arith.constant 0 : index
      %97 = vector.load %arg14[%96, %c0_42, %c0_43] : memref<8x16x384xf32, #tpu.memory_space<vmem>>, vector<1x16x384xf32>
      %98 = vector.shape_cast %97 : vector<1x16x384xf32> to vector<16x384xf32>
      %99 = arith.truncf %94 : vector<16x128xf32> to vector<16x128xbf16>
      %cst_44 = arith.constant dense<0.000000e+00> : vector<16x384xf32>
      %100 = tpu.matmul %99, %39, %cst_44 {dimension_numbers = #tpu.dot_dimension_numbers<[1], [0], [0], [1], [0, 0, 1, 1], [], []>} : vector<16x128xbf16>, vector<128x384xbf16>, vector<16x384xf32> -> vector<16x384xf32>
      %101 = vector.extract_strided_slice %98 {offsets = [0, 0], sizes = [16, 256], strides = [1, 1]} : vector<16x384xf32> to vector<16x256xf32>
      %102 = vector.extract_strided_slice %100 {offsets = [0, 0], sizes = [16, 256], strides = [1, 1]} : vector<16x384xf32> to vector<16x256xf32>
      %103 = arith.addf %101, %102 : vector<16x256xf32>
      %104 = arith.negf %103 : vector<16x256xf32>
      %105 = math.exp %104 : vector<16x256xf32>
      %cst_45 = arith.constant 1.000000e+00 : f32
      %106 = vector.broadcast %cst_45 : f32 to vector<16x256xf32>
      %107 = arith.addf %106, %105 : vector<16x256xf32>
      %108 = arith.divf %106, %107 : vector<16x256xf32>
      %109 = vector.extract_strided_slice %108 {offsets = [0, 0], sizes = [16, 128], strides = [1, 1]} : vector<16x256xf32> to vector<16x128xf32>
      %110 = vector.extract_strided_slice %108 {offsets = [0, 128], sizes = [16, 128], strides = [1, 1]} : vector<16x256xf32> to vector<16x128xf32>
      %111 = vector.extract_strided_slice %98 {offsets = [0, 256], sizes = [16, 128], strides = [1, 1]} : vector<16x384xf32> to vector<16x128xf32>
      %112 = vector.extract_strided_slice %100 {offsets = [0, 256], sizes = [16, 128], strides = [1, 1]} : vector<16x384xf32> to vector<16x128xf32>
      %113 = vector.broadcast %40 : vector<1x128xf32> to vector<16x128xf32>
      %114 = arith.addf %112, %113 : vector<16x128xf32>
      %115 = arith.mulf %109, %114 : vector<16x128xf32>
      %116 = arith.addf %111, %115 : vector<16x128xf32>
      %117 = math.tanh %116 : vector<16x128xf32>
      %118 = arith.subf %94, %117 : vector<16x128xf32>
      %119 = arith.mulf %110, %118 : vector<16x128xf32>
      %120 = arith.addf %117, %119 : vector<16x128xf32>
      %c3_i32 = arith.constant 3 : i32
      %121 = arith.addi %41, %c3_i32 : i32
      %122 = arith.index_cast %121 : i32 to index
      %c0_46 = arith.constant 0 : index
      %c0_47 = arith.constant 0 : index
      %123 = vector.load %arg14[%122, %c0_46, %c0_47] : memref<8x16x384xf32, #tpu.memory_space<vmem>>, vector<1x16x384xf32>
      %124 = vector.shape_cast %123 : vector<1x16x384xf32> to vector<16x384xf32>
      %125 = arith.truncf %120 : vector<16x128xf32> to vector<16x128xbf16>
      %cst_48 = arith.constant dense<0.000000e+00> : vector<16x384xf32>
      %126 = tpu.matmul %125, %39, %cst_48 {dimension_numbers = #tpu.dot_dimension_numbers<[1], [0], [0], [1], [0, 0, 1, 1], [], []>} : vector<16x128xbf16>, vector<128x384xbf16>, vector<16x384xf32> -> vector<16x384xf32>
      %127 = vector.extract_strided_slice %124 {offsets = [0, 0], sizes = [16, 256], strides = [1, 1]} : vector<16x384xf32> to vector<16x256xf32>
      %128 = vector.extract_strided_slice %126 {offsets = [0, 0], sizes = [16, 256], strides = [1, 1]} : vector<16x384xf32> to vector<16x256xf32>
      %129 = arith.addf %127, %128 : vector<16x256xf32>
      %130 = arith.negf %129 : vector<16x256xf32>
      %131 = math.exp %130 : vector<16x256xf32>
      %cst_49 = arith.constant 1.000000e+00 : f32
      %132 = vector.broadcast %cst_49 : f32 to vector<16x256xf32>
      %133 = arith.addf %132, %131 : vector<16x256xf32>
      %134 = arith.divf %132, %133 : vector<16x256xf32>
      %135 = vector.extract_strided_slice %134 {offsets = [0, 0], sizes = [16, 128], strides = [1, 1]} : vector<16x256xf32> to vector<16x128xf32>
      %136 = vector.extract_strided_slice %134 {offsets = [0, 128], sizes = [16, 128], strides = [1, 1]} : vector<16x256xf32> to vector<16x128xf32>
      %137 = vector.extract_strided_slice %124 {offsets = [0, 256], sizes = [16, 128], strides = [1, 1]} : vector<16x384xf32> to vector<16x128xf32>
      %138 = vector.extract_strided_slice %126 {offsets = [0, 256], sizes = [16, 128], strides = [1, 1]} : vector<16x384xf32> to vector<16x128xf32>
      %139 = vector.broadcast %40 : vector<1x128xf32> to vector<16x128xf32>
      %140 = arith.addf %138, %139 : vector<16x128xf32>
      %141 = arith.mulf %135, %140 : vector<16x128xf32>
      %142 = arith.addf %137, %141 : vector<16x128xf32>
      %143 = math.tanh %142 : vector<16x128xf32>
      %144 = arith.subf %120, %143 : vector<16x128xf32>
      %145 = arith.mulf %136, %144 : vector<16x128xf32>
      %146 = arith.addf %143, %145 : vector<16x128xf32>
      %c0_50 = arith.constant 0 : index
      %c0_51 = arith.constant 0 : index
      %147 = vector.load %arg13[%c0_50, %c0_51] : memref<16x128xf32, #tpu.memory_space<vmem>>, vector<16x128xf32>
      tpu.vector_store %arg13[%c0_50, %c0_51], %146 {strides = array<i32>} : memref<16x128xf32, #tpu.memory_space<vmem>>, vector<16x128xf32>,
    } else {
    }
    %c0 = arith.constant 0 : index
    %c0_7 = arith.constant 0 : index
    %c0_8 = arith.constant 0 : index
    %16 = vector.load %arg2[%c0, %c0_7, %c0_8] : memref<4x16x128xbf16, #tpu.memory_space<vmem>>, vector<4x16x128xbf16>
    %17 = vector.shape_cast %16 : vector<4x16x128xbf16> to vector<64x128xbf16>
    %c0_9 = arith.constant 0 : index
    %c0_10 = arith.constant 0 : index
    %18 = vector.load %arg3[%c0_9, %c0_10] : memref<128x128xbf16, #tpu.memory_space<vmem>>, vector<128x128xbf16>
    %cst = arith.constant dense<0.000000e+00> : vector<64x128xf32>
    %19 = tpu.matmul %17, %18, %cst {dimension_numbers = #tpu.dot_dimension_numbers<[1], [0], [0], [1], [0, 0, 1, 1], [], []>} : vector<64x128xbf16>, vector<128x128xbf16>, vector<64x128xf32> -> vector<64x128xf32>
    %c0_11 = arith.constant 0 : index
    %c0_12 = arith.constant 0 : index
    %20 = vector.load %arg4[%c0_11, %c0_12] : memref<1x128xf32, #tpu.memory_space<vmem>>, vector<1x128xf32>
    %21 = vector.broadcast %20 : vector<1x128xf32> to vector<64x128xf32>
    %22 = arith.addf %19, %21 : vector<64x128xf32>
    %cst_13 = arith.constant 0.000000e+00 : f32
    %23 = vector.broadcast %cst_13 : f32 to vector<64x128xf32>
    %24 = arith.maximumf %22, %23 : vector<64x128xf32>
    %25 = arith.truncf %24 : vector<64x128xf32> to vector<64x128xbf16>
    %c0_14 = arith.constant 0 : index
    %c0_15 = arith.constant 0 : index
    %26 = vector.load %arg5[%c0_14, %c0_15] : memref<128x384xbf16, #tpu.memory_space<vmem>>, vector<128x384xbf16>
    %cst_16 = arith.constant dense<0.000000e+00> : vector<64x384xf32>
    %27 = tpu.matmul %25, %26, %cst_16 {dimension_numbers = #tpu.dot_dimension_numbers<[1], [0], [0], [1], [0, 0, 1, 1], [], []>} : vector<64x128xbf16>, vector<128x384xbf16>, vector<64x384xf32> -> vector<64x384xf32>
    %c0_17 = arith.constant 0 : index
    %c0_18 = arith.constant 0 : index
    %28 = vector.load %arg7[%c0_17, %c0_18] : memref<1x384xf32, #tpu.memory_space<vmem>>, vector<1x384xf32>
    %29 = vector.broadcast %28 : vector<1x384xf32> to vector<64x384xf32>
    %30 = arith.addf %27, %29 : vector<64x384xf32>
    %31 = vector.shape_cast %30 : vector<64x384xf32> to vector<4x16x384xf32>
    %c4_i32 = arith.constant 4 : i32
    %32 = arith.muli %9, %c4_i32 : i32
    %33 = arith.index_cast %32 : i32 to index
    %c0_19 = arith.constant 0 : index
    %c0_20 = arith.constant 0 : index
    %34 = vector.load %arg14[%33, %c0_19, %c0_20] : memref<8x16x384xf32, #tpu.memory_space<vmem>>, vector<4x16x384xf32>
    tpu.vector_store %arg14[%33, %c0_19, %c0_20], %31 {strides = array<i32>} : memref<8x16x384xf32, #tpu.memory_space<vmem>>, vector<4x16x384xf32>,
    %c1_i32_21 = arith.constant 1 : i32
    %35 = arith.cmpi eq, %arg1, %c1_i32_21 : i32
    %36 = arith.extui %35 : i1 to i32
    %c0_i32_22 = arith.constant 0 : i32
    %37 = arith.cmpi ne, %36, %c0_i32_22 : i32
    scf.if %37 {
      %c0_23 = arith.constant 0 : index
      %c0_24 = arith.constant 0 : index
      %38 = vector.load %arg6[%c0_23, %c0_24] : memref<128x384xbf16, #tpu.memory_space<vmem>>, vector<128x384xbf16>
      %c0_25 = arith.constant 0 : index
      %c0_26 = arith.constant 0 : index
      %39 = vector.load %arg8[%c0_25, %c0_26] : memref<1x128xf32, #tpu.memory_space<vmem>>, vector<1x128xf32>
      %c4_i32_27 = arith.constant 4 : i32
      %40 = arith.muli %9, %c4_i32_27 : i32
      %c0_28 = arith.constant 0 : index
      %c0_29 = arith.constant 0 : index
      %41 = vector.load %arg13[%c0_28, %c0_29] : memref<16x128xf32, #tpu.memory_space<vmem>>, vector<16x128xf32>
      %c0_i32_30 = arith.constant 0 : i32
      %42 = arith.addi %40, %c0_i32_30 : i32
      %43 = arith.index_cast %42 : i32 to index
      %c0_31 = arith.constant 0 : index
      %c0_32 = arith.constant 0 : index
      %44 = vector.load %arg14[%43, %c0_31, %c0_32] : memref<8x16x384xf32, #tpu.memory_space<vmem>>, vector<1x16x384xf32>
      %45 = vector.shape_cast %44 : vector<1x16x384xf32> to vector<16x384xf32>
      %46 = arith.truncf %41 : vector<16x128xf32> to vector<16x128xbf16>
      %cst_33 = arith.constant dense<0.000000e+00> : vector<16x384xf32>
      %47 = tpu.matmul %46, %38, %cst_33 {dimension_numbers = #tpu.dot_dimension_numbers<[1], [0], [0], [1], [0, 0, 1, 1], [], []>} : vector<16x128xbf16>, vector<128x384xbf16>, vector<16x384xf32> -> vector<16x384xf32>
      %48 = vector.extract_strided_slice %45 {offsets = [0, 0], sizes = [16, 256], strides = [1, 1]} : vector<16x384xf32> to vector<16x256xf32>
      %49 = vector.extract_strided_slice %47 {offsets = [0, 0], sizes = [16, 256], strides = [1, 1]} : vector<16x384xf32> to vector<16x256xf32>
      %50 = arith.addf %48, %49 : vector<16x256xf32>
      %51 = arith.negf %50 : vector<16x256xf32>
      %52 = math.exp %51 : vector<16x256xf32>
      %cst_34 = arith.constant 1.000000e+00 : f32
      %53 = vector.broadcast %cst_34 : f32 to vector<16x256xf32>
      %54 = arith.addf %53, %52 : vector<16x256xf32>
      %55 = arith.divf %53, %54 : vector<16x256xf32>
      %56 = vector.extract_strided_slice %55 {offsets = [0, 0], sizes = [16, 128], strides = [1, 1]} : vector<16x256xf32> to vector<16x128xf32>
      %57 = vector.extract_strided_slice %55 {offsets = [0, 128], sizes = [16, 128], strides = [1, 1]} : vector<16x256xf32> to vector<16x128xf32>
      %58 = vector.extract_strided_slice %45 {offsets = [0, 256], sizes = [16, 128], strides = [1, 1]} : vector<16x384xf32> to vector<16x128xf32>
      %59 = vector.extract_strided_slice %47 {offsets = [0, 256], sizes = [16, 128], strides = [1, 1]} : vector<16x384xf32> to vector<16x128xf32>
      %60 = vector.broadcast %39 : vector<1x128xf32> to vector<16x128xf32>
      %61 = arith.addf %59, %60 : vector<16x128xf32>
      %62 = arith.mulf %56, %61 : vector<16x128xf32>
      %63 = arith.addf %58, %62 : vector<16x128xf32>
      %64 = math.tanh %63 : vector<16x128xf32>
      %65 = arith.subf %41, %64 : vector<16x128xf32>
      %66 = arith.mulf %57, %65 : vector<16x128xf32>
      %67 = arith.addf %64, %66 : vector<16x128xf32>
      %c1_i32_35 = arith.constant 1 : i32
      %68 = arith.addi %40, %c1_i32_35 : i32
      %69 = arith.index_cast %68 : i32 to index
      %c0_36 = arith.constant 0 : index
      %c0_37 = arith.constant 0 : index
      %70 = vector.load %arg14[%69, %c0_36, %c0_37] : memref<8x16x384xf32, #tpu.memory_space<vmem>>, vector<1x16x384xf32>
      %71 = vector.shape_cast %70 : vector<1x16x384xf32> to vector<16x384xf32>
      %72 = arith.truncf %67 : vector<16x128xf32> to vector<16x128xbf16>
      %cst_38 = arith.constant dense<0.000000e+00> : vector<16x384xf32>
      %73 = tpu.matmul %72, %38, %cst_38 {dimension_numbers = #tpu.dot_dimension_numbers<[1], [0], [0], [1], [0, 0, 1, 1], [], []>} : vector<16x128xbf16>, vector<128x384xbf16>, vector<16x384xf32> -> vector<16x384xf32>
      %74 = vector.extract_strided_slice %71 {offsets = [0, 0], sizes = [16, 256], strides = [1, 1]} : vector<16x384xf32> to vector<16x256xf32>
      %75 = vector.extract_strided_slice %73 {offsets = [0, 0], sizes = [16, 256], strides = [1, 1]} : vector<16x384xf32> to vector<16x256xf32>
      %76 = arith.addf %74, %75 : vector<16x256xf32>
      %77 = arith.negf %76 : vector<16x256xf32>
      %78 = math.exp %77 : vector<16x256xf32>
      %cst_39 = arith.constant 1.000000e+00 : f32
      %79 = vector.broadcast %cst_39 : f32 to vector<16x256xf32>
      %80 = arith.addf %79, %78 : vector<16x256xf32>
      %81 = arith.divf %79, %80 : vector<16x256xf32>
      %82 = vector.extract_strided_slice %81 {offsets = [0, 0], sizes = [16, 128], strides = [1, 1]} : vector<16x256xf32> to vector<16x128xf32>
      %83 = vector.extract_strided_slice %81 {offsets = [0, 128], sizes = [16, 128], strides = [1, 1]} : vector<16x256xf32> to vector<16x128xf32>
      %84 = vector.extract_strided_slice %71 {offsets = [0, 256], sizes = [16, 128], strides = [1, 1]} : vector<16x384xf32> to vector<16x128xf32>
      %85 = vector.extract_strided_slice %73 {offsets = [0, 256], sizes = [16, 128], strides = [1, 1]} : vector<16x384xf32> to vector<16x128xf32>
      %86 = vector.broadcast %39 : vector<1x128xf32> to vector<16x128xf32>
      %87 = arith.addf %85, %86 : vector<16x128xf32>
      %88 = arith.mulf %82, %87 : vector<16x128xf32>
      %89 = arith.addf %84, %88 : vector<16x128xf32>
      %90 = math.tanh %89 : vector<16x128xf32>
      %91 = arith.subf %67, %90 : vector<16x128xf32>
      %92 = arith.mulf %83, %91 : vector<16x128xf32>
      %93 = arith.addf %90, %92 : vector<16x128xf32>
      %c2_i32_40 = arith.constant 2 : i32
      %94 = arith.addi %40, %c2_i32_40 : i32
      %95 = arith.index_cast %94 : i32 to index
      %c0_41 = arith.constant 0 : index
      %c0_42 = arith.constant 0 : index
      %96 = vector.load %arg14[%95, %c0_41, %c0_42] : memref<8x16x384xf32, #tpu.memory_space<vmem>>, vector<1x16x384xf32>
      %97 = vector.shape_cast %96 : vector<1x16x384xf32> to vector<16x384xf32>
      %98 = arith.truncf %93 : vector<16x128xf32> to vector<16x128xbf16>
      %cst_43 = arith.constant dense<0.000000e+00> : vector<16x384xf32>
      %99 = tpu.matmul %98, %38, %cst_43 {dimension_numbers = #tpu.dot_dimension_numbers<[1], [0], [0], [1], [0, 0, 1, 1], [], []>} : vector<16x128xbf16>, vector<128x384xbf16>, vector<16x384xf32> -> vector<16x384xf32>
      %100 = vector.extract_strided_slice %97 {offsets = [0, 0], sizes = [16, 256], strides = [1, 1]} : vector<16x384xf32> to vector<16x256xf32>
      %101 = vector.extract_strided_slice %99 {offsets = [0, 0], sizes = [16, 256], strides = [1, 1]} : vector<16x384xf32> to vector<16x256xf32>
      %102 = arith.addf %100, %101 : vector<16x256xf32>
      %103 = arith.negf %102 : vector<16x256xf32>
      %104 = math.exp %103 : vector<16x256xf32>
      %cst_44 = arith.constant 1.000000e+00 : f32
      %105 = vector.broadcast %cst_44 : f32 to vector<16x256xf32>
      %106 = arith.addf %105, %104 : vector<16x256xf32>
      %107 = arith.divf %105, %106 : vector<16x256xf32>
      %108 = vector.extract_strided_slice %107 {offsets = [0, 0], sizes = [16, 128], strides = [1, 1]} : vector<16x256xf32> to vector<16x128xf32>
      %109 = vector.extract_strided_slice %107 {offsets = [0, 128], sizes = [16, 128], strides = [1, 1]} : vector<16x256xf32> to vector<16x128xf32>
      %110 = vector.extract_strided_slice %97 {offsets = [0, 256], sizes = [16, 128], strides = [1, 1]} : vector<16x384xf32> to vector<16x128xf32>
      %111 = vector.extract_strided_slice %99 {offsets = [0, 256], sizes = [16, 128], strides = [1, 1]} : vector<16x384xf32> to vector<16x128xf32>
      %112 = vector.broadcast %39 : vector<1x128xf32> to vector<16x128xf32>
      %113 = arith.addf %111, %112 : vector<16x128xf32>
      %114 = arith.mulf %108, %113 : vector<16x128xf32>
      %115 = arith.addf %110, %114 : vector<16x128xf32>
      %116 = math.tanh %115 : vector<16x128xf32>
      %117 = arith.subf %93, %116 : vector<16x128xf32>
      %118 = arith.mulf %109, %117 : vector<16x128xf32>
      %119 = arith.addf %116, %118 : vector<16x128xf32>
      %c3_i32 = arith.constant 3 : i32
      %120 = arith.addi %40, %c3_i32 : i32
      %121 = arith.index_cast %120 : i32 to index
      %c0_45 = arith.constant 0 : index
      %c0_46 = arith.constant 0 : index
      %122 = vector.load %arg14[%121, %c0_45, %c0_46] : memref<8x16x384xf32, #tpu.memory_space<vmem>>, vector<1x16x384xf32>
      %123 = vector.shape_cast %122 : vector<1x16x384xf32> to vector<16x384xf32>
      %124 = arith.truncf %119 : vector<16x128xf32> to vector<16x128xbf16>
      %cst_47 = arith.constant dense<0.000000e+00> : vector<16x384xf32>
      %125 = tpu.matmul %124, %38, %cst_47 {dimension_numbers = #tpu.dot_dimension_numbers<[1], [0], [0], [1], [0, 0, 1, 1], [], []>} : vector<16x128xbf16>, vector<128x384xbf16>, vector<16x384xf32> -> vector<16x384xf32>
      %126 = vector.extract_strided_slice %123 {offsets = [0, 0], sizes = [16, 256], strides = [1, 1]} : vector<16x384xf32> to vector<16x256xf32>
      %127 = vector.extract_strided_slice %125 {offsets = [0, 0], sizes = [16, 256], strides = [1, 1]} : vector<16x384xf32> to vector<16x256xf32>
      %128 = arith.addf %126, %127 : vector<16x256xf32>
      %129 = arith.negf %128 : vector<16x256xf32>
      %130 = math.exp %129 : vector<16x256xf32>
      %cst_48 = arith.constant 1.000000e+00 : f32
      %131 = vector.broadcast %cst_48 : f32 to vector<16x256xf32>
      %132 = arith.addf %131, %130 : vector<16x256xf32>
      %133 = arith.divf %131, %132 : vector<16x256xf32>
      %134 = vector.extract_strided_slice %133 {offsets = [0, 0], sizes = [16, 128], strides = [1, 1]} : vector<16x256xf32> to vector<16x128xf32>
      %135 = vector.extract_strided_slice %133 {offsets = [0, 128], sizes = [16, 128], strides = [1, 1]} : vector<16x256xf32> to vector<16x128xf32>
      %136 = vector.extract_strided_slice %123 {offsets = [0, 256], sizes = [16, 128], strides = [1, 1]} : vector<16x384xf32> to vector<16x128xf32>
      %137 = vector.extract_strided_slice %125 {offsets = [0, 256], sizes = [16, 128], strides = [1, 1]} : vector<16x384xf32> to vector<16x128xf32>
      %138 = vector.broadcast %39 : vector<1x128xf32> to vector<16x128xf32>
      %139 = arith.addf %137, %138 : vector<16x128xf32>
      %140 = arith.mulf %134, %139 : vector<16x128xf32>
      %141 = arith.addf %136, %140 : vector<16x128xf32>
      %142 = math.tanh %141 : vector<16x128xf32>
      %143 = arith.subf %119, %142 : vector<16x128xf32>
      %144 = arith.mulf %135, %143 : vector<16x128xf32>
      %145 = arith.addf %142, %144 : vector<16x128xf32>
      %c0_49 = arith.constant 0 : index
      %c0_50 = arith.constant 0 : index
      %146 = vector.load %arg13[%c0_49, %c0_50] : memref<16x128xf32, #tpu.memory_space<vmem>>, vector<16x128xf32>
      tpu.vector_store %arg13[%c0_49, %c0_50], %145 {strides = array<i32>} : memref<16x128xf32, #tpu.memory_space<vmem>>, vector<16x128xf32>,
      %c0_51 = arith.constant 0 : index
      %c0_52 = arith.constant 0 : index
      %147 = vector.load %arg13[%c0_51, %c0_52] : memref<16x128xf32, #tpu.memory_space<vmem>>, vector<16x128xf32>
      %c0_53 = arith.constant 0 : index
      %c0_54 = arith.constant 0 : index
      %148 = vector.load %arg12[%c0_53, %c0_54] : memref<16x128xf32, #tpu.memory_space<vmem>>, vector<16x128xf32>
      tpu.vector_store %arg12[%c0_53, %c0_54], %147 {strides = array<i32>} : memref<16x128xf32, #tpu.memory_space<vmem>>, vector<16x128xf32>,
      %149 = arith.truncf %147 : vector<16x128xf32> to vector<16x128xbf16>
      %c0_55 = arith.constant 0 : index
      %c0_56 = arith.constant 0 : index
      %150 = vector.load %arg9[%c0_55, %c0_56] : memref<128x128xbf16, #tpu.memory_space<vmem>>, vector<128x128xbf16>
      %cst_57 = arith.constant dense<0.000000e+00> : vector<16x128xf32>
      %151 = tpu.matmul %149, %150, %cst_57 {dimension_numbers = #tpu.dot_dimension_numbers<[1], [0], [0], [1], [0, 0, 1, 1], [], []>} : vector<16x128xbf16>, vector<128x128xbf16>, vector<16x128xf32> -> vector<16x128xf32>
      %c0_58 = arith.constant 0 : index
      %c0_59 = arith.constant 0 : index
      %152 = vector.load %arg10[%c0_58, %c0_59] : memref<1x128xf32, #tpu.memory_space<vmem>>, vector<1x128xf32>
      %153 = vector.broadcast %152 : vector<1x128xf32> to vector<16x128xf32>
      %154 = arith.addf %151, %153 : vector<16x128xf32>
      %c0_60 = arith.constant 0 : index
      %c0_61 = arith.constant 0 : index
      %155 = vector.load %arg11[%c0_60, %c0_61] : memref<16x128xf32, #tpu.memory_space<vmem>>, vector<16x128xf32>
      tpu.vector_store %arg11[%c0_60, %c0_61], %154 {strides = array<i32>} : memref<16x128xf32, #tpu.memory_space<vmem>>, vector<16x128xf32>,
    } else {
    }
    return
  }
  func.func @transform_0(%arg0: i32, %arg1: i32) -> (i32, i32, i32) {
    %c0_i32 = arith.constant 0 : i32
    %c0_i32_0 = arith.constant 0 : i32
    return %arg1, %arg0, %c0_i32 : i32, i32, i32
  }
  func.func @transform_1(%arg0: i32, %arg1: i32) -> (i32, i32) {
    %c0_i32 = arith.constant 0 : i32
    %c0_i32_0 = arith.constant 0 : i32
    %c0_i32_1 = arith.constant 0 : i32
    return %c0_i32, %c0_i32_0 : i32, i32
  }
  func.func @transform_2(%arg0: i32, %arg1: i32) -> (i32, i32) {
    %c0_i32 = arith.constant 0 : i32
    %c0_i32_0 = arith.constant 0 : i32
    %c0_i32_1 = arith.constant 0 : i32
    return %c0_i32, %c0_i32_0 : i32, i32
  }
  func.func @transform_3(%arg0: i32, %arg1: i32) -> (i32, i32) {
    %c0_i32 = arith.constant 0 : i32
    %c0_i32_0 = arith.constant 0 : i32
    %c0_i32_1 = arith.constant 0 : i32
    return %c0_i32, %c0_i32_0 : i32, i32
  }
  func.func @transform_4(%arg0: i32, %arg1: i32) -> (i32, i32) {
    %c0_i32 = arith.constant 0 : i32
    %c0_i32_0 = arith.constant 0 : i32
    %c0_i32_1 = arith.constant 0 : i32
    return %c0_i32, %c0_i32_0 : i32, i32
  }
  func.func @transform_5(%arg0: i32, %arg1: i32) -> (i32, i32) {
    %c0_i32 = arith.constant 0 : i32
    %c0_i32_0 = arith.constant 0 : i32
    %c0_i32_1 = arith.constant 0 : i32
    return %c0_i32, %c0_i32_0 : i32, i32
  }
  func.func @transform_6(%arg0: i32, %arg1: i32) -> (i32, i32) {
    %c0_i32 = arith.constant 0 : i32
    %c0_i32_0 = arith.constant 0 : i32
    %c0_i32_1 = arith.constant 0 : i32
    return %c0_i32, %c0_i32_0 : i32, i32
  }
  func.func @transform_7(%arg0: i32, %arg1: i32) -> (i32, i32) {
    %c0_i32 = arith.constant 0 : i32
    %c0_i32_0 = arith.constant 0 : i32
    %c0_i32_1 = arith.constant 0 : i32
    return %c0_i32, %c0_i32_0 : i32, i32
  }
  func.func @transform_8(%arg0: i32, %arg1: i32) -> (i32, i32) {
    %c0_i32 = arith.constant 0 : i32
    %c0_i32_0 = arith.constant 0 : i32
    %c0_i32_1 = arith.constant 0 : i32
    return %c0_i32, %c0_i32_0 : i32, i32
  }
  func.func @transform_9(%arg0: i32, %arg1: i32) -> (i32, i32) {
    %c0_i32 = arith.constant 0 : i32
    %c0_i32_0 = arith.constant 0 : i32
    return %arg0, %c0_i32 : i32, i32
  }
  func.func @transform_10(%arg0: i32, %arg1: i32) -> (i32, i32) {
    %c0_i32 = arith.constant 0 : i32
    %c0_i32_0 = arith.constant 0 : i32
    return %arg0, %c0_i32 : i32, i32
  }
}

</mosaic_0001>

<llo_original>
// kernel: tpu_custom_call.1
$region0: #{tpu_custom_call.1}
  #allocation0 [shape = 'u32[]', space=smem, size = 0x4, offset = 0x4, fixed_abs, tag = 'smem constant byte address 0x4 - core index']
  #allocation1 [shape = 'u32[144,128]{1,0:T(1,128)}', space=vmem, size = 0x12000, scoped, tag = 'internal scratch']
  #allocation2 [shape = 'f32[16,128]{1,0:T(8,128)}', space=vmem, size = 0x2000, scoped, tag = 'scratch operand']
  #allocation3 [shape = 'f32[8,16,384]{2,1,0:T(8,128)}', space=vmem, size = 0x30000, scoped, tag = 'scratch operand']
  %s0 = inlined_call_operand.hbm [shape: bf16[8,16,128], index: 0, kind: input, shape index: {}]
  %s1 = inlined_call_operand.hbm [shape: bf16[128,128], index: 1, kind: input, shape index: {}]
  %s2 = inlined_call_operand.vmem [shape: f32[1,128], index: 2, kind: input, shape index: {}]
  %s3 = inlined_call_operand.hbm [shape: bf16[128,384], index: 3, kind: input, shape index: {}]
  %s4 = inlined_call_operand.hbm [shape: bf16[128,384], index: 4, kind: input, shape index: {}]
  %s5 = inlined_call_operand.vmem [shape: f32[1,384], index: 5, kind: input, shape index: {}]
  %s6 = inlined_call_operand.vmem [shape: f32[1,128], index: 6, kind: input, shape index: {}]
  %s7 = inlined_call_operand.hbm [shape: bf16[128,128], index: 7, kind: input, shape index: {}]
  %s8 = inlined_call_operand.vmem [shape: f32[1,128], index: 8, kind: input, shape index: {}]
  %s9 = inlined_call_operand.hbm [shape: f32[16,128], index: 9, kind: output, shape index: {0}]
  %s10 = inlined_call_operand.hbm [shape: f32[16,128], index: 10, kind: output, shape index: {1}]
  %11 = xla_tuple %s9, %s10
  %s12 = sld [smem:[#allocation0]]
  $region109: #{tpu_custom_call.1} parent=0
    _
  %s14 = ssub.s32 1, %s12
  %s15 = scalar_select 0, %s14, %s12
  $region1: #{tpu_custom_call.1} parent=0
    #allocation4 [shape = 'u8[32768]{0}', space=vmem, size = 0x8000, scoped, tag = 'input window, operand 0']
    #allocation5 [shape = 's32[2]{0}', space=sflag, size = 0x8, scoped, tag = 'scoped memory for tpu_custom_call.1']
    #allocation6 [shape = 's32[2]{0}', space=sflag, size = 0x8, scoped, tag = 'scoped memory for tpu_custom_call.1']
    #allocation7 [shape = 'u8[32768]{0}', space=vmem, size = 0x8000, scoped, tag = 'input window, operand 1, single buffered']
    #allocation8 [shape = 's32[1]{0}', space=sflag, size = 0x4, scoped, tag = 'scoped memory for tpu_custom_call.1']
    #allocation9 [shape = 'u8[98304]{0}', space=vmem, size = 0x18000, scoped, tag = 'input window, operand 3, single buffered']
    #allocation10 [shape = 'u8[98304]{0}', space=vmem, size = 0x18000, scoped, tag = 'input window, operand 4, single buffered']
    #allocation11 [shape = 's32[1]{0}', space=sflag, size = 0x4, scoped, tag = 'scoped memory for tpu_custom_call.1']
    #allocation12 [shape = 'u8[32768]{0}', space=vmem, size = 0x8000, scoped, tag = 'input window, operand 7, single buffered']
    #allocation13 [shape = 'u8[8192]{0}', space=vmem, size = 0x2000, scoped, tag = 'output window, operand 0, single buffered']
    #allocation14 [shape = 'u8[8192]{0}', space=vmem, size = 0x2000, scoped, tag = 'output window, operand 1, single buffered']
    #allocation15 [shape = 's32[1]{0}', space=sflag, size = 0x4, scoped, tag = 'scoped memory for tpu_custom_call.1']
    %16 = vsyncpa [#allocation5], 0
    %s17 = scalar_lea.sflag [#allocation5], 1
    %18 = vsyncpa %s17, 0
    %19 = vsyncpa [#allocation8], 0
    %20 = vsyncpa [#allocation11], 0
    %21 = vsyncpa [#allocation6], 0
    %22 = vsyncpa [#allocation15], 0
    loop: start=0, step=1, limit=4
    $region2: #{tpu_custom_call.1} parent=1 // loop_pre_header
      _
    $region3: #{tpu_custom_call.1} parent=1 // loop_header
      %s24 = sphi 0, %s28
      %p25 = scmp.ge.s32.totalorder %s24, 4
      %s31 = sphi 0, %s43
      %s32 = sphi 0, %s39
      %s33 = sphi 0, %s31
      %s34 = sphi 0, %s32
      %s35 = sphi 0, %s33
      %s36 = sphi 0, %s34
      %s48 = sphi 0, %s50
      %s51 = sphi 0, %s48
      %s52 = sphi 0, %s51
      %s68 = sphi 0, %s52
      %s72 = sphi 0, %s72
      %s74 = sphi 0, %s72
      %s75 = sphi 0, %s74
      %s89 = sphi 0, %s75
      %s93 = sphi 0, %s93
      %s95 = sphi 0, %s93
      %s96 = sphi 0, %s95
      %s110 = sphi 0, %s96
      %s114 = sphi 0, %s114
      %s116 = sphi 0, %s114
      %s117 = sphi 0, %s116
      %s131 = sphi 0, %s117
      %s135 = sphi 0, %s135
      %s137 = sphi 0, %s135
      %s138 = sphi 0, %s137
      %s152 = sphi 0, %s138
      %s156 = sphi 0, %s156
      %s158 = sphi 0, %s156
      %s159 = sphi 0, %s158
      %s173 = sphi 0, %s159
      %s177 = sphi 0, %s177
      %s179 = sphi 0, %s177
      %s180 = sphi 0, %s179
      %s194 = sphi 0, %s180
      %s198 = sphi 0, %s198
      %s200 = sphi 0, %s198
      %s201 = sphi 0, %s200
      %s215 = sphi 0, %s201
      %s219 = sphi 0, %s219
      %s221 = sphi 0, %s219
      %s222 = sphi 0, %s221
      %s236 = sphi 0, %s222
      %s242 = sphi 0, %s244
      %s245 = sphi 0, %s242
      %s246 = sphi 0, %s245
      %s262 = sphi 0, %s246
      %s268 = sphi 0, %s270
      %s271 = sphi 0, %s268
      %s272 = sphi 0, %s271
      %s288 = sphi 0, %s272
    $region4: #{tpu_custom_call.1} parent=1 // loop_header_branch
      %27 = sbr.rel (%p25) target = $region8
    $region5: #{tpu_custom_call.1} parent=1 // loop_body
      %s29 = ssub.s32 %s24, 1
      %s30 = ssub.s32 %s24, 2
      %s37 = sadd.s32 1, %s32
      %p38 = scmp.ge.s32.totalorder %s37, 2
      %s39 = scalar_select %p38, 0, %s37
      %s40 = sadd.s32 1, %s31
      %s41 = scalar_select %p38, %s40, %s31
      %p42 = scmp.ge.s32.totalorder %s41, 1
      %s43 = scalar_select %p42, 0, %s41
      %s44 = ssub.s32 %s32, %s39
      %s45 = ssub.s32 %s31, %s43
      %s46 = sor.u32 %s44, %s45
      %p47 = scmp.eq.s32.totalorder %s46, 0
      %s49 = sadd.s32 %s48, 1
      %s50 = scalar_select %p47, %s48, %s49
      %p53 = pneg %p47
      %p54 = scmp.eq.s32.totalorder %s24, 1
      %p55 = por %p53, %p54
      %p56 = scmp.ne.s32.totalorder %s48, %s51
      %p57 = scmp.eq.s32.totalorder %s24, 0
      %p58 = por %p56, %p57
      %p59 = scmp.ne.s32.totalorder %s48, %s51
      %p60 = scmp.eq.s32.totalorder %s29, 1
      %p61 = por %p59, %p60
      %p62 = scmp.ne.s32.totalorder %s51, %s52
      %p63 = scmp.eq.s32.totalorder %s29, 0
      %p64 = por %p62, %p63
      %p65 = scmp.ne.s32.totalorder %s51, %s52
      %p66 = scmp.eq.s32.totalorder %s30, 1
      %p67 = por %p65, %p66
      %p69 = scmp.ne.s32.totalorder %s52, %s68
      %p70 = scmp.eq.s32.totalorder %s30, 0
      %p71 = por %p69, %p70
      %s73 = sadd.s32 %s72, 1
      %p76 = scmp.eq.s32.totalorder %s24, 1
      %p77 = scmp.ne.s32.totalorder %s72, %s74
      %p78 = scmp.eq.s32.totalorder %s24, 0
      %p79 = por %p77, %p78
      %p80 = scmp.ne.s32.totalorder %s72, %s74
      %p81 = scmp.eq.s32.totalorder %s29, 1
      %p82 = por %p80, %p81
      %p83 = scmp.ne.s32.totalorder %s74, %s75
      %p84 = scmp.eq.s32.totalorder %s29, 0
      %p85 = por %p83, %p84
      %p86 = scmp.ne.s32.totalorder %s74, %s75
      %p87 = scmp.eq.s32.totalorder %s30, 1
      %p88 = por %p86, %p87
      %p90 = scmp.ne.s32.totalorder %s75, %s89
      %p91 = scmp.eq.s32.totalorder %s30, 0
      %p92 = por %p90, %p91
      %s94 = sadd.s32 %s93, 1
      %p97 = scmp.eq.s32.totalorder %s24, 1
      %p98 = scmp.ne.s32.totalorder %s93, %s95
      %p99 = scmp.eq.s32.totalorder %s24, 0
      %p100 = por %p98, %p99
      %p101 = scmp.ne.s32.totalorder %s93, %s95
      %p102 = scmp.eq.s32.totalorder %s29, 1
      %p103 = por %p101, %p102
      %p104 = scmp.ne.s32.totalorder %s95, %s96
      %p105 = scmp.eq.s32.totalorder %s29, 0
      %p106 = por %p104, %p105
      %p107 = scmp.ne.s32.totalorder %s95, %s96
      %p108 = scmp.eq.s32.totalorder %s30, 1
      %p109 = por %p107, %p108
      %p111 = scmp.ne.s32.totalorder %s96, %s110
      %p112 = scmp.eq.s32.totalorder %s30, 0
      %p113 = por %p111, %p112
      %s115 = sadd.s32 %s114, 1
      %p118 = scmp.eq.s32.totalorder %s24, 1
      %p119 = scmp.ne.s32.totalorder %s114, %s116
      %p120 = scmp.eq.s32.totalorder %s24, 0
      %p121 = por %p119, %p120
      %p122 = scmp.ne.s32.totalorder %s114, %s116
      %p123 = scmp.eq.s32.totalorder %s29, 1
      %p124 = por %p122, %p123
      %p125 = scmp.ne.s32.totalorder %s116, %s117
      %p126 = scmp.eq.s32.totalorder %s29, 0
      %p127 = por %p125, %p126
      %p128 = scmp.ne.s32.totalorder %s116, %s117
      %p129 = scmp.eq.s32.totalorder %s30, 1
      %p130 = por %p128, %p129
      %p132 = scmp.ne.s32.totalorder %s117, %s131
      %p133 = scmp.eq.s32.totalorder %s30, 0
      %p134 = por %p132, %p133
      %s136 = sadd.s32 %s135, 1
      %p139 = scmp.eq.s32.totalorder %s24, 1
      %p140 = scmp.ne.s32.totalorder %s135, %s137
      %p141 = scmp.eq.s32.totalorder %s24, 0
      %p142 = por %p140, %p141
      %p143 = scmp.ne.s32.totalorder %s135, %s137
      %p144 = scmp.eq.s32.totalorder %s29, 1
      %p145 = por %p143, %p144
      %p146 = scmp.ne.s32.totalorder %s137, %s138
      %p147 = scmp.eq.s32.totalorder %s29, 0
      %p148 = por %p146, %p147
      %p149 = scmp.ne.s32.totalorder %s137, %s138
      %p150 = scmp.eq.s32.totalorder %s30, 1
      %p151 = por %p149, %p150
      %p153 = scmp.ne.s32.totalorder %s138, %s152
      %p154 = scmp.eq.s32.totalorder %s30, 0
      %p155 = por %p153, %p154
      %s157 = sadd.s32 %s156, 1
      %p160 = scmp.eq.s32.totalorder %s24, 1
      %p161 = scmp.ne.s32.totalorder %s156, %s158
      %p162 = scmp.eq.s32.totalorder %s24, 0
      %p163 = por %p161, %p162
      %p164 = scmp.ne.s32.totalorder %s156, %s158
      %p165 = scmp.eq.s32.totalorder %s29, 1
      %p166 = por %p164, %p165
      %p167 = scmp.ne.s32.totalorder %s158, %s159
      %p168 = scmp.eq.s32.totalorder %s29, 0
      %p169 = por %p167, %p168
      %p170 = scmp.ne.s32.totalorder %s158, %s159
      %p171 = scmp.eq.s32.totalorder %s30, 1
      %p172 = por %p170, %p171
      %p174 = scmp.ne.s32.totalorder %s159, %s173
      %p175 = scmp.eq.s32.totalorder %s30, 0
      %p176 = por %p174, %p175
      %s178 = sadd.s32 %s177, 1
      %p181 = scmp.eq.s32.totalorder %s24, 1
      %p182 = scmp.ne.s32.totalorder %s177, %s179
      %p183 = scmp.eq.s32.totalorder %s24, 0
      %p184 = por %p182, %p183
      %p185 = scmp.ne.s32.totalorder %s177, %s179
      %p186 = scmp.eq.s32.totalorder %s29, 1
      %p187 = por %p185, %p186
      %p188 = scmp.ne.s32.totalorder %s179, %s180
      %p189 = scmp.eq.s32.totalorder %s29, 0
      %p190 = por %p188, %p189
      %p191 = scmp.ne.s32.totalorder %s179, %s180
      %p192 = scmp.eq.s32.totalorder %s30, 1
      %p193 = por %p191, %p192
      %p195 = scmp.ne.s32.totalorder %s180, %s194
      %p196 = scmp.eq.s32.totalorder %s30, 0
      %p197 = por %p195, %p196
      %s199 = sadd.s32 %s198, 1
      %p202 = scmp.eq.s32.totalorder %s24, 1
      %p203 = scmp.ne.s32.totalorder %s198, %s200
      %p204 = scmp.eq.s32.totalorder %s24, 0
      %p205 = por %p203, %p204
      %p206 = scmp.ne.s32.totalorder %s198, %s200
      %p207 = scmp.eq.s32.totalorder %s29, 1
      %p208 = por %p206, %p207
      %p209 = scmp.ne.s32.totalorder %s200, %s201
      %p210 = scmp.eq.s32.totalorder %s29, 0
      %p211 = por %p209, %p210
      %p212 = scmp.ne.s32.totalorder %s200, %s201
      %p213 = scmp.eq.s32.totalorder %s30, 1
      %p214 = por %p212, %p213
      %p216 = scmp.ne.s32.totalorder %s201, %s215
      %p217 = scmp.eq.s32.totalorder %s30, 0
      %p218 = por %p216, %p217
      %s220 = sadd.s32 %s219, 1
      %p223 = scmp.eq.s32.totalorder %s24, 1
      %p224 = scmp.ne.s32.totalorder %s219, %s221
      %p225 = scmp.eq.s32.totalorder %s24, 0
      %p226 = por %p224, %p225
      %p227 = scmp.ne.s32.totalorder %s219, %s221
      %p228 = scmp.eq.s32.totalorder %s29, 1
      %p229 = por %p227, %p228
      %p230 = scmp.ne.s32.totalorder %s221, %s222
      %p231 = scmp.eq.s32.totalorder %s29, 0
      %p232 = por %p230, %p231
      %p233 = scmp.ne.s32.totalorder %s221, %s222
      %p234 = scmp.eq.s32.totalorder %s30, 1
      %p235 = por %p233, %p234
      %p237 = scmp.ne.s32.totalorder %s222, %s236
      %p238 = scmp.eq.s32.totalorder %s30, 0
      %p239 = por %p237, %p238
      %s240 = ssub.s32 %s31, %s43
      %p241 = scmp.eq.s32.totalorder %s240, 0
      %s243 = sadd.s32 %s242, 1
      %s244 = scalar_select %p241, %s242, %s243
      %p247 = pneg %p241
      %p248 = scmp.eq.s32.totalorder %s24, 1
      %p249 = por %p247, %p248
      %p250 = scmp.ne.s32.totalorder %s242, %s245
      %p251 = scmp.eq.s32.totalorder %s24, 0
      %p252 = por %p250, %p251
      %p253 = scmp.ne.s32.totalorder %s242, %s245
      %p254 = scmp.eq.s32.totalorder %s29, 1
      %p255 = por %p253, %p254
      %p256 = scmp.ne.s32.totalorder %s245, %s246
      %p257 = scmp.eq.s32.totalorder %s29, 0
      %p258 = por %p256, %p257
      %p259 = scmp.ne.s32.totalorder %s245, %s246
      %p260 = scmp.eq.s32.totalorder %s30, 1
      %p261 = por %p259, %p260
      %p263 = scmp.ne.s32.totalorder %s246, %s262
      %p264 = scmp.eq.s32.totalorder %s30, 0
      %p265 = por %p263, %p264
      %s266 = ssub.s32 %s31, %s43
      %p267 = scmp.eq.s32.totalorder %s266, 0
      %s269 = sadd.s32 %s268, 1
      %s270 = scalar_select %p267, %s268, %s269
      %p273 = pneg %p267
      %p274 = scmp.eq.s32.totalorder %s24, 1
      %p275 = por %p273, %p274
      %p276 = scmp.ne.s32.totalorder %s268, %s271
      %p277 = scmp.eq.s32.totalorder %s24, 0
      %p278 = por %p276, %p277
      %p279 = scmp.ne.s32.totalorder %s268, %s271
      %p280 = scmp.eq.s32.totalorder %s29, 1
      %p281 = por %p279, %p280
      %p282 = scmp.ne.s32.totalorder %s271, %s272
      %p283 = scmp.eq.s32.totalorder %s29, 0
      %p284 = por %p282, %p283
      %p285 = scmp.ne.s32.totalorder %s271, %s272
      %p286 = scmp.eq.s32.totalorder %s30, 1
      %p287 = por %p285, %p286
      %p289 = scmp.ne.s32.totalorder %s272, %s288
      %p290 = scmp.eq.s32.totalorder %s30, 0
      %p291 = por %p289, %p290
      %p292 = scmp.le.s32.totalorder 1, %s24
      %p293 = scmp.lt.s32.totalorder %s24, 3
      %p294 = pnand %p292, %p293
      %p295 = pneg %p294
      // Predicated region
      $region9: #{tpu_custom_call.1} parent=5 // pred_check
        _
      $region10: #{tpu_custom_call.1} parent=5 // pred_check_branch
        %297 = sbr.rel (%p294) target = $region12
      $region11: #{tpu_custom_call.1} parent=5 // pred_region
        %s298 = ssub.s32 %s24, 1
        // Predicated region
        $region13: #{tpu_custom_call.1} parent=11 // pred_check
          %p299 = pneg %p85
        $region14: #{tpu_custom_call.1} parent=11 // pred_check_branch
          %301 = sbr.rel (%p299) target = $region16
        $region15: #{tpu_custom_call.1} parent=11 // pred_region
          %s303 = ssub.s32 1024, 1024
          %304 = vsyncadd [#allocation8], %s303
          %s305 = sshll.u32 [#allocation7], 4
          %s306 = int_to_ptr.vmem [resolvable:$true] %s305
          %311 = dma.hbm_to_vmem [thread:$0]  %s1, 1024, %s306, [#allocation8], 64, 64, 4
        $region16: #{tpu_custom_call.1} parent=11 // pred_fallthru
          _
        // Predicated region
        $region17: #{tpu_custom_call.1} parent=11 // pred_check
          %p312 = pneg %p106
        $region18: #{tpu_custom_call.1} parent=11 // pred_check_branch
          %314 = sbr.rel (%p312) target = $region20
        $region19: #{tpu_custom_call.1} parent=11 // pred_region
          _
        $region20: #{tpu_custom_call.1} parent=11 // pred_fallthru
          _
        // Predicated region
        $region21: #{tpu_custom_call.1} parent=11 // pred_check
          %p315 = pneg %p127
        $region22: #{tpu_custom_call.1} parent=11 // pred_check_branch
          %317 = sbr.rel (%p315) target = $region24
        $region23: #{tpu_custom_call.1} parent=11 // pred_region
          %s319 = ssub.s32 3072, 3072
          %320 = vsyncadd [#allocation8], %s319
          %s321 = sshll.u32 [#allocation9], 4
          %s322 = int_to_ptr.vmem [resolvable:$true] %s321
          %327 = dma.hbm_to_vmem [thread:$0]  %s3, 3072, %s322, [#allocation8], 192, 192, 12
        $region24: #{tpu_custom_call.1} parent=11 // pred_fallthru
          _
        // Predicated region
        $region25: #{tpu_custom_call.1} parent=11 // pred_check
          %p328 = pneg %p148
        $region26: #{tpu_custom_call.1} parent=11 // pred_check_branch
          %330 = sbr.rel (%p328) target = $region28
        $region27: #{tpu_custom_call.1} parent=11 // pred_region
          %s332 = ssub.s32 3072, 3072
          %333 = vsyncadd [#allocation11], %s332
          %s334 = sshll.u32 [#allocation10], 4
          %s335 = int_to_ptr.vmem [resolvable:$true] %s334
          %340 = dma.hbm_to_vmem [thread:$0]  %s4, 3072, %s335, [#allocation11], 192, 192, 12
        $region28: #{tpu_custom_call.1} parent=11 // pred_fallthru
          _
        // Predicated region
        $region29: #{tpu_custom_call.1} parent=11 // pred_check
          %p341 = pneg %p169
        $region30: #{tpu_custom_call.1} parent=11 // pred_check_branch
          %343 = sbr.rel (%p341) target = $region32
        $region31: #{tpu_custom_call.1} parent=11 // pred_region
          _
        $region32: #{tpu_custom_call.1} parent=11 // pred_fallthru
          _
        // Predicated region
        $region33: #{tpu_custom_call.1} parent=11 // pred_check
          %p344 = pneg %p190
        $region34: #{tpu_custom_call.1} parent=11 // pred_check_branch
          %346 = sbr.rel (%p344) target = $region36
        $region35: #{tpu_custom_call.1} parent=11 // pred_region
          _
        $region36: #{tpu_custom_call.1} parent=11 // pred_fallthru
          _
        // Predicated region
        $region37: #{tpu_custom_call.1} parent=11 // pred_check
          %p347 = pneg %p211
        $region38: #{tpu_custom_call.1} parent=11 // pred_check_branch
          %349 = sbr.rel (%p347) target = $region40
        $region39: #{tpu_custom_call.1} parent=11 // pred_region
          %s351 = ssub.s32 1024, 1024
          %352 = vsyncadd [#allocation11], %s351
          %s353 = sshll.u32 [#allocation12], 4
          %s354 = int_to_ptr.vmem [resolvable:$true] %s353
          %359 = dma.hbm_to_vmem [thread:$0]  %s7, 1024, %s354, [#allocation11], 64, 64, 4
        $region40: #{tpu_custom_call.1} parent=11 // pred_fallthru
          _
        // Predicated region
        $region41: #{tpu_custom_call.1} parent=11 // pred_check
          %p360 = pneg %p232
        $region42: #{tpu_custom_call.1} parent=11 // pred_check_branch
          %362 = sbr.rel (%p360) target = $region44
        $region43: #{tpu_custom_call.1} parent=11 // pred_region
          _
        $region44: #{tpu_custom_call.1} parent=11 // pred_fallthru
          _
      $region12: #{tpu_custom_call.1} parent=5 // pred_fallthru
        _
      %p363 = scmp.lt.s32.totalorder %s24, 2
      // Predicated region
      $region45: #{tpu_custom_call.1} parent=5 // pred_check
        %p364 = pneg %p363
      $region46: #{tpu_custom_call.1} parent=5 // pred_check_branch
        %366 = sbr.rel (%p364) target = $region48
      $region47: #{tpu_custom_call.1} parent=5 // pred_region
        // Predicated region
        $region49: #{tpu_custom_call.1} parent=47 // pred_check
          %p367 = pneg %p58
        $region50: #{tpu_custom_call.1} parent=47 // pred_check_branch
          %369 = sbr.rel (%p367) target = $region52
        $region51: #{tpu_custom_call.1} parent=47 // pred_region
          %s370 = sand.u32 %s48, 1
          %s371 = scalar_lea.sflag [#allocation5], %s370
          %s372 = sand.u32 %s48, 1
          %s373 = smul.addr %s372, 32
          %s374 = scalar_lea.vmem [#allocation4], %s373
          %s375 = smul.u32 4, %s32
          %s376 = smul.u32 2, %s31
          %s378 = ssub.s32 512, 512
          %379 = vsyncadd %s371, %s378
          %s380 = smul.addr %s375, 2
          %s381 = sadd.s32 %s376, %s380
          %s382 = smul.addr %s381, 64
          %s383 = scalar_lea.hbm %s0, %s382
          %s384 = sshll.u32 %s374, 4
          %s385 = int_to_ptr.vmem [resolvable:$true] %s384
          %390 = dma.hbm_to_vmem [thread:$0]  %s383, 512, %s385, %s371, 64, 64, 4
        $region52: #{tpu_custom_call.1} parent=47 // pred_fallthru
          _
      $region48: #{tpu_custom_call.1} parent=5 // pred_fallthru
        _
      %p391 = scmp.le.s32.totalorder 1, %s24
      %p392 = scmp.lt.s32.totalorder %s24, 3
      %p393 = pnand %p391, %p392
      %p394 = pneg %p393
      // Predicated region
      $region53: #{tpu_custom_call.1} parent=5 // pred_check
        _
      $region54: #{tpu_custom_call.1} parent=5 // pred_check_branch
        %396 = sbr.rel (%p393) target = $region56
      $region55: #{tpu_custom_call.1} parent=5 // pred_region
        %s397 = ssub.s32 %s24, 1
        %s398 = sand.u32 %s51, 1
        %s399 = scalar_lea.sflag [#allocation5], %s398
        %s400 = sand.u32 %s51, 1
        %s401 = smul.addr %s400, 32
        %s402 = scalar_lea.vmem [#allocation4], %s401
        // Predicated region
        $region57: #{tpu_custom_call.1} parent=55 // pred_check
          %p403 = pneg %p64
        $region58: #{tpu_custom_call.1} parent=55 // pred_check_branch
          %405 = sbr.rel (%p403) target = $region60
        $region59: #{tpu_custom_call.1} parent=55 // pred_region
          %406 = dma.done %s399, 512
        $region60: #{tpu_custom_call.1} parent=55 // pred_fallthru
          _
        // Predicated region
        $region61: #{tpu_custom_call.1} parent=55 // pred_check
          %p407 = pneg %p85
        $region62: #{tpu_custom_call.1} parent=55 // pred_check_branch
          %409 = sbr.rel (%p407) target = $region64
        $region63: #{tpu_custom_call.1} parent=55 // pred_region
          %410 = dma.done [#allocation8], 1024
        $region64: #{tpu_custom_call.1} parent=55 // pred_fallthru
          _
        // Predicated region
        $region65: #{tpu_custom_call.1} parent=55 // pred_check
          %p411 = pneg %p127
        $region66: #{tpu_custom_call.1} parent=55 // pred_check_branch
          %413 = sbr.rel (%p411) target = $region68
        $region67: #{tpu_custom_call.1} parent=55 // pred_region
          %414 = dma.done [#allocation8], 3072
        $region68: #{tpu_custom_call.1} parent=55 // pred_fallthru
          _
        // Predicated region
        $region69: #{tpu_custom_call.1} parent=55 // pred_check
          %p415 = pneg %p148
        $region70: #{tpu_custom_call.1} parent=55 // pred_check_branch
          %417 = sbr.rel (%p415) target = $region72
        $region71: #{tpu_custom_call.1} parent=55 // pred_region
          %418 = dma.done [#allocation11], 3072
        $region72: #{tpu_custom_call.1} parent=55 // pred_fallthru
          _
        // Predicated region
        $region73: #{tpu_custom_call.1} parent=55 // pred_check
          %p419 = pneg %p211
        $region74: #{tpu_custom_call.1} parent=55 // pred_check_branch
          %421 = sbr.rel (%p419) target = $region76
        $region75: #{tpu_custom_call.1} parent=55 // pred_region
          %422 = dma.done [#allocation11], 1024
        $region76: #{tpu_custom_call.1} parent=55 // pred_fallthru
          _
        %s423 = sand.u32 %s51, 1
        %s424 = scalar_lea.sflag [#allocation5], %s423
        %s425 = sand.u32 %s51, 1
        %s426 = smul.addr %s425, 32
        %s427 = scalar_lea.vmem [#allocation4], %s426
        %p428 = pneg %p64
        %p429 = pneg %p61
        %p430 = pneg %p85
        %p431 = pneg %p82
        %p432 = pneg %p106
        %p433 = pneg %p103
        %p434 = pneg %p127
        %p435 = pneg %p124
        %p436 = pneg %p148
        %p437 = pneg %p145
        %p438 = pneg %p169
        %p439 = pneg %p166
        %p440 = pneg %p190
        %p441 = pneg %p187
        %p442 = pneg %p211
        %p443 = pneg %p208
        %p444 = pneg %p232
        %p445 = pneg %p229
        %p446 = pneg %p258
        %p447 = pneg %p255
        %p448 = pneg %p284
        %p449 = pneg %p281
        %s450 = smul.u32 4, %s34
        %s451 = smul.u32 2, %s33
        %s452 = smul.u32 2, %s33
        %s453 = smul.u32 2, %s33
        %p455 = scmp.lt.s32.totalorder %s34, 0
        %s456 = ssub.s32 0, %s34
        %s457 = scalar_select %p455, %s456, %s34
        %s458 = sand.u32 %s457, 1
        %s459 = ssub.s32 0, %s458
        %s460 = scalar_select %p455, %s459, %s458
        %p461 = scmp.ne.s32.totalorder %s460, 0
        %p462 = scmp.lt.s32.totalorder %s460, 0
        %p463 = pnand %p462, %p461
        %p464 = pneg %p463
        %s465 = sadd.s32 %s460, 2
        %s466 = scalar_select %p464, %s465, %s460
        %p467 = scmp.eq.s32.totalorder %s34, 0
        // Predicated region
        $region77: #{tpu_custom_call.1} parent=55 // pred_check
          %p468 = pneg %p467
        $region78: #{tpu_custom_call.1} parent=55 // pred_check_branch
          %470 = sbr.rel (%p468) target = $region80
        $region79: #{tpu_custom_call.1} parent=55 // pred_region
          %471 = vst [vmem:[#allocation2] sm:$0xff] 0.0
          %472 = vst [vmem:[#allocation2 + $0x8] sm:$0xff] 0.0
        $region80: #{tpu_custom_call.1} parent=55 // pred_fallthru
          _
        %p473 = scmp.gt.s32.totalorder %s34, 0
        // Predicated region
        $region81: #{tpu_custom_call.1} parent=55 // pred_check
          %p474 = pneg %p473
        $region82: #{tpu_custom_call.1} parent=55 // pred_check_branch
          %476 = sbr.rel (%p474) target = $region84
        $region83: #{tpu_custom_call.1} parent=55 // pred_region
          %s477 = ssub.s32 1, %s466
          %v478 = vld [vmem:[#allocation10] sm:$0xff]
          %v479 = vld [vmem:[#allocation10 + $0x8] sm:$0xf]
          %v480 = vld [vmem:[#allocation10 + $0xc] sm:$0xff]
          %v481 = vld [vmem:[#allocation10 + $0x14] sm:$0xf]
          %v482 = vld [vmem:[#allocation10 + $0x18] sm:$0xff]
          %v483 = vld [vmem:[#allocation10 + $0x20] sm:$0xf]
          %v484 = vld [vmem:[#allocation10 + $0x24] sm:$0xff]
          %v485 = vld [vmem:[#allocation10 + $0x2c] sm:$0xf]
          %v486 = vld [vmem:[#allocation10 + $0x30] sm:$0xff]
          %v487 = vld [vmem:[#allocation10 + $0x38] sm:$0xf]
          %v488 = vld [vmem:[#allocation10 + $0x3c] sm:$0xff]
          %v489 = vld [vmem:[#allocation10 + $0x44] sm:$0xf]
          %v490 = vld [vmem:[#allocation10 + $0x48] sm:$0xff]
          %v491 = vld [vmem:[#allocation10 + $0x50] sm:$0xf]
          %v492 = vld [vmem:[#allocation10 + $0x54] sm:$0xff]
          %v493 = vld [vmem:[#allocation10 + $0x5c] sm:$0xf]
          %v494 = vld [vmem:[#allocation10 + $0x60] sm:$0xff]
          %v495 = vld [vmem:[#allocation10 + $0x68] sm:$0xf]
          %v496 = vld [vmem:[#allocation10 + $0x6c] sm:$0xff]
          %v497 = vld [vmem:[#allocation10 + $0x74] sm:$0xf]
          %v498 = vld [vmem:[#allocation10 + $0x78] sm:$0xff]
          %v499 = vld [vmem:[#allocation10 + $0x80] sm:$0xf]
          %v500 = vld [vmem:[#allocation10 + $0x84] sm:$0xff]
          %v501 = vld [vmem:[#allocation10 + $0x8c] sm:$0xf]
          %v502 = vld [vmem:[#allocation10 + $0x90] sm:$0xff]
          %v503 = vld [vmem:[#allocation10 + $0x98] sm:$0xf]
          %v504 = vld [vmem:[#allocation10 + $0x9c] sm:$0xff]
          %v505 = vld [vmem:[#allocation10 + $0xa4] sm:$0xf]
          %v506 = vld [vmem:[#allocation10 + $0xa8] sm:$0xff]
          %v507 = vld [vmem:[#allocation10 + $0xb0] sm:$0xf]
          %v508 = vld [vmem:[#allocation10 + $0xb4] sm:$0xff]
          %v509 = vld [vmem:[#allocation10 + $0xbc] sm:$0xf]
          %v510 = vld [vmem:[%s6] sm:$0x1]
          %s511 = smul.u32 %s477, 4
          %v512 = vld [vmem:[#allocation2] sm:$0xff]
          %v513 = vld [vmem:[#allocation2 + $0x8] sm:$0xff]
          %s514 = smul.u32 %s511, 6
          %s515 = smul.addr %s514, 8
          %s516 = scalar_lea.vmem [#allocation3], %s515
          %v517 = vld [vmem:[%s516] sm:$0xff]
          %v518 = vld [vmem:[%s516 + $0x8] sm:$0xff]
          %v519 = vld [vmem:[%s516 + $0x10] sm:$0xff]
          %v520 = vld [vmem:[%s516 + $0x18] sm:$0xff]
          %v521 = vld [vmem:[%s516 + $0x20] sm:$0xff]
          %v522 = vld [vmem:[%s516 + $0x28] sm:$0xff]
          %v523 = vpack.c.bf16 %v513, %v512
          %v556 = vunpack.c.l.b16 %v478
          %v557 = vunpack.c.h.b16 %v478
          %v558 = vunpack.c.l.b16 %v479
          %v559 = vunpack.c.l.b16 %v480
          %v560 = vunpack.c.h.b16 %v480
          %v561 = vunpack.c.l.b16 %v481
          %v562 = vunpack.c.l.b16 %v482
          %v563 = vunpack.c.h.b16 %v482
          %v564 = vunpack.c.l.b16 %v483
          %v565 = vunpack.c.l.b16 %v484
          %v566 = vunpack.c.h.b16 %v484
          %v567 = vunpack.c.l.b16 %v485
          %v568 = vunpack.c.l.b16 %v486
          %v569 = vunpack.c.h.b16 %v486
          %v570 = vunpack.c.l.b16 %v487
          %v571 = vunpack.c.l.b16 %v488
          %v572 = vunpack.c.h.b16 %v488
          %v573 = vunpack.c.l.b16 %v489
          %v574 = vunpack.c.l.b16 %v490
          %v575 = vunpack.c.h.b16 %v490
          %v576 = vunpack.c.l.b16 %v491
          %v577 = vunpack.c.l.b16 %v492
          %v578 = vunpack.c.h.b16 %v492
          %v579 = vunpack.c.l.b16 %v493
          %v580 = vunpack.c.l.b16 %v494
          %v581 = vunpack.c.h.b16 %v494
          %v582 = vunpack.c.l.b16 %v495
          %v583 = vunpack.c.l.b16 %v496
          %v584 = vunpack.c.h.b16 %v496
          %v585 = vunpack.c.l.b16 %v497
          %v586 = vunpack.c.l.b16 %v498
          %v587 = vunpack.c.h.b16 %v498
          %v588 = vunpack.c.l.b16 %v499
          %v589 = vunpack.c.l.b16 %v500
          %v590 = vunpack.c.h.b16 %v500
          %v591 = vunpack.c.l.b16 %v501
          %v592 = vunpack.c.l.b16 %v502
          %v593 = vunpack.c.h.b16 %v502
          %v594 = vunpack.c.l.b16 %v503
          %v595 = vunpack.c.l.b16 %v504
          %v596 = vunpack.c.h.b16 %v504
          %v597 = vunpack.c.l.b16 %v505
          %v598 = vunpack.c.l.b16 %v506
          %v599 = vunpack.c.h.b16 %v506
          %v600 = vunpack.c.l.b16 %v507
          %v601 = vunpack.c.l.b16 %v508
          %v602 = vunpack.c.h.b16 %v508
          %v603 = vunpack.c.l.b16 %v509
          %v604 = vpack.c.b16 %v559, %v556
          %v605 = vpack.c.b16 %v560, %v557
          %v606 = vpack.c.b16 %v561, %v558
          %v607 = vpack.c.b16 %v565, %v562
          %v608 = vpack.c.b16 %v566, %v563
          %v609 = vpack.c.b16 %v567, %v564
          %v610 = vpack.c.b16 %v571, %v568
          %v611 = vpack.c.b16 %v572, %v569
          %v612 = vpack.c.b16 %v573, %v570
          %v613 = vpack.c.b16 %v577, %v574
          %v614 = vpack.c.b16 %v578, %v575
          %v615 = vpack.c.b16 %v579, %v576
          %v616 = vpack.c.b16 %v583, %v580
          %v617 = vpack.c.b16 %v584, %v581
          %v618 = vpack.c.b16 %v585, %v582
          %v619 = vpack.c.b16 %v589, %v586
          %v620 = vpack.c.b16 %v590, %v587
          %v621 = vpack.c.b16 %v591, %v588
          %v622 = vpack.c.b16 %v595, %v592
          %v623 = vpack.c.b16 %v596, %v593
          %v624 = vpack.c.b16 %v597, %v594
          %v625 = vpack.c.b16 %v601, %v598
          %v626 = vpack.c.b16 %v602, %v599
          %v627 = vpack.c.b16 %v603, %v600
          %652 = vmatprep.subr.bf16.mxu0 %v626
          %653 = vmatpush1.bf16.msra.mxu0 %v625
          %654 = vmatprep.subr.bf16.mxu0 %v623
          %655 = vmatpush1.bf16.msra.mxu0 %v622
          %656 = vmatprep.subr.bf16.mxu0 %v620
          %657 = vmatpush1.bf16.msra.mxu0 %v619
          %658 = vmatprep.subr.bf16.mxu0 %v617
          %659 = vmatpush1.bf16.msra.mxu0 %v616
          %660 = vmatprep.subr.bf16.mxu0 %v614
          %661 = vmatpush1.bf16.msra.mxu0 %v613
          %662 = vmatprep.subr.bf16.mxu0 %v611
          %663 = vmatpush1.bf16.msra.mxu0 %v610
          %664 = vmatprep.subr.bf16.mxu0 %v608
          %665 = vmatpush1.bf16.msra.mxu0 %v607
          %666 = vmatprep.subr.bf16.mxu0 %v605
          %667 = vmatpush1.bf16.msra.mxu0 %v604
          %668 = vmatprep.subr.bf16.mxu0 0
          %669 = vmatpush2.bf16.msra.mxu0 0
          %670 = vmatprep.subr.bf16.mxu0 0
          %671 = vmatpush2.bf16.msra.mxu0 0
          %672 = vmatprep.subr.bf16.mxu0 0
          %673 = vmatpush2.bf16.msra.mxu0 0
          %674 = vmatprep.subr.bf16.mxu0 0
          %675 = vmatpush2.bf16.msra.mxu0 0
          %676 = vmatprep.subr.bf16.mxu0 0
          %677 = vmatpush2.bf16.msra.mxu0 0
          %678 = vmatprep.subr.bf16.mxu0 0
          %679 = vmatpush2.bf16.msra.mxu0 0
          %680 = vmatprep.subr.bf16.mxu0 0
          %681 = vmatpush2.bf16.msra.mxu0 0
          %682 = vmatprep.subr.bf16.mxu0 0
          %683 = vmatpush2.bf16.msra.mxu0 0
          %684 = vmatprep.mubr.bf16.mxu0 0
          %685 = vmatmul.mubr.bf16.gmra.mxu0 %v523
          %v686 = vpop.f32.mrf.mxu0
          %v687 = vadd.f32 0.0, %v686
          %v688 = vpop.f32.mrf.mxu0
          %v689 = vadd.f32 0.0, %v688
          %v690 = vpop.f32.mrf.mxu0
          %v691 = vadd.f32 0.0, %v690
          %v692 = vpop.f32.mrf.mxu0
          %v693 = vadd.f32 0.0, %v692
          %694 = vdwg.mxu0
          %695 = vmatprep.subr.bf16.mxu0 0
          %696 = vmatpush1.bf16.msra.mxu0 %v627
          %697 = vmatprep.subr.bf16.mxu0 0
          %698 = vmatpush1.bf16.msra.mxu0 %v624
          %699 = vmatprep.subr.bf16.mxu0 0
          %700 = vmatpush1.bf16.msra.mxu0 %v621
          %701 = vmatprep.subr.bf16.mxu0 0
          %702 = vmatpush1.bf16.msra.mxu0 %v618
          %703 = vmatprep.subr.bf16.mxu0 0
          %704 = vmatpush1.bf16.msra.mxu0 %v615
          %705 = vmatprep.subr.bf16.mxu0 0
          %706 = vmatpush1.bf16.msra.mxu0 %v612
          %707 = vmatprep.subr.bf16.mxu0 0
          %708 = vmatpush1.bf16.msra.mxu0 %v609
          %709 = vmatprep.subr.bf16.mxu0 0
          %710 = vmatpush1.bf16.msra.mxu0 %v606
          %711 = vmatprep.subr.bf16.mxu0 0
          %712 = vmatpush2.bf16.msra.mxu0 0
          %713 = vmatprep.subr.bf16.mxu0 0
          %714 = vmatpush2.bf16.msra.mxu0 0
          %715 = vmatprep.subr.bf16.mxu0 0
          %716 = vmatpush2.bf16.msra.mxu0 0
          %717 = vmatprep.subr.bf16.mxu0 0
          %718 = vmatpush2.bf16.msra.mxu0 0
          %719 = vmatprep.subr.bf16.mxu0 0
          %720 = vmatpush2.bf16.msra.mxu0 0
          %721 = vmatprep.subr.bf16.mxu0 0
          %722 = vmatpush2.bf16.msra.mxu0 0
          %723 = vmatprep.subr.bf16.mxu0 0
          %724 = vmatpush2.bf16.msra.mxu0 0
          %725 = vmatprep.subr.bf16.mxu0 0
          %726 = vmatpush2.bf16.msra.mxu0 0
          %727 = vmatprep.mubr.bf16.mxu0 0
          %728 = vmatmul.mubr.bf16.gmra.mxu0 %v523
          %v729 = vpop.f32.mrf.mxu0
          %v730 = vadd.f32 0.0, %v729
          %v731 = vpop.f32.mrf.mxu0
          %v732 = vpop.f32.mrf.mxu0
          %v733 = vadd.f32 0.0, %v732
          %v734 = vpop.f32.mrf.mxu0
          %735 = vdwg.mxu0
          %v736 = vadd.f32 %v517, %v687
          %v737 = vadd.f32 %v518, %v689
          %v738 = vadd.f32 %v520, %v691
          %v739 = vadd.f32 %v521, %v693
          %v740 = vxor.u32 %v736, 2147483648
          %v741 = vxor.u32 %v737, 2147483648
          %v742 = vxor.u32 %v738, 2147483648
          %v743 = vxor.u32 %v739, 2147483648
          %v744 = vmul.f32 %v740, 1.442695
          %v745 = vpow.pop %v744
          %v746 = vmul.f32 %v741, 1.442695
          %v747 = vpow.pop %v746
          %v748 = vmul.f32 %v742, 1.442695
          %v749 = vpow.pop %v748
          %v750 = vmul.f32 %v743, 1.442695
          %v751 = vpow.pop %v750
          %v752 = vadd.f32 %v745, 1.0
          %v753 = vadd.f32 %v747, 1.0
          %v754 = vadd.f32 %v749, 1.0
          %v755 = vadd.f32 %v751, 1.0
          %v756 = vrcp.pop %v752
          %v757 = vmul.f32 1.0, %v756
          %v758 = vrcp.pop %v753
          %v759 = vmul.f32 1.0, %v758
          %v760 = vrcp.pop %v754
          %v761 = vmul.f32 1.0, %v760
          %v762 = vrcp.pop %v755
          %v763 = vmul.f32 1.0, %v762
          %v765 = vlaneseq
          %v766 = vshrl.u32 %v765, 7
          %v767 = vsub.s32 0, %v766
          %v768 = vrot.slane %v510, %v767
          %v770 = vadd.f32 %v730, %v768
          %v771 = vadd.f32 %v733, %v768
          %v772 = vmul.f32 %v757, %v770
          %v773 = vmul.f32 %v761, %v771
          %v774 = vadd.f32 %v519, %v772
          %v775 = vadd.f32 %v522, %v773
          %v776 = vtanh.pop %v774
          %v777 = vtanh.pop %v775
          %v778 = vsub.f32 %v512, %v776
          %v779 = vsub.f32 %v513, %v777
          %v780 = vmul.f32 %v759, %v778
          %v781 = vmul.f32 %v763, %v779
          %v782 = vadd.f32 %v776, %v780
          %v783 = vadd.f32 %v777, %v781
          %s784 = sadd.s32 %s511, 1
          %s785 = smul.u32 %s784, 6
          %s786 = smul.addr %s785, 8
          %s787 = scalar_lea.vmem [#allocation3], %s786
          %v788 = vld [vmem:[%s787] sm:$0xff]
          %v789 = vld [vmem:[%s787 + $0x8] sm:$0xff]
          %v790 = vld [vmem:[%s787 + $0x10] sm:$0xff]
          %v791 = vld [vmem:[%s787 + $0x18] sm:$0xff]
          %v792 = vld [vmem:[%s787 + $0x20] sm:$0xff]
          %v793 = vld [vmem:[%s787 + $0x28] sm:$0xff]
          %v794 = vpack.c.bf16 %v783, %v782
          %795 = vmatprep.subr.bf16.mxu0 %v626
          %796 = vmatpush1.bf16.msra.mxu0 %v625
          %797 = vmatprep.subr.bf16.mxu0 %v623
          %798 = vmatpush1.bf16.msra.mxu0 %v622
          %799 = vmatprep.subr.bf16.mxu0 %v620
          %800 = vmatpush1.bf16.msra.mxu0 %v619
          %801 = vmatprep.subr.bf16.mxu0 %v617
          %802 = vmatpush1.bf16.msra.mxu0 %v616
          %803 = vmatprep.subr.bf16.mxu0 %v614
          %804 = vmatpush1.bf16.msra.mxu0 %v613
          %805 = vmatprep.subr.bf16.mxu0 %v611
          %806 = vmatpush1.bf16.msra.mxu0 %v610
          %807 = vmatprep.subr.bf16.mxu0 %v608
          %808 = vmatpush1.bf16.msra.mxu0 %v607
          %809 = vmatprep.subr.bf16.mxu0 %v605
          %810 = vmatpush1.bf16.msra.mxu0 %v604
          %811 = vmatprep.subr.bf16.mxu0 0
          %812 = vmatpush2.bf16.msra.mxu0 0
          %813 = vmatprep.subr.bf16.mxu0 0
          %814 = vmatpush2.bf16.msra.mxu0 0
          %815 = vmatprep.subr.bf16.mxu0 0
          %816 = vmatpush2.bf16.msra.mxu0 0
          %817 = vmatprep.subr.bf16.mxu0 0
          %818 = vmatpush2.bf16.msra.mxu0 0
          %819 = vmatprep.subr.bf16.mxu0 0
          %820 = vmatpush2.bf16.msra.mxu0 0
          %821 = vmatprep.subr.bf16.mxu0 0
          %822 = vmatpush2.bf16.msra.mxu0 0
          %823 = vmatprep.subr.bf16.mxu0 0
          %824 = vmatpush2.bf16.msra.mxu0 0
          %825 = vmatprep.subr.bf16.mxu0 0
          %826 = vmatpush2.bf16.msra.mxu0 0
          %827 = vmatprep.mubr.bf16.mxu0 0
          %828 = vmatmul.mubr.bf16.gmra.mxu0 %v794
          %v829 = vpop.f32.mrf.mxu0
          %v830 = vadd.f32 0.0, %v829
          %v831 = vpop.f32.mrf.mxu0
          %v832 = vadd.f32 0.0, %v831
          %v833 = vpop.f32.mrf.mxu0
          %v834 = vadd.f32 0.0, %v833
          %v835 = vpop.f32.mrf.mxu0
          %v836 = vadd.f32 0.0, %v835
          %837 = vdwg.mxu0
          %838 = vmatprep.subr.bf16.mxu0 0
          %839 = vmatpush1.bf16.msra.mxu0 %v627
          %840 = vmatprep.subr.bf16.mxu0 0
          %841 = vmatpush1.bf16.msra.mxu0 %v624
          %842 = vmatprep.subr.bf16.mxu0 0
          %843 = vmatpush1.bf16.msra.mxu0 %v621
          %844 = vmatprep.subr.bf16.mxu0 0
          %845 = vmatpush1.bf16.msra.mxu0 %v618
          %846 = vmatprep.subr.bf16.mxu0 0
          %847 = vmatpush1.bf16.msra.mxu0 %v615
          %848 = vmatprep.subr.bf16.mxu0 0
          %849 = vmatpush1.bf16.msra.mxu0 %v612
          %850 = vmatprep.subr.bf16.mxu0 0
          %851 = vmatpush1.bf16.msra.mxu0 %v609
          %852 = vmatprep.subr.bf16.mxu0 0
          %853 = vmatpush1.bf16.msra.mxu0 %v606
          %854 = vmatprep.subr.bf16.mxu0 0
          %855 = vmatpush2.bf16.msra.mxu0 0
          %856 = vmatprep.subr.bf16.mxu0 0
          %857 = vmatpush2.bf16.msra.mxu0 0
          %858 = vmatprep.subr.bf16.mxu0 0
          %859 = vmatpush2.bf16.msra.mxu0 0
          %860 = vmatprep.subr.bf16.mxu0 0
          %861 = vmatpush2.bf16.msra.mxu0 0
          %862 = vmatprep.subr.bf16.mxu0 0
          %863 = vmatpush2.bf16.msra.mxu0 0
          %864 = vmatprep.subr.bf16.mxu0 0
          %865 = vmatpush2.bf16.msra.mxu0 0
          %866 = vmatprep.subr.bf16.mxu0 0
          %867 = vmatpush2.bf16.msra.mxu0 0
          %868 = vmatprep.subr.bf16.mxu0 0
          %869 = vmatpush2.bf16.msra.mxu0 0
          %870 = vmatprep.mubr.bf16.mxu0 0
          %871 = vmatmul.mubr.bf16.gmra.mxu0 %v794
          %v872 = vpop.f32.mrf.mxu0
          %v873 = vadd.f32 0.0, %v872
          %v874 = vpop.f32.mrf.mxu0
          %v875 = vpop.f32.mrf.mxu0
          %v876 = vadd.f32 0.0, %v875
          %v877 = vpop.f32.mrf.mxu0
          %878 = vdwg.mxu0
          %v879 = vadd.f32 %v788, %v830
          %v880 = vadd.f32 %v789, %v832
          %v881 = vadd.f32 %v791, %v834
          %v882 = vadd.f32 %v792, %v836
          %v883 = vxor.u32 %v879, 2147483648
          %v884 = vxor.u32 %v880, 2147483648
          %v885 = vxor.u32 %v881, 2147483648
          %v886 = vxor.u32 %v882, 2147483648
          %v887 = vmul.f32 %v883, 1.442695
          %v888 = vpow.pop %v887
          %v889 = vmul.f32 %v884, 1.442695
          %v890 = vpow.pop %v889
          %v891 = vmul.f32 %v885, 1.442695
          %v892 = vpow.pop %v891
          %v893 = vmul.f32 %v886, 1.442695
          %v894 = vpow.pop %v893
          %v895 = vadd.f32 %v888, 1.0
          %v896 = vadd.f32 %v890, 1.0
          %v897 = vadd.f32 %v892, 1.0
          %v898 = vadd.f32 %v894, 1.0
          %v899 = vrcp.pop %v895
          %v900 = vmul.f32 1.0, %v899
          %v901 = vrcp.pop %v896
          %v902 = vmul.f32 1.0, %v901
          %v903 = vrcp.pop %v897
          %v904 = vmul.f32 1.0, %v903
          %v905 = vrcp.pop %v898
          %v906 = vmul.f32 1.0, %v905
          %v907 = vadd.f32 %v873, %v768
          %v908 = vadd.f32 %v876, %v768
          %v909 = vmul.f32 %v900, %v907
          %v910 = vmul.f32 %v904, %v908
          %v911 = vadd.f32 %v790, %v909
          %v912 = vadd.f32 %v793, %v910
          %v913 = vtanh.pop %v911
          %v914 = vtanh.pop %v912
          %v915 = vsub.f32 %v782, %v913
          %v916 = vsub.f32 %v783, %v914
          %v917 = vmul.f32 %v902, %v915
          %v918 = vmul.f32 %v906, %v916
          %v919 = vadd.f32 %v913, %v917
          %v920 = vadd.f32 %v914, %v918
          %s921 = sadd.s32 %s511, 2
          %s922 = smul.u32 %s921, 6
          %s923 = smul.addr %s922, 8
          %s924 = scalar_lea.vmem [#allocation3], %s923
          %v925 = vld [vmem:[%s924] sm:$0xff]
          %v926 = vld [vmem:[%s924 + $0x8] sm:$0xff]
          %v927 = vld [vmem:[%s924 + $0x10] sm:$0xff]
          %v928 = vld [vmem:[%s924 + $0x18] sm:$0xff]
          %v929 = vld [vmem:[%s924 + $0x20] sm:$0xff]
          %v930 = vld [vmem:[%s924 + $0x28] sm:$0xff]
          %v931 = vpack.c.bf16 %v920, %v919
          %932 = vmatprep.subr.bf16.mxu0 %v626
          %933 = vmatpush1.bf16.msra.mxu0 %v625
          %934 = vmatprep.subr.bf16.mxu0 %v623
          %935 = vmatpush1.bf16.msra.mxu0 %v622
          %936 = vmatprep.subr.bf16.mxu0 %v620
          %937 = vmatpush1.bf16.msra.mxu0 %v619
          %938 = vmatprep.subr.bf16.mxu0 %v617
          %939 = vmatpush1.bf16.msra.mxu0 %v616
          %940 = vmatprep.subr.bf16.mxu0 %v614
          %941 = vmatpush1.bf16.msra.mxu0 %v613
          %942 = vmatprep.subr.bf16.mxu0 %v611
          %943 = vmatpush1.bf16.msra.mxu0 %v610
          %944 = vmatprep.subr.bf16.mxu0 %v608
          %945 = vmatpush1.bf16.msra.mxu0 %v607
          %946 = vmatprep.subr.bf16.mxu0 %v605
          %947 = vmatpush1.bf16.msra.mxu0 %v604
          %948 = vmatprep.subr.bf16.mxu0 0
          %949 = vmatpush2.bf16.msra.mxu0 0
          %950 = vmatprep.subr.bf16.mxu0 0
          %951 = vmatpush2.bf16.msra.mxu0 0
          %952 = vmatprep.subr.bf16.mxu0 0
          %953 = vmatpush2.bf16.msra.mxu0 0
          %954 = vmatprep.subr.bf16.mxu0 0
          %955 = vmatpush2.bf16.msra.mxu0 0
          %956 = vmatprep.subr.bf16.mxu0 0
          %957 = vmatpush2.bf16.msra.mxu0 0
          %958 = vmatprep.subr.bf16.mxu0 0
          %959 = vmatpush2.bf16.msra.mxu0 0
          %960 = vmatprep.subr.bf16.mxu0 0
          %961 = vmatpush2.bf16.msra.mxu0 0
          %962 = vmatprep.subr.bf16.mxu0 0
          %963 = vmatpush2.bf16.msra.mxu0 0
          %964 = vmatprep.mubr.bf16.mxu0 0
          %965 = vmatmul.mubr.bf16.gmra.mxu0 %v931
          %v966 = vpop.f32.mrf.mxu0
          %v967 = vadd.f32 0.0, %v966
          %v968 = vpop.f32.mrf.mxu0
          %v969 = vadd.f32 0.0, %v968
          %v970 = vpop.f32.mrf.mxu0
          %v971 = vadd.f32 0.0, %v970
          %v972 = vpop.f32.mrf.mxu0
          %v973 = vadd.f32 0.0, %v972
          %974 = vdwg.mxu0
          %975 = vmatprep.subr.bf16.mxu0 0
          %976 = vmatpush1.bf16.msra.mxu0 %v627
          %977 = vmatprep.subr.bf16.mxu0 0
          %978 = vmatpush1.bf16.msra.mxu0 %v624
          %979 = vmatprep.subr.bf16.mxu0 0
          %980 = vmatpush1.bf16.msra.mxu0 %v621
          %981 = vmatprep.subr.bf16.mxu0 0
          %982 = vmatpush1.bf16.msra.mxu0 %v618
          %983 = vmatprep.subr.bf16.mxu0 0
          %984 = vmatpush1.bf16.msra.mxu0 %v615
          %985 = vmatprep.subr.bf16.mxu0 0
          %986 = vmatpush1.bf16.msra.mxu0 %v612
          %987 = vmatprep.subr.bf16.mxu0 0
          %988 = vmatpush1.bf16.msra.mxu0 %v609
          %989 = vmatprep.subr.bf16.mxu0 0
          %990 = vmatpush1.bf16.msra.mxu0 %v606
          %991 = vmatprep.subr.bf16.mxu0 0
          %992 = vmatpush2.bf16.msra.mxu0 0
          %993 = vmatprep.subr.bf16.mxu0 0
          %994 = vmatpush2.bf16.msra.mxu0 0
          %995 = vmatprep.subr.bf16.mxu0 0
          %996 = vmatpush2.bf16.msra.mxu0 0
          %997 = vmatprep.subr.bf16.mxu0 0
          %998 = vmatpush2.bf16.msra.mxu0 0
          %999 = vmatprep.subr.bf16.mxu0 0
          %1000 = vmatpush2.bf16.msra.mxu0 0
          %1001 = vmatprep.subr.bf16.mxu0 0
          %1002 = vmatpush2.bf16.msra.mxu0 0
          %1003 = vmatprep.subr.bf16.mxu0 0
          %1004 = vmatpush2.bf16.msra.mxu0 0
          %1005 = vmatprep.subr.bf16.mxu0 0
          %1006 = vmatpush2.bf16.msra.mxu0 0
          %1007 = vmatprep.mubr.bf16.mxu0 0
          %1008 = vmatmul.mubr.bf16.gmra.mxu0 %v931
          %v1009 = vpop.f32.mrf.mxu0
          %v1010 = vadd.f32 0.0, %v1009
          %v1011 = vpop.f32.mrf.mxu0
          %v1012 = vpop.f32.mrf.mxu0
          %v1013 = vadd.f32 0.0, %v1012
          %v1014 = vpop.f32.mrf.mxu0
          %1015 = vdwg.mxu0
          %v1016 = vadd.f32 %v925, %v967
          %v1017 = vadd.f32 %v926, %v969
          %v1018 = vadd.f32 %v928, %v971
          %v1019 = vadd.f32 %v929, %v973
          %v1020 = vxor.u32 %v1016, 2147483648
          %v1021 = vxor.u32 %v1017, 2147483648
          %v1022 = vxor.u32 %v1018, 2147483648
          %v1023 = vxor.u32 %v1019, 2147483648
          %v1024 = vmul.f32 %v1020, 1.442695
          %v1025 = vpow.pop %v1024
          %v1026 = vmul.f32 %v1021, 1.442695
          %v1027 = vpow.pop %v1026
          %v1028 = vmul.f32 %v1022, 1.442695
          %v1029 = vpow.pop %v1028
          %v1030 = vmul.f32 %v1023, 1.442695
          %v1031 = vpow.pop %v1030
          %v1032 = vadd.f32 %v1025, 1.0
          %v1033 = vadd.f32 %v1027, 1.0
          %v1034 = vadd.f32 %v1029, 1.0
          %v1035 = vadd.f32 %v1031, 1.0
          %v1036 = vrcp.pop %v1032
          %v1037 = vmul.f32 1.0, %v1036
          %v1038 = vrcp.pop %v1033
          %v1039 = vmul.f32 1.0, %v1038
          %v1040 = vrcp.pop %v1034
          %v1041 = vmul.f32 1.0, %v1040
          %v1042 = vrcp.pop %v1035
          %v1043 = vmul.f32 1.0, %v1042
          %v1044 = vadd.f32 %v1010, %v768
          %v1045 = vadd.f32 %v1013, %v768
          %v1046 = vmul.f32 %v1037, %v1044
          %v1047 = vmul.f32 %v1041, %v1045
          %v1048 = vadd.f32 %v927, %v1046
          %v1049 = vadd.f32 %v930, %v1047
          %v1050 = vtanh.pop %v1048
          %v1051 = vtanh.pop %v1049
          %v1052 = vsub.f32 %v919, %v1050
          %v1053 = vsub.f32 %v920, %v1051
          %v1054 = vmul.f32 %v1039, %v1052
          %v1055 = vmul.f32 %v1043, %v1053
          %v1056 = vadd.f32 %v1050, %v1054
          %v1057 = vadd.f32 %v1051, %v1055
          %s1058 = sadd.s32 %s511, 3
          %s1059 = smul.u32 %s1058, 6
          %s1060 = smul.addr %s1059, 8
          %s1061 = scalar_lea.vmem [#allocation3], %s1060
          %v1062 = vld [vmem:[%s1061] sm:$0xff]
          %v1063 = vld [vmem:[%s1061 + $0x8] sm:$0xff]
          %v1064 = vld [vmem:[%s1061 + $0x10] sm:$0xff]
          %v1065 = vld [vmem:[%s1061 + $0x18] sm:$0xff]
          %v1066 = vld [vmem:[%s1061 + $0x20] sm:$0xff]
          %v1067 = vld [vmem:[%s1061 + $0x28] sm:$0xff]
          %v1068 = vpack.c.bf16 %v1057, %v1056
          %1069 = vmatprep.subr.bf16.mxu0 %v626
          %1070 = vmatpush1.bf16.msra.mxu0 %v625
          %1071 = vmatprep.subr.bf16.mxu0 %v623
          %1072 = vmatpush1.bf16.msra.mxu0 %v622
          %1073 = vmatprep.subr.bf16.mxu0 %v620
          %1074 = vmatpush1.bf16.msra.mxu0 %v619
          %1075 = vmatprep.subr.bf16.mxu0 %v617
          %1076 = vmatpush1.bf16.msra.mxu0 %v616
          %1077 = vmatprep.subr.bf16.mxu0 %v614
          %1078 = vmatpush1.bf16.msra.mxu0 %v613
          %1079 = vmatprep.subr.bf16.mxu0 %v611
          %1080 = vmatpush1.bf16.msra.mxu0 %v610
          %1081 = vmatprep.subr.bf16.mxu0 %v608
          %1082 = vmatpush1.bf16.msra.mxu0 %v607
          %1083 = vmatprep.subr.bf16.mxu0 %v605
          %1084 = vmatpush1.bf16.msra.mxu0 %v604
          %1085 = vmatprep.subr.bf16.mxu0 0
          %1086 = vmatpush2.bf16.msra.mxu0 0
          %1087 = vmatprep.subr.bf16.mxu0 0
          %1088 = vmatpush2.bf16.msra.mxu0 0
          %1089 = vmatprep.subr.bf16.mxu0 0
          %1090 = vmatpush2.bf16.msra.mxu0 0
          %1091 = vmatprep.subr.bf16.mxu0 0
          %1092 = vmatpush2.bf16.msra.mxu0 0
          %1093 = vmatprep.subr.bf16.mxu0 0
          %1094 = vmatpush2.bf16.msra.mxu0 0
          %1095 = vmatprep.subr.bf16.mxu0 0
          %1096 = vmatpush2.bf16.msra.mxu0 0
          %1097 = vmatprep.subr.bf16.mxu0 0
          %1098 = vmatpush2.bf16.msra.mxu0 0
          %1099 = vmatprep.subr.bf16.mxu0 0
          %1100 = vmatpush2.bf16.msra.mxu0 0
          %1101 = vmatprep.mubr.bf16.mxu0 0
          %1102 = vmatmul.mubr.bf16.gmra.mxu0 %v1068
          %v1103 = vpop.f32.mrf.mxu0
          %v1104 = vadd.f32 0.0, %v1103
          %v1105 = vpop.f32.mrf.mxu0
          %v1106 = vadd.f32 0.0, %v1105
          %v1107 = vpop.f32.mrf.mxu0
          %v1108 = vadd.f32 0.0, %v1107
          %v1109 = vpop.f32.mrf.mxu0
          %v1110 = vadd.f32 0.0, %v1109
          %1111 = vdwg.mxu0
          %1112 = vmatprep.subr.bf16.mxu0 0
          %1113 = vmatpush1.bf16.msra.mxu0 %v627
          %1114 = vmatprep.subr.bf16.mxu0 0
          %1115 = vmatpush1.bf16.msra.mxu0 %v624
          %1116 = vmatprep.subr.bf16.mxu0 0
          %1117 = vmatpush1.bf16.msra.mxu0 %v621
          %1118 = vmatprep.subr.bf16.mxu0 0
          %1119 = vmatpush1.bf16.msra.mxu0 %v618
          %1120 = vmatprep.subr.bf16.mxu0 0
          %1121 = vmatpush1.bf16.msra.mxu0 %v615
          %1122 = vmatprep.subr.bf16.mxu0 0
          %1123 = vmatpush1.bf16.msra.mxu0 %v612
          %1124 = vmatprep.subr.bf16.mxu0 0
          %1125 = vmatpush1.bf16.msra.mxu0 %v609
          %1126 = vmatprep.subr.bf16.mxu0 0
          %1127 = vmatpush1.bf16.msra.mxu0 %v606
          %1128 = vmatprep.subr.bf16.mxu0 0
          %1129 = vmatpush2.bf16.msra.mxu0 0
          %1130 = vmatprep.subr.bf16.mxu0 0
          %1131 = vmatpush2.bf16.msra.mxu0 0
          %1132 = vmatprep.subr.bf16.mxu0 0
          %1133 = vmatpush2.bf16.msra.mxu0 0
          %1134 = vmatprep.subr.bf16.mxu0 0
          %1135 = vmatpush2.bf16.msra.mxu0 0
          %1136 = vmatprep.subr.bf16.mxu0 0
          %1137 = vmatpush2.bf16.msra.mxu0 0
          %1138 = vmatprep.subr.bf16.mxu0 0
          %1139 = vmatpush2.bf16.msra.mxu0 0
          %1140 = vmatprep.subr.bf16.mxu0 0
          %1141 = vmatpush2.bf16.msra.mxu0 0
          %1142 = vmatprep.subr.bf16.mxu0 0
          %1143 = vmatpush2.bf16.msra.mxu0 0
          %1144 = vmatprep.mubr.bf16.mxu0 0
          %1145 = vmatmul.mubr.bf16.gmra.mxu0 %v1068
          %v1146 = vpop.f32.mrf.mxu0
          %v1147 = vadd.f32 0.0, %v1146
          %v1148 = vpop.f32.mrf.mxu0
          %v1149 = vpop.f32.mrf.mxu0
          %v1150 = vadd.f32 0.0, %v1149
          %v1151 = vpop.f32.mrf.mxu0
          %1152 = vdwg.mxu0
          %v1153 = vadd.f32 %v1062, %v1104
          %v1154 = vadd.f32 %v1063, %v1106
          %v1155 = vadd.f32 %v1065, %v1108
          %v1156 = vadd.f32 %v1066, %v1110
          %v1157 = vxor.u32 %v1153, 2147483648
          %v1158 = vxor.u32 %v1154, 2147483648
          %v1159 = vxor.u32 %v1155, 2147483648
          %v1160 = vxor.u32 %v1156, 2147483648
          %v1161 = vmul.f32 %v1157, 1.442695
          %v1162 = vpow.pop %v1161
          %v1163 = vmul.f32 %v1158, 1.442695
          %v1164 = vpow.pop %v1163
          %v1165 = vmul.f32 %v1159, 1.442695
          %v1166 = vpow.pop %v1165
          %v1167 = vmul.f32 %v1160, 1.442695
          %v1168 = vpow.pop %v1167
          %v1169 = vadd.f32 %v1162, 1.0
          %v1170 = vadd.f32 %v1164, 1.0
          %v1171 = vadd.f32 %v1166, 1.0
          %v1172 = vadd.f32 %v1168, 1.0
          %v1173 = vrcp.pop %v1169
          %v1174 = vmul.f32 1.0, %v1173
          %v1175 = vrcp.pop %v1170
          %v1176 = vmul.f32 1.0, %v1175
          %v1177 = vrcp.pop %v1171
          %v1178 = vmul.f32 1.0, %v1177
          %v1179 = vrcp.pop %v1172
          %v1180 = vmul.f32 1.0, %v1179
          %v1181 = vadd.f32 %v1147, %v768
          %v1182 = vadd.f32 %v1150, %v768
          %v1183 = vmul.f32 %v1174, %v1181
          %v1184 = vmul.f32 %v1178, %v1182
          %v1185 = vadd.f32 %v1064, %v1183
          %v1186 = vadd.f32 %v1067, %v1184
          %v1187 = vtanh.pop %v1185
          %v1188 = vtanh.pop %v1186
          %v1189 = vsub.f32 %v1056, %v1187
          %v1190 = vsub.f32 %v1057, %v1188
          %v1191 = vmul.f32 %v1176, %v1189
          %v1192 = vmul.f32 %v1180, %v1190
          %v1193 = vadd.f32 %v1187, %v1191
          %v1194 = vadd.f32 %v1188, %v1192
          %1195 = vst [vmem:[#allocation2] sm:$0xff] %v1193
          %1196 = vst [vmem:[#allocation2 + $0x8] sm:$0xff] %v1194
        $region84: #{tpu_custom_call.1} parent=55 // pred_fallthru
          _
        %v1197 = vld [vmem:[%s402] sm:$0xf]
        %v1198 = vld [vmem:[%s402 + $0x4] sm:$0xf]
        %v1199 = vld [vmem:[%s402 + $0x8] sm:$0xf]
        %v1200 = vld [vmem:[%s402 + $0xc] sm:$0xf]
        %v1201 = vld [vmem:[%s402 + $0x10] sm:$0xf]
        %v1202 = vld [vmem:[%s402 + $0x14] sm:$0xf]
        %v1203 = vld [vmem:[%s402 + $0x18] sm:$0xf]
        %v1204 = vld [vmem:[%s402 + $0x1c] sm:$0xf]
        %v1205 = vld [vmem:[#allocation7] sm:$0xf]
        %v1206 = vld [vmem:[#allocation7 + $0x4] sm:$0xf]
        %v1207 = vld [vmem:[#allocation7 + $0x8] sm:$0xf]
        %v1208 = vld [vmem:[#allocation7 + $0xc] sm:$0xf]
        %v1209 = vld [vmem:[#allocation7 + $0x10] sm:$0xf]
        %v1210 = vld [vmem:[#allocation7 + $0x14] sm:$0xf]
        %v1211 = vld [vmem:[#allocation7 + $0x18] sm:$0xf]
        %v1212 = vld [vmem:[#allocation7 + $0x1c] sm:$0xf]
        %v1213 = vld [vmem:[#allocation7 + $0x20] sm:$0xf]
        %v1214 = vld [vmem:[#allocation7 + $0x24] sm:$0xf]
        %v1215 = vld [vmem:[#allocation7 + $0x28] sm:$0xf]
        %v1216 = vld [vmem:[#allocation7 + $0x2c] sm:$0xf]
        %v1217 = vld [vmem:[#allocation7 + $0x30] sm:$0xf]
        %v1218 = vld [vmem:[#allocation7 + $0x34] sm:$0xf]
        %v1219 = vld [vmem:[#allocation7 + $0x38] sm:$0xf]
        %v1220 = vld [vmem:[#allocation7 + $0x3c] sm:$0xf]
        %v1221 = vld [vmem:[%s2] sm:$0x1]
        %v1223 = vlaneseq
        %v1224 = vshrl.u32 %v1223, 7
        %v1225 = vsub.s32 0, %v1224
        %v1226 = vrot.slane %v1221, %v1225
        %v1236 = vunpack.c.l.b16 %v1197
        %v1237 = vunpack.c.l.b16 %v1198
        %v1238 = vunpack.c.l.b16 %v1199
        %v1239 = vunpack.c.l.b16 %v1200
        %v1240 = vunpack.c.l.b16 %v1201
        %v1241 = vunpack.c.l.b16 %v1202
        %v1242 = vunpack.c.l.b16 %v1203
        %v1243 = vunpack.c.l.b16 %v1204
        %v1244 = vpack.c.b16 %v1237, %v1236
        %v1245 = vpack.c.b16 %v1239, %v1238
        %v1246 = vpack.c.b16 %v1241, %v1240
        %v1247 = vpack.c.b16 %v1243, %v1242
        %v1268 = vunpack.c.l.b16 %v1205
        %v1269 = vunpack.c.l.b16 %v1206
        %v1270 = vunpack.c.l.b16 %v1207
        %v1271 = vunpack.c.l.b16 %v1208
        %v1272 = vunpack.c.l.b16 %v1209
        %v1273 = vunpack.c.l.b16 %v1210
        %v1274 = vunpack.c.l.b16 %v1211
        %v1275 = vunpack.c.l.b16 %v1212
        %v1276 = vunpack.c.l.b16 %v1213
        %v1277 = vunpack.c.l.b16 %v1214
        %v1278 = vunpack.c.l.b16 %v1215
        %v1279 = vunpack.c.l.b16 %v1216
        %v1280 = vunpack.c.l.b16 %v1217
        %v1281 = vunpack.c.l.b16 %v1218
        %v1282 = vunpack.c.l.b16 %v1219
        %v1283 = vunpack.c.l.b16 %v1220
        %v1284 = vpack.c.b16 %v1269, %v1268
        %v1285 = vpack.c.b16 %v1271, %v1270
        %v1286 = vpack.c.b16 %v1273, %v1272
        %v1287 = vpack.c.b16 %v1275, %v1274
        %v1288 = vpack.c.b16 %v1277, %v1276
        %v1289 = vpack.c.b16 %v1279, %v1278
        %v1290 = vpack.c.b16 %v1281, %v1280
        %v1291 = vpack.c.b16 %v1283, %v1282
        %1300 = vmatprep.subr.bf16.mxu0 0
        %1301 = vmatpush1.bf16.msra.mxu0 %v1291
        %1302 = vmatprep.subr.bf16.mxu0 0
        %1303 = vmatpush1.bf16.msra.mxu0 %v1290
        %1304 = vmatprep.subr.bf16.mxu0 0
        %1305 = vmatpush1.bf16.msra.mxu0 %v1289
        %1306 = vmatprep.subr.bf16.mxu0 0
        %1307 = vmatpush1.bf16.msra.mxu0 %v1288
        %1308 = vmatprep.subr.bf16.mxu0 0
        %1309 = vmatpush1.bf16.msra.mxu0 %v1287
        %1310 = vmatprep.subr.bf16.mxu0 0
        %1311 = vmatpush1.bf16.msra.mxu0 %v1286
        %1312 = vmatprep.subr.bf16.mxu0 0
        %1313 = vmatpush1.bf16.msra.mxu0 %v1285
        %1314 = vmatprep.subr.bf16.mxu0 0
        %1315 = vmatpush1.bf16.msra.mxu0 %v1284
        %1316 = vmatprep.subr.bf16.mxu0 0
        %1317 = vmatpush2.bf16.msra.mxu0 0
        %1318 = vmatprep.subr.bf16.mxu0 0
        %1319 = vmatpush2.bf16.msra.mxu0 0
        %1320 = vmatprep.subr.bf16.mxu0 0
        %1321 = vmatpush2.bf16.msra.mxu0 0
        %1322 = vmatprep.subr.bf16.mxu0 0
        %1323 = vmatpush2.bf16.msra.mxu0 0
        %1324 = vmatprep.subr.bf16.mxu0 0
        %1325 = vmatpush2.bf16.msra.mxu0 0
        %1326 = vmatprep.subr.bf16.mxu0 0
        %1327 = vmatpush2.bf16.msra.mxu0 0
        %1328 = vmatprep.subr.bf16.mxu0 0
        %1329 = vmatpush2.bf16.msra.mxu0 0
        %1330 = vmatprep.subr.bf16.mxu0 0
        %1331 = vmatpush2.bf16.msra.mxu0 0
        %1332 = vmatprep.mubr.bf16.mxu0 0
        %1333 = vmatmul.mubr.bf16.gmra.mxu0 %v1244
        %v1334 = vpop.f32.mrf.mxu0
        %v1335 = vadd.f32 %v1226, %v1334
        %v1336 = vpop.f32.mrf.mxu0
        %v1337 = vpop.f32.mrf.mxu0
        %v1338 = vadd.f32 %v1226, %v1337
        %v1339 = vpop.f32.mrf.mxu0
        %1340 = vmatprep.mubr.bf16.mxu0 0
        %1341 = vmatmul.mubr.bf16.gmra.mxu0 %v1245
        %v1342 = vpop.f32.mrf.mxu0
        %v1343 = vadd.f32 %v1226, %v1342
        %v1344 = vpop.f32.mrf.mxu0
        %v1345 = vpop.f32.mrf.mxu0
        %v1346 = vadd.f32 %v1226, %v1345
        %v1347 = vpop.f32.mrf.mxu0
        %1348 = vmatprep.mubr.bf16.mxu0 0
        %1349 = vmatmul.mubr.bf16.gmra.mxu0 %v1246
        %v1350 = vpop.f32.mrf.mxu0
        %v1351 = vadd.f32 %v1226, %v1350
        %v1352 = vpop.f32.mrf.mxu0
        %v1353 = vpop.f32.mrf.mxu0
        %v1354 = vadd.f32 %v1226, %v1353
        %v1355 = vpop.f32.mrf.mxu0
        %1356 = vmatprep.mubr.bf16.mxu0 0
        %1357 = vmatmul.mubr.bf16.gmra.mxu0 %v1247
        %v1358 = vpop.f32.mrf.mxu0
        %v1359 = vadd.f32 %v1226, %v1358
        %v1360 = vpop.f32.mrf.mxu0
        %v1361 = vpop.f32.mrf.mxu0
        %v1362 = vadd.f32 %v1226, %v1361
        %v1363 = vpop.f32.mrf.mxu0
        %1364 = vdwg.mxu0
        %v1365 = vmax.f32 %v1335, 0.0
        %v1366 = vmax.f32 %v1338, 0.0
        %v1367 = vmax.f32 %v1343, 0.0
        %v1368 = vmax.f32 %v1346, 0.0
        %v1369 = vmax.f32 %v1351, 0.0
        %v1370 = vmax.f32 %v1354, 0.0
        %v1371 = vmax.f32 %v1359, 0.0
        %v1372 = vmax.f32 %v1362, 0.0
        %v1373 = vpack.c.bf16 %v1366, %v1365
        %v1374 = vpack.c.bf16 %v1368, %v1367
        %v1375 = vpack.c.bf16 %v1370, %v1369
        %v1376 = vpack.c.bf16 %v1372, %v1371
        %v1377 = vld [vmem:[#allocation9] sm:$0xff]
        %v1378 = vld [vmem:[#allocation9 + $0x8] sm:$0xf]
        %v1379 = vld [vmem:[#allocation9 + $0xc] sm:$0xff]
        %v1380 = vld [vmem:[#allocation9 + $0x14] sm:$0xf]
        %v1381 = vld [vmem:[#allocation9 + $0x18] sm:$0xff]
        %v1382 = vld [vmem:[#allocation9 + $0x20] sm:$0xf]
        %v1383 = vld [vmem:[#allocation9 + $0x24] sm:$0xff]
        %v1384 = vld [vmem:[#allocation9 + $0x2c] sm:$0xf]
        %v1385 = vld [vmem:[#allocation9 + $0x30] sm:$0xff]
        %v1386 = vld [vmem:[#allocation9 + $0x38] sm:$0xf]
        %v1387 = vld [vmem:[#allocation9 + $0x3c] sm:$0xff]
        %v1388 = vld [vmem:[#allocation9 + $0x44] sm:$0xf]
        %v1389 = vld [vmem:[#allocation9 + $0x48] sm:$0xff]
        %v1390 = vld [vmem:[#allocation9 + $0x50] sm:$0xf]
        %v1391 = vld [vmem:[#allocation9 + $0x54] sm:$0xff]
        %v1392 = vld [vmem:[#allocation9 + $0x5c] sm:$0xf]
        %v1393 = vld [vmem:[#allocation9 + $0x60] sm:$0xff]
        %v1394 = vld [vmem:[#allocation9 + $0x68] sm:$0xf]
        %v1395 = vld [vmem:[#allocation9 + $0x6c] sm:$0xff]
        %v1396 = vld [vmem:[#allocation9 + $0x74] sm:$0xf]
        %v1397 = vld [vmem:[#allocation9 + $0x78] sm:$0xff]
        %v1398 = vld [vmem:[#allocation9 + $0x80] sm:$0xf]
        %v1399 = vld [vmem:[#allocation9 + $0x84] sm:$0xff]
        %v1400 = vld [vmem:[#allocation9 + $0x8c] sm:$0xf]
        %v1401 = vld [vmem:[#allocation9 + $0x90] sm:$0xff]
        %v1402 = vld [vmem:[#allocation9 + $0x98] sm:$0xf]
        %v1403 = vld [vmem:[#allocation9 + $0x9c] sm:$0xff]
        %v1404 = vld [vmem:[#allocation9 + $0xa4] sm:$0xf]
        %v1405 = vld [vmem:[#allocation9 + $0xa8] sm:$0xff]
        %v1406 = vld [vmem:[#allocation9 + $0xb0] sm:$0xf]
        %v1407 = vld [vmem:[#allocation9 + $0xb4] sm:$0xff]
        %v1408 = vld [vmem:[#allocation9 + $0xbc] sm:$0xf]
        %v1409 = vld [vmem:[%s5] sm:$0x7]
        %v1411 = vlaneseq
        %v1412 = vshrl.u32 %v1411, 7
        %v1413 = vsub.s32 0, %v1412
        %v1414 = vrot.slane %v1409, %v1413
        %v1415 = vlaneseq
        %v1416 = vshrl.u32 %v1415, 7
        %v1417 = vsub.s32 1, %v1416
        %v1418 = vrot.slane %v1409, %v1417
        %v1419 = vlaneseq
        %v1420 = vshrl.u32 %v1419, 7
        %v1421 = vsub.s32 2, %v1420
        %v1422 = vrot.slane %v1409, %v1421
        %v1458 = vunpack.c.l.b16 %v1377
        %v1459 = vunpack.c.h.b16 %v1377
        %v1460 = vunpack.c.l.b16 %v1378
        %v1461 = vunpack.c.l.b16 %v1379
        %v1462 = vunpack.c.h.b16 %v1379
        %v1463 = vunpack.c.l.b16 %v1380
        %v1464 = vunpack.c.l.b16 %v1381
        %v1465 = vunpack.c.h.b16 %v1381
        %v1466 = vunpack.c.l.b16 %v1382
        %v1467 = vunpack.c.l.b16 %v1383
        %v1468 = vunpack.c.h.b16 %v1383
        %v1469 = vunpack.c.l.b16 %v1384
        %v1470 = vunpack.c.l.b16 %v1385
        %v1471 = vunpack.c.h.b16 %v1385
        %v1472 = vunpack.c.l.b16 %v1386
        %v1473 = vunpack.c.l.b16 %v1387
        %v1474 = vunpack.c.h.b16 %v1387
        %v1475 = vunpack.c.l.b16 %v1388
        %v1476 = vunpack.c.l.b16 %v1389
        %v1477 = vunpack.c.h.b16 %v1389
        %v1478 = vunpack.c.l.b16 %v1390
        %v1479 = vunpack.c.l.b16 %v1391
        %v1480 = vunpack.c.h.b16 %v1391
        %v1481 = vunpack.c.l.b16 %v1392
        %v1482 = vunpack.c.l.b16 %v1393
        %v1483 = vunpack.c.h.b16 %v1393
        %v1484 = vunpack.c.l.b16 %v1394
        %v1485 = vunpack.c.l.b16 %v1395
        %v1486 = vunpack.c.h.b16 %v1395
        %v1487 = vunpack.c.l.b16 %v1396
        %v1488 = vunpack.c.l.b16 %v1397
        %v1489 = vunpack.c.h.b16 %v1397
        %v1490 = vunpack.c.l.b16 %v1398
        %v1491 = vunpack.c.l.b16 %v1399
        %v1492 = vunpack.c.h.b16 %v1399
        %v1493 = vunpack.c.l.b16 %v1400
        %v1494 = vunpack.c.l.b16 %v1401
        %v1495 = vunpack.c.h.b16 %v1401
        %v1496 = vunpack.c.l.b16 %v1402
        %v1497 = vunpack.c.l.b16 %v1403
        %v1498 = vunpack.c.h.b16 %v1403
        %v1499 = vunpack.c.l.b16 %v1404
        %v1500 = vunpack.c.l.b16 %v1405
        %v1501 = vunpack.c.h.b16 %v1405
        %v1502 = vunpack.c.l.b16 %v1406
        %v1503 = vunpack.c.l.b16 %v1407
        %v1504 = vunpack.c.h.b16 %v1407
        %v1505 = vunpack.c.l.b16 %v1408
        %v1506 = vpack.c.b16 %v1461, %v1458
        %v1507 = vpack.c.b16 %v1462, %v1459
        %v1508 = vpack.c.b16 %v1463, %v1460
        %v1509 = vpack.c.b16 %v1467, %v1464
        %v1510 = vpack.c.b16 %v1468, %v1465
        %v1511 = vpack.c.b16 %v1469, %v1466
        %v1512 = vpack.c.b16 %v1473, %v1470
        %v1513 = vpack.c.b16 %v1474, %v1471
        %v1514 = vpack.c.b16 %v1475, %v1472
        %v1515 = vpack.c.b16 %v1479, %v1476
        %v1516 = vpack.c.b16 %v1480, %v1477
        %v1517 = vpack.c.b16 %v1481, %v1478
        %v1518 = vpack.c.b16 %v1485, %v1482
        %v1519 = vpack.c.b16 %v1486, %v1483
        %v1520 = vpack.c.b16 %v1487, %v1484
        %v1521 = vpack.c.b16 %v1491, %v1488
        %v1522 = vpack.c.b16 %v1492, %v1489
        %v1523 = vpack.c.b16 %v1493, %v1490
        %v1524 = vpack.c.b16 %v1497, %v1494
        %v1525 = vpack.c.b16 %v1498, %v1495
        %v1526 = vpack.c.b16 %v1499, %v1496
        %v1527 = vpack.c.b16 %v1503, %v1500
        %v1528 = vpack.c.b16 %v1504, %v1501
        %v1529 = vpack.c.b16 %v1505, %v1502
        %1554 = vmatprep.subr.bf16.mxu0 %v1528
        %1555 = vmatpush1.bf16.msra.mxu0 %v1527
        %1556 = vmatprep.subr.bf16.mxu0 %v1525
        %1557 = vmatpush1.bf16.msra.mxu0 %v1524
        %1558 = vmatprep.subr.bf16.mxu0 %v1522
        %1559 = vmatpush1.bf16.msra.mxu0 %v1521
        %1560 = vmatprep.subr.bf16.mxu0 %v1519
        %1561 = vmatpush1.bf16.msra.mxu0 %v1518
        %1562 = vmatprep.subr.bf16.mxu0 %v1516
        %1563 = vmatpush1.bf16.msra.mxu0 %v1515
        %1564 = vmatprep.subr.bf16.mxu0 %v1513
        %1565 = vmatpush1.bf16.msra.mxu0 %v1512
        %1566 = vmatprep.subr.bf16.mxu0 %v1510
        %1567 = vmatpush1.bf16.msra.mxu0 %v1509
        %1568 = vmatprep.subr.bf16.mxu0 %v1507
        %1569 = vmatpush1.bf16.msra.mxu0 %v1506
        %1570 = vmatprep.subr.bf16.mxu0 0
        %1571 = vmatpush2.bf16.msra.mxu0 0
        %1572 = vmatprep.subr.bf16.mxu0 0
        %1573 = vmatpush2.bf16.msra.mxu0 0
        %1574 = vmatprep.subr.bf16.mxu0 0
        %1575 = vmatpush2.bf16.msra.mxu0 0
        %1576 = vmatprep.subr.bf16.mxu0 0
        %1577 = vmatpush2.bf16.msra.mxu0 0
        %1578 = vmatprep.subr.bf16.mxu0 0
        %1579 = vmatpush2.bf16.msra.mxu0 0
        %1580 = vmatprep.subr.bf16.mxu0 0
        %1581 = vmatpush2.bf16.msra.mxu0 0
        %1582 = vmatprep.subr.bf16.mxu0 0
        %1583 = vmatpush2.bf16.msra.mxu0 0
        %1584 = vmatprep.subr.bf16.mxu0 0
        %1585 = vmatpush2.bf16.msra.mxu0 0
        %1586 = vmatprep.mubr.bf16.mxu0 0
        %1587 = vmatmul.mubr.bf16.gmra.mxu0 %v1373
        %v1588 = vpop.f32.mrf.mxu0
        %v1589 = vadd.f32 %v1414, %v1588
        %v1590 = vpop.f32.mrf.mxu0
        %v1591 = vadd.f32 %v1418, %v1590
        %v1592 = vpop.f32.mrf.mxu0
        %v1593 = vadd.f32 %v1414, %v1592
        %v1594 = vpop.f32.mrf.mxu0
        %v1595 = vadd.f32 %v1418, %v1594
        %1596 = vmatprep.mubr.bf16.mxu0 0
        %1597 = vmatmul.mubr.bf16.gmra.mxu0 %v1374
        %v1598 = vpop.f32.mrf.mxu0
        %v1599 = vadd.f32 %v1414, %v1598
        %v1600 = vpop.f32.mrf.mxu0
        %v1601 = vadd.f32 %v1418, %v1600
        %v1602 = vpop.f32.mrf.mxu0
        %v1603 = vadd.f32 %v1414, %v1602
        %v1604 = vpop.f32.mrf.mxu0
        %v1605 = vadd.f32 %v1418, %v1604
        %1606 = vmatprep.mubr.bf16.mxu0 0
        %1607 = vmatmul.mubr.bf16.gmra.mxu0 %v1375
        %v1608 = vpop.f32.mrf.mxu0
        %v1609 = vadd.f32 %v1414, %v1608
        %v1610 = vpop.f32.mrf.mxu0
        %v1611 = vadd.f32 %v1418, %v1610
        %v1612 = vpop.f32.mrf.mxu0
        %v1613 = vadd.f32 %v1414, %v1612
        %v1614 = vpop.f32.mrf.mxu0
        %v1615 = vadd.f32 %v1418, %v1614
        %1616 = vmatprep.mubr.bf16.mxu0 0
        %1617 = vmatmul.mubr.bf16.gmra.mxu0 %v1376
        %v1618 = vpop.f32.mrf.mxu0
        %v1619 = vadd.f32 %v1414, %v1618
        %v1620 = vpop.f32.mrf.mxu0
        %v1621 = vadd.f32 %v1418, %v1620
        %v1622 = vpop.f32.mrf.mxu0
        %v1623 = vadd.f32 %v1414, %v1622
        %v1624 = vpop.f32.mrf.mxu0
        %v1625 = vadd.f32 %v1418, %v1624
        %1626 = vdwg.mxu0
        %1627 = vmatprep.subr.bf16.mxu0 0
        %1628 = vmatpush1.bf16.msra.mxu0 %v1529
        %1629 = vmatprep.subr.bf16.mxu0 0
        %1630 = vmatpush1.bf16.msra.mxu0 %v1526
        %1631 = vmatprep.subr.bf16.mxu0 0
        %1632 = vmatpush1.bf16.msra.mxu0 %v1523
        %1633 = vmatprep.subr.bf16.mxu0 0
        %1634 = vmatpush1.bf16.msra.mxu0 %v1520
        %1635 = vmatprep.subr.bf16.mxu0 0
        %1636 = vmatpush1.bf16.msra.mxu0 %v1517
        %1637 = vmatprep.subr.bf16.mxu0 0
        %1638 = vmatpush1.bf16.msra.mxu0 %v1514
        %1639 = vmatprep.subr.bf16.mxu0 0
        %1640 = vmatpush1.bf16.msra.mxu0 %v1511
        %1641 = vmatprep.subr.bf16.mxu0 0
        %1642 = vmatpush1.bf16.msra.mxu0 %v1508
        %1643 = vmatprep.subr.bf16.mxu0 0
        %1644 = vmatpush2.bf16.msra.mxu0 0
        %1645 = vmatprep.subr.bf16.mxu0 0
        %1646 = vmatpush2.bf16.msra.mxu0 0
        %1647 = vmatprep.subr.bf16.mxu0 0
        %1648 = vmatpush2.bf16.msra.mxu0 0
        %1649 = vmatprep.subr.bf16.mxu0 0
        %1650 = vmatpush2.bf16.msra.mxu0 0
        %1651 = vmatprep.subr.bf16.mxu0 0
        %1652 = vmatpush2.bf16.msra.mxu0 0
        %1653 = vmatprep.subr.bf16.mxu0 0
        %1654 = vmatpush2.bf16.msra.mxu0 0
        %1655 = vmatprep.subr.bf16.mxu0 0
        %1656 = vmatpush2.bf16.msra.mxu0 0
        %1657 = vmatprep.subr.bf16.mxu0 0
        %1658 = vmatpush2.bf16.msra.mxu0 0
        %1659 = vmatprep.mubr.bf16.mxu0 0
        %1660 = vmatmul.mubr.bf16.gmra.mxu0 %v1373
        %v1661 = vpop.f32.mrf.mxu0
        %v1662 = vadd.f32 %v1422, %v1661
        %v1663 = vpop.f32.mrf.mxu0
        %v1664 = vpop.f32.mrf.mxu0
        %v1665 = vadd.f32 %v1422, %v1664
        %v1666 = vpop.f32.mrf.mxu0
        %1667 = vmatprep.mubr.bf16.mxu0 0
        %1668 = vmatmul.mubr.bf16.gmra.mxu0 %v1374
        %v1669 = vpop.f32.mrf.mxu0
        %v1670 = vadd.f32 %v1422, %v1669
        %v1671 = vpop.f32.mrf.mxu0
        %v1672 = vpop.f32.mrf.mxu0
        %v1673 = vadd.f32 %v1422, %v1672
        %v1674 = vpop.f32.mrf.mxu0
        %1675 = vmatprep.mubr.bf16.mxu0 0
        %1676 = vmatmul.mubr.bf16.gmra.mxu0 %v1375
        %v1677 = vpop.f32.mrf.mxu0
        %v1678 = vadd.f32 %v1422, %v1677
        %v1679 = vpop.f32.mrf.mxu0
        %v1680 = vpop.f32.mrf.mxu0
        %v1681 = vadd.f32 %v1422, %v1680
        %v1682 = vpop.f32.mrf.mxu0
        %1683 = vmatprep.mubr.bf16.mxu0 0
        %1684 = vmatmul.mubr.bf16.gmra.mxu0 %v1376
        %v1685 = vpop.f32.mrf.mxu0
        %v1686 = vadd.f32 %v1422, %v1685
        %v1687 = vpop.f32.mrf.mxu0
        %v1688 = vpop.f32.mrf.mxu0
        %v1689 = vadd.f32 %v1422, %v1688
        %v1690 = vpop.f32.mrf.mxu0
        %1691 = vdwg.mxu0
        %s1692 = smul.u32 %s466, 4
        %s1693 = smul.u32 %s1692, 6
        %s1694 = smul.addr %s1693, 8
        %s1695 = scalar_lea.vmem [#allocation3], %s1694
        %1696 = vst [vmem:[%s1695] sm:$0xff] %v1589
        %1697 = vst [vmem:[%s1695 + $0x8] sm:$0xff] %v1591
        %1698 = vst [vmem:[%s1695 + $0x10] sm:$0xff] %v1662
        %1699 = vst [vmem:[%s1695 + $0x18] sm:$0xff] %v1593
        %1700 = vst [vmem:[%s1695 + $0x20] sm:$0xff] %v1595
        %1701 = vst [vmem:[%s1695 + $0x28] sm:$0xff] %v1665
        %1702 = vst [vmem:[%s1695 + $0x30] sm:$0xff] %v1599
        %1703 = vst [vmem:[%s1695 + $0x38] sm:$0xff] %v1601
        %1704 = vst [vmem:[%s1695 + $0x40] sm:$0xff] %v1670
        %1705 = vst [vmem:[%s1695 + $0x48] sm:$0xff] %v1603
        %1706 = vst [vmem:[%s1695 + $0x50] sm:$0xff] %v1605
        %1707 = vst [vmem:[%s1695 + $0x58] sm:$0xff] %v1673
        %1708 = vst [vmem:[%s1695 + $0x60] sm:$0xff] %v1609
        %1709 = vst [vmem:[%s1695 + $0x68] sm:$0xff] %v1611
        %1710 = vst [vmem:[%s1695 + $0x70] sm:$0xff] %v1678
        %1711 = vst [vmem:[%s1695 + $0x78] sm:$0xff] %v1613
        %1712 = vst [vmem:[%s1695 + $0x80] sm:$0xff] %v1615
        %1713 = vst [vmem:[%s1695 + $0x88] sm:$0xff] %v1681
        %1714 = vst [vmem:[%s1695 + $0x90] sm:$0xff] %v1619
        %1715 = vst [vmem:[%s1695 + $0x98] sm:$0xff] %v1621
        %1716 = vst [vmem:[%s1695 + $0xa0] sm:$0xff] %v1686
        %1717 = vst [vmem:[%s1695 + $0xa8] sm:$0xff] %v1623
        %1718 = vst [vmem:[%s1695 + $0xb0] sm:$0xff] %v1625
        %1719 = vst [vmem:[%s1695 + $0xb8] sm:$0xff] %v1689
        %p1720 = scmp.eq.s32.totalorder %s34, 1
        // Predicated region
        $region85: #{tpu_custom_call.1} parent=55 // pred_check
          %p1721 = pneg %p1720
        $region86: #{tpu_custom_call.1} parent=55 // pred_check_branch
          %1723 = sbr.rel (%p1721) target = $region88
        $region87: #{tpu_custom_call.1} parent=55 // pred_region
          %v1724 = vld [vmem:[#allocation10] sm:$0xff]
          %v1725 = vld [vmem:[#allocation10 + $0x8] sm:$0xf]
          %v1726 = vld [vmem:[#allocation10 + $0xc] sm:$0xff]
          %v1727 = vld [vmem:[#allocation10 + $0x14] sm:$0xf]
          %v1728 = vld [vmem:[#allocation10 + $0x18] sm:$0xff]
          %v1729 = vld [vmem:[#allocation10 + $0x20] sm:$0xf]
          %v1730 = vld [vmem:[#allocation10 + $0x24] sm:$0xff]
          %v1731 = vld [vmem:[#allocation10 + $0x2c] sm:$0xf]
          %v1732 = vld [vmem:[#allocation10 + $0x30] sm:$0xff]
          %v1733 = vld [vmem:[#allocation10 + $0x38] sm:$0xf]
          %v1734 = vld [vmem:[#allocation10 + $0x3c] sm:$0xff]
          %v1735 = vld [vmem:[#allocation10 + $0x44] sm:$0xf]
          %v1736 = vld [vmem:[#allocation10 + $0x48] sm:$0xff]
          %v1737 = vld [vmem:[#allocation10 + $0x50] sm:$0xf]
          %v1738 = vld [vmem:[#allocation10 + $0x54] sm:$0xff]
          %v1739 = vld [vmem:[#allocation10 + $0x5c] sm:$0xf]
          %v1740 = vld [vmem:[#allocation10 + $0x60] sm:$0xff]
          %v1741 = vld [vmem:[#allocation10 + $0x68] sm:$0xf]
          %v1742 = vld [vmem:[#allocation10 + $0x6c] sm:$0xff]
          %v1743 = vld [vmem:[#allocation10 + $0x74] sm:$0xf]
          %v1744 = vld [vmem:[#allocation10 + $0x78] sm:$0xff]
          %v1745 = vld [vmem:[#allocation10 + $0x80] sm:$0xf]
          %v1746 = vld [vmem:[#allocation10 + $0x84] sm:$0xff]
          %v1747 = vld [vmem:[#allocation10 + $0x8c] sm:$0xf]
          %v1748 = vld [vmem:[#allocation10 + $0x90] sm:$0xff]
          %v1749 = vld [vmem:[#allocation10 + $0x98] sm:$0xf]
          %v1750 = vld [vmem:[#allocation10 + $0x9c] sm:$0xff]
          %v1751 = vld [vmem:[#allocation10 + $0xa4] sm:$0xf]
          %v1752 = vld [vmem:[#allocation10 + $0xa8] sm:$0xff]
          %v1753 = vld [vmem:[#allocation10 + $0xb0] sm:$0xf]
          %v1754 = vld [vmem:[#allocation10 + $0xb4] sm:$0xff]
          %v1755 = vld [vmem:[#allocation10 + $0xbc] sm:$0xf]
          %v1756 = vld [vmem:[%s6] sm:$0x1]
          %v1757 = vld [vmem:[#allocation2] sm:$0xff]
          %v1758 = vld [vmem:[#allocation2 + $0x8] sm:$0xff]
          %v1759 = vld [vmem:[%s1695] sm:$0xff]
          %v1760 = vld [vmem:[%s1695 + $0x8] sm:$0xff]
          %v1761 = vld [vmem:[%s1695 + $0x10] sm:$0xff]
          %v1762 = vld [vmem:[%s1695 + $0x18] sm:$0xff]
          %v1763 = vld [vmem:[%s1695 + $0x20] sm:$0xff]
          %v1764 = vld [vmem:[%s1695 + $0x28] sm:$0xff]
          %v1765 = vpack.c.bf16 %v1758, %v1757
          %v1798 = vunpack.c.l.b16 %v1724
          %v1799 = vunpack.c.h.b16 %v1724
          %v1800 = vunpack.c.l.b16 %v1725
          %v1801 = vunpack.c.l.b16 %v1726
          %v1802 = vunpack.c.h.b16 %v1726
          %v1803 = vunpack.c.l.b16 %v1727
          %v1804 = vunpack.c.l.b16 %v1728
          %v1805 = vunpack.c.h.b16 %v1728
          %v1806 = vunpack.c.l.b16 %v1729
          %v1807 = vunpack.c.l.b16 %v1730
          %v1808 = vunpack.c.h.b16 %v1730
          %v1809 = vunpack.c.l.b16 %v1731
          %v1810 = vunpack.c.l.b16 %v1732
          %v1811 = vunpack.c.h.b16 %v1732
          %v1812 = vunpack.c.l.b16 %v1733
          %v1813 = vunpack.c.l.b16 %v1734
          %v1814 = vunpack.c.h.b16 %v1734
          %v1815 = vunpack.c.l.b16 %v1735
          %v1816 = vunpack.c.l.b16 %v1736
          %v1817 = vunpack.c.h.b16 %v1736
          %v1818 = vunpack.c.l.b16 %v1737
          %v1819 = vunpack.c.l.b16 %v1738
          %v1820 = vunpack.c.h.b16 %v1738
          %v1821 = vunpack.c.l.b16 %v1739
          %v1822 = vunpack.c.l.b16 %v1740
          %v1823 = vunpack.c.h.b16 %v1740
          %v1824 = vunpack.c.l.b16 %v1741
          %v1825 = vunpack.c.l.b16 %v1742
          %v1826 = vunpack.c.h.b16 %v1742
          %v1827 = vunpack.c.l.b16 %v1743
          %v1828 = vunpack.c.l.b16 %v1744
          %v1829 = vunpack.c.h.b16 %v1744
          %v1830 = vunpack.c.l.b16 %v1745
          %v1831 = vunpack.c.l.b16 %v1746
          %v1832 = vunpack.c.h.b16 %v1746
          %v1833 = vunpack.c.l.b16 %v1747
          %v1834 = vunpack.c.l.b16 %v1748
          %v1835 = vunpack.c.h.b16 %v1748
          %v1836 = vunpack.c.l.b16 %v1749
          %v1837 = vunpack.c.l.b16 %v1750
          %v1838 = vunpack.c.h.b16 %v1750
          %v1839 = vunpack.c.l.b16 %v1751
          %v1840 = vunpack.c.l.b16 %v1752
          %v1841 = vunpack.c.h.b16 %v1752
          %v1842 = vunpack.c.l.b16 %v1753
          %v1843 = vunpack.c.l.b16 %v1754
          %v1844 = vunpack.c.h.b16 %v1754
          %v1845 = vunpack.c.l.b16 %v1755
          %v1846 = vpack.c.b16 %v1801, %v1798
          %v1847 = vpack.c.b16 %v1802, %v1799
          %v1848 = vpack.c.b16 %v1803, %v1800
          %v1849 = vpack.c.b16 %v1807, %v1804
          %v1850 = vpack.c.b16 %v1808, %v1805
          %v1851 = vpack.c.b16 %v1809, %v1806
          %v1852 = vpack.c.b16 %v1813, %v1810
          %v1853 = vpack.c.b16 %v1814, %v1811
          %v1854 = vpack.c.b16 %v1815, %v1812
          %v1855 = vpack.c.b16 %v1819, %v1816
          %v1856 = vpack.c.b16 %v1820, %v1817
          %v1857 = vpack.c.b16 %v1821, %v1818
          %v1858 = vpack.c.b16 %v1825, %v1822
          %v1859 = vpack.c.b16 %v1826, %v1823
          %v1860 = vpack.c.b16 %v1827, %v1824
          %v1861 = vpack.c.b16 %v1831, %v1828
          %v1862 = vpack.c.b16 %v1832, %v1829
          %v1863 = vpack.c.b16 %v1833, %v1830
          %v1864 = vpack.c.b16 %v1837, %v1834
          %v1865 = vpack.c.b16 %v1838, %v1835
          %v1866 = vpack.c.b16 %v1839, %v1836
          %v1867 = vpack.c.b16 %v1843, %v1840
          %v1868 = vpack.c.b16 %v1844, %v1841
          %v1869 = vpack.c.b16 %v1845, %v1842
          %1894 = vmatprep.subr.bf16.mxu0 %v1868
          %1895 = vmatpush1.bf16.msra.mxu0 %v1867
          %1896 = vmatprep.subr.bf16.mxu0 %v1865
          %1897 = vmatpush1.bf16.msra.mxu0 %v1864
          %1898 = vmatprep.subr.bf16.mxu0 %v1862
          %1899 = vmatpush1.bf16.msra.mxu0 %v1861
          %1900 = vmatprep.subr.bf16.mxu0 %v1859
          %1901 = vmatpush1.bf16.msra.mxu0 %v1858
          %1902 = vmatprep.subr.bf16.mxu0 %v1856
          %1903 = vmatpush1.bf16.msra.mxu0 %v1855
          %1904 = vmatprep.subr.bf16.mxu0 %v1853
          %1905 = vmatpush1.bf16.msra.mxu0 %v1852
          %1906 = vmatprep.subr.bf16.mxu0 %v1850
          %1907 = vmatpush1.bf16.msra.mxu0 %v1849
          %1908 = vmatprep.subr.bf16.mxu0 %v1847
          %1909 = vmatpush1.bf16.msra.mxu0 %v1846
          %1910 = vmatprep.subr.bf16.mxu0 0
          %1911 = vmatpush2.bf16.msra.mxu0 0
          %1912 = vmatprep.subr.bf16.mxu0 0
          %1913 = vmatpush2.bf16.msra.mxu0 0
          %1914 = vmatprep.subr.bf16.mxu0 0
          %1915 = vmatpush2.bf16.msra.mxu0 0
          %1916 = vmatprep.subr.bf16.mxu0 0
          %1917 = vmatpush2.bf16.msra.mxu0 0
          %1918 = vmatprep.subr.bf16.mxu0 0
          %1919 = vmatpush2.bf16.msra.mxu0 0
          %1920 = vmatprep.subr.bf16.mxu0 0
          %1921 = vmatpush2.bf16.msra.mxu0 0
          %1922 = vmatprep.subr.bf16.mxu0 0
          %1923 = vmatpush2.bf16.msra.mxu0 0
          %1924 = vmatprep.subr.bf16.mxu0 0
          %1925 = vmatpush2.bf16.msra.mxu0 0
          %1926 = vmatprep.mubr.bf16.mxu0 0
          %1927 = vmatmul.mubr.bf16.gmra.mxu0 %v1765
          %v1928 = vpop.f32.mrf.mxu0
          %v1929 = vadd.f32 0.0, %v1928
          %v1930 = vpop.f32.mrf.mxu0
          %v1931 = vadd.f32 0.0, %v1930
          %v1932 = vpop.f32.mrf.mxu0
          %v1933 = vadd.f32 0.0, %v1932
          %v1934 = vpop.f32.mrf.mxu0
          %v1935 = vadd.f32 0.0, %v1934
          %1936 = vdwg.mxu0
          %1937 = vmatprep.subr.bf16.mxu0 0
          %1938 = vmatpush1.bf16.msra.mxu0 %v1869
          %1939 = vmatprep.subr.bf16.mxu0 0
          %1940 = vmatpush1.bf16.msra.mxu0 %v1866
          %1941 = vmatprep.subr.bf16.mxu0 0
          %1942 = vmatpush1.bf16.msra.mxu0 %v1863
          %1943 = vmatprep.subr.bf16.mxu0 0
          %1944 = vmatpush1.bf16.msra.mxu0 %v1860
          %1945 = vmatprep.subr.bf16.mxu0 0
          %1946 = vmatpush1.bf16.msra.mxu0 %v1857
          %1947 = vmatprep.subr.bf16.mxu0 0
          %1948 = vmatpush1.bf16.msra.mxu0 %v1854
          %1949 = vmatprep.subr.bf16.mxu0 0
          %1950 = vmatpush1.bf16.msra.mxu0 %v1851
          %1951 = vmatprep.subr.bf16.mxu0 0
          %1952 = vmatpush1.bf16.msra.mxu0 %v1848
          %1953 = vmatprep.subr.bf16.mxu0 0
          %1954 = vmatpush2.bf16.msra.mxu0 0
          %1955 = vmatprep.subr.bf16.mxu0 0
          %1956 = vmatpush2.bf16.msra.mxu0 0
          %1957 = vmatprep.subr.bf16.mxu0 0
          %1958 = vmatpush2.bf16.msra.mxu0 0
          %1959 = vmatprep.subr.bf16.mxu0 0
          %1960 = vmatpush2.bf16.msra.mxu0 0
          %1961 = vmatprep.subr.bf16.mxu0 0
          %1962 = vmatpush2.bf16.msra.mxu0 0
          %1963 = vmatprep.subr.bf16.mxu0 0
          %1964 = vmatpush2.bf16.msra.mxu0 0
          %1965 = vmatprep.subr.bf16.mxu0 0
          %1966 = vmatpush2.bf16.msra.mxu0 0
          %1967 = vmatprep.subr.bf16.mxu0 0
          %1968 = vmatpush2.bf16.msra.mxu0 0
          %1969 = vmatprep.mubr.bf16.mxu0 0
          %1970 = vmatmul.mubr.bf16.gmra.mxu0 %v1765
          %v1971 = vpop.f32.mrf.mxu0
          %v1972 = vadd.f32 0.0, %v1971
          %v1973 = vpop.f32.mrf.mxu0
          %v1974 = vpop.f32.mrf.mxu0
          %v1975 = vadd.f32 0.0, %v1974
          %v1976 = vpop.f32.mrf.mxu0
          %1977 = vdwg.mxu0
          %v1978 = vadd.f32 %v1759, %v1929
          %v1979 = vadd.f32 %v1760, %v1931
          %v1980 = vadd.f32 %v1762, %v1933
          %v1981 = vadd.f32 %v1763, %v1935
          %v1982 = vxor.u32 %v1978, 2147483648
          %v1983 = vxor.u32 %v1979, 2147483648
          %v1984 = vxor.u32 %v1980, 2147483648
          %v1985 = vxor.u32 %v1981, 2147483648
          %v1986 = vmul.f32 %v1982, 1.442695
          %v1987 = vpow.pop %v1986
          %v1988 = vmul.f32 %v1983, 1.442695
          %v1989 = vpow.pop %v1988
          %v1990 = vmul.f32 %v1984, 1.442695
          %v1991 = vpow.pop %v1990
          %v1992 = vmul.f32 %v1985, 1.442695
          %v1993 = vpow.pop %v1992
          %v1994 = vadd.f32 %v1987, 1.0
          %v1995 = vadd.f32 %v1989, 1.0
          %v1996 = vadd.f32 %v1991, 1.0
          %v1997 = vadd.f32 %v1993, 1.0
          %v1998 = vrcp.pop %v1994
          %v1999 = vmul.f32 1.0, %v1998
          %v2000 = vrcp.pop %v1995
          %v2001 = vmul.f32 1.0, %v2000
          %v2002 = vrcp.pop %v1996
          %v2003 = vmul.f32 1.0, %v2002
          %v2004 = vrcp.pop %v1997
          %v2005 = vmul.f32 1.0, %v2004
          %v2007 = vlaneseq
          %v2008 = vshrl.u32 %v2007, 7
          %v2009 = vsub.s32 0, %v2008
          %v2010 = vrot.slane %v1756, %v2009
          %v2012 = vadd.f32 %v1972, %v2010
          %v2013 = vadd.f32 %v1975, %v2010
          %v2014 = vmul.f32 %v1999, %v2012
          %v2015 = vmul.f32 %v2003, %v2013
          %v2016 = vadd.f32 %v1761, %v2014
          %v2017 = vadd.f32 %v1764, %v2015
          %v2018 = vtanh.pop %v2016
          %v2019 = vtanh.pop %v2017
          %v2020 = vsub.f32 %v1757, %v2018
          %v2021 = vsub.f32 %v1758, %v2019
          %v2022 = vmul.f32 %v2001, %v2020
          %v2023 = vmul.f32 %v2005, %v2021
          %v2024 = vadd.f32 %v2018, %v2022
          %v2025 = vadd.f32 %v2019, %v2023
          %s2026 = sadd.s32 %s1692, 1
          %s2027 = smul.u32 %s2026, 6
          %s2028 = smul.addr %s2027, 8
          %s2029 = scalar_lea.vmem [#allocation3], %s2028
          %v2030 = vld [vmem:[%s2029] sm:$0xff]
          %v2031 = vld [vmem:[%s2029 + $0x8] sm:$0xff]
          %v2032 = vld [vmem:[%s2029 + $0x10] sm:$0xff]
          %v2033 = vld [vmem:[%s2029 + $0x18] sm:$0xff]
          %v2034 = vld [vmem:[%s2029 + $0x20] sm:$0xff]
          %v2035 = vld [vmem:[%s2029 + $0x28] sm:$0xff]
          %v2036 = vpack.c.bf16 %v2025, %v2024
          %2037 = vmatprep.subr.bf16.mxu0 %v1868
          %2038 = vmatpush1.bf16.msra.mxu0 %v1867
          %2039 = vmatprep.subr.bf16.mxu0 %v1865
          %2040 = vmatpush1.bf16.msra.mxu0 %v1864
          %2041 = vmatprep.subr.bf16.mxu0 %v1862
          %2042 = vmatpush1.bf16.msra.mxu0 %v1861
          %2043 = vmatprep.subr.bf16.mxu0 %v1859
          %2044 = vmatpush1.bf16.msra.mxu0 %v1858
          %2045 = vmatprep.subr.bf16.mxu0 %v1856
          %2046 = vmatpush1.bf16.msra.mxu0 %v1855
          %2047 = vmatprep.subr.bf16.mxu0 %v1853
          %2048 = vmatpush1.bf16.msra.mxu0 %v1852
          %2049 = vmatprep.subr.bf16.mxu0 %v1850
          %2050 = vmatpush1.bf16.msra.mxu0 %v1849
          %2051 = vmatprep.subr.bf16.mxu0 %v1847
          %2052 = vmatpush1.bf16.msra.mxu0 %v1846
          %2053 = vmatprep.subr.bf16.mxu0 0
          %2054 = vmatpush2.bf16.msra.mxu0 0
          %2055 = vmatprep.subr.bf16.mxu0 0
          %2056 = vmatpush2.bf16.msra.mxu0 0
          %2057 = vmatprep.subr.bf16.mxu0 0
          %2058 = vmatpush2.bf16.msra.mxu0 0
          %2059 = vmatprep.subr.bf16.mxu0 0
          %2060 = vmatpush2.bf16.msra.mxu0 0
          %2061 = vmatprep.subr.bf16.mxu0 0
          %2062 = vmatpush2.bf16.msra.mxu0 0
          %2063 = vmatprep.subr.bf16.mxu0 0
          %2064 = vmatpush2.bf16.msra.mxu0 0
          %2065 = vmatprep.subr.bf16.mxu0 0
          %2066 = vmatpush2.bf16.msra.mxu0 0
          %2067 = vmatprep.subr.bf16.mxu0 0
          %2068 = vmatpush2.bf16.msra.mxu0 0
          %2069 = vmatprep.mubr.bf16.mxu0 0
          %2070 = vmatmul.mubr.bf16.gmra.mxu0 %v2036
          %v2071 = vpop.f32.mrf.mxu0
          %v2072 = vadd.f32 0.0, %v2071
          %v2073 = vpop.f32.mrf.mxu0
          %v2074 = vadd.f32 0.0, %v2073
          %v2075 = vpop.f32.mrf.mxu0
          %v2076 = vadd.f32 0.0, %v2075
          %v2077 = vpop.f32.mrf.mxu0
          %v2078 = vadd.f32 0.0, %v2077
          %2079 = vdwg.mxu0
          %2080 = vmatprep.subr.bf16.mxu0 0
          %2081 = vmatpush1.bf16.msra.mxu0 %v1869
          %2082 = vmatprep.subr.bf16.mxu0 0
          %2083 = vmatpush1.bf16.msra.mxu0 %v1866
          %2084 = vmatprep.subr.bf16.mxu0 0
          %2085 = vmatpush1.bf16.msra.mxu0 %v1863
          %2086 = vmatprep.subr.bf16.mxu0 0
          %2087 = vmatpush1.bf16.msra.mxu0 %v1860
          %2088 = vmatprep.subr.bf16.mxu0 0
          %2089 = vmatpush1.bf16.msra.mxu0 %v1857
          %2090 = vmatprep.subr.bf16.mxu0 0
          %2091 = vmatpush1.bf16.msra.mxu0 %v1854
          %2092 = vmatprep.subr.bf16.mxu0 0
          %2093 = vmatpush1.bf16.msra.mxu0 %v1851
          %2094 = vmatprep.subr.bf16.mxu0 0
          %2095 = vmatpush1.bf16.msra.mxu0 %v1848
          %2096 = vmatprep.subr.bf16.mxu0 0
          %2097 = vmatpush2.bf16.msra.mxu0 0
          %2098 = vmatprep.subr.bf16.mxu0 0
          %2099 = vmatpush2.bf16.msra.mxu0 0
          %2100 = vmatprep.subr.bf16.mxu0 0
          %2101 = vmatpush2.bf16.msra.mxu0 0
          %2102 = vmatprep.subr.bf16.mxu0 0
          %2103 = vmatpush2.bf16.msra.mxu0 0
          %2104 = vmatprep.subr.bf16.mxu0 0
          %2105 = vmatpush2.bf16.msra.mxu0 0
          %2106 = vmatprep.subr.bf16.mxu0 0
          %2107 = vmatpush2.bf16.msra.mxu0 0
          %2108 = vmatprep.subr.bf16.mxu0 0
          %2109 = vmatpush2.bf16.msra.mxu0 0
          %2110 = vmatprep.subr.bf16.mxu0 0
          %2111 = vmatpush2.bf16.msra.mxu0 0
          %2112 = vmatprep.mubr.bf16.mxu0 0
          %2113 = vmatmul.mubr.bf16.gmra.mxu0 %v2036
          %v2114 = vpop.f32.mrf.mxu0
          %v2115 = vadd.f32 0.0, %v2114
          %v2116 = vpop.f32.mrf.mxu0
          %v2117 = vpop.f32.mrf.mxu0
          %v2118 = vadd.f32 0.0, %v2117
          %v2119 = vpop.f32.mrf.mxu0
          %2120 = vdwg.mxu0
          %v2121 = vadd.f32 %v2030, %v2072
          %v2122 = vadd.f32 %v2031, %v2074
          %v2123 = vadd.f32 %v2033, %v2076
          %v2124 = vadd.f32 %v2034, %v2078
          %v2125 = vxor.u32 %v2121, 2147483648
          %v2126 = vxor.u32 %v2122, 2147483648
          %v2127 = vxor.u32 %v2123, 2147483648
          %v2128 = vxor.u32 %v2124, 2147483648
          %v2129 = vmul.f32 %v2125, 1.442695
          %v2130 = vpow.pop %v2129
          %v2131 = vmul.f32 %v2126, 1.442695
          %v2132 = vpow.pop %v2131
          %v2133 = vmul.f32 %v2127, 1.442695
          %v2134 = vpow.pop %v2133
          %v2135 = vmul.f32 %v2128, 1.442695
          %v2136 = vpow.pop %v2135
          %v2137 = vadd.f32 %v2130, 1.0
          %v2138 = vadd.f32 %v2132, 1.0
          %v2139 = vadd.f32 %v2134, 1.0
          %v2140 = vadd.f32 %v2136, 1.0
          %v2141 = vrcp.pop %v2137
          %v2142 = vmul.f32 1.0, %v2141
          %v2143 = vrcp.pop %v2138
          %v2144 = vmul.f32 1.0, %v2143
          %v2145 = vrcp.pop %v2139
          %v2146 = vmul.f32 1.0, %v2145
          %v2147 = vrcp.pop %v2140
          %v2148 = vmul.f32 1.0, %v2147
          %v2149 = vadd.f32 %v2115, %v2010
          %v2150 = vadd.f32 %v2118, %v2010
          %v2151 = vmul.f32 %v2142, %v2149
          %v2152 = vmul.f32 %v2146, %v2150
          %v2153 = vadd.f32 %v2032, %v2151
          %v2154 = vadd.f32 %v2035, %v2152
          %v2155 = vtanh.pop %v2153
          %v2156 = vtanh.pop %v2154
          %v2157 = vsub.f32 %v2024, %v2155
          %v2158 = vsub.f32 %v2025, %v2156
          %v2159 = vmul.f32 %v2144, %v2157
          %v2160 = vmul.f32 %v2148, %v2158
          %v2161 = vadd.f32 %v2155, %v2159
          %v2162 = vadd.f32 %v2156, %v2160
          %s2163 = sadd.s32 %s1692, 2
          %s2164 = smul.u32 %s2163, 6
          %s2165 = smul.addr %s2164, 8
          %s2166 = scalar_lea.vmem [#allocation3], %s2165
          %v2167 = vld [vmem:[%s2166] sm:$0xff]
          %v2168 = vld [vmem:[%s2166 + $0x8] sm:$0xff]
          %v2169 = vld [vmem:[%s2166 + $0x10] sm:$0xff]
          %v2170 = vld [vmem:[%s2166 + $0x18] sm:$0xff]
          %v2171 = vld [vmem:[%s2166 + $0x20] sm:$0xff]
          %v2172 = vld [vmem:[%s2166 + $0x28] sm:$0xff]
          %v2173 = vpack.c.bf16 %v2162, %v2161
          %2174 = vmatprep.subr.bf16.mxu0 %v1868
          %2175 = vmatpush1.bf16.msra.mxu0 %v1867
          %2176 = vmatprep.subr.bf16.mxu0 %v1865
          %2177 = vmatpush1.bf16.msra.mxu0 %v1864
          %2178 = vmatprep.subr.bf16.mxu0 %v1862
          %2179 = vmatpush1.bf16.msra.mxu0 %v1861
          %2180 = vmatprep.subr.bf16.mxu0 %v1859
          %2181 = vmatpush1.bf16.msra.mxu0 %v1858
          %2182 = vmatprep.subr.bf16.mxu0 %v1856
          %2183 = vmatpush1.bf16.msra.mxu0 %v1855
          %2184 = vmatprep.subr.bf16.mxu0 %v1853
          %2185 = vmatpush1.bf16.msra.mxu0 %v1852
          %2186 = vmatprep.subr.bf16.mxu0 %v1850
          %2187 = vmatpush1.bf16.msra.mxu0 %v1849
          %2188 = vmatprep.subr.bf16.mxu0 %v1847
          %2189 = vmatpush1.bf16.msra.mxu0 %v1846
          %2190 = vmatprep.subr.bf16.mxu0 0
          %2191 = vmatpush2.bf16.msra.mxu0 0
          %2192 = vmatprep.subr.bf16.mxu0 0
          %2193 = vmatpush2.bf16.msra.mxu0 0
          %2194 = vmatprep.subr.bf16.mxu0 0
          %2195 = vmatpush2.bf16.msra.mxu0 0
          %2196 = vmatprep.subr.bf16.mxu0 0
          %2197 = vmatpush2.bf16.msra.mxu0 0
          %2198 = vmatprep.subr.bf16.mxu0 0
          %2199 = vmatpush2.bf16.msra.mxu0 0
          %2200 = vmatprep.subr.bf16.mxu0 0
          %2201 = vmatpush2.bf16.msra.mxu0 0
          %2202 = vmatprep.subr.bf16.mxu0 0
          %2203 = vmatpush2.bf16.msra.mxu0 0
          %2204 = vmatprep.subr.bf16.mxu0 0
          %2205 = vmatpush2.bf16.msra.mxu0 0
          %2206 = vmatprep.mubr.bf16.mxu0 0
          %2207 = vmatmul.mubr.bf16.gmra.mxu0 %v2173
          %v2208 = vpop.f32.mrf.mxu0
          %v2209 = vadd.f32 0.0, %v2208
          %v2210 = vpop.f32.mrf.mxu0
          %v2211 = vadd.f32 0.0, %v2210
          %v2212 = vpop.f32.mrf.mxu0
          %v2213 = vadd.f32 0.0, %v2212
          %v2214 = vpop.f32.mrf.mxu0
          %v2215 = vadd.f32 0.0, %v2214
          %2216 = vdwg.mxu0
          %2217 = vmatprep.subr.bf16.mxu0 0
          %2218 = vmatpush1.bf16.msra.mxu0 %v1869
          %2219 = vmatprep.subr.bf16.mxu0 0
          %2220 = vmatpush1.bf16.msra.mxu0 %v1866
          %2221 = vmatprep.subr.bf16.mxu0 0
          %2222 = vmatpush1.bf16.msra.mxu0 %v1863
          %2223 = vmatprep.subr.bf16.mxu0 0
          %2224 = vmatpush1.bf16.msra.mxu0 %v1860
          %2225 = vmatprep.subr.bf16.mxu0 0
          %2226 = vmatpush1.bf16.msra.mxu0 %v1857
          %2227 = vmatprep.subr.bf16.mxu0 0
          %2228 = vmatpush1.bf16.msra.mxu0 %v1854
          %2229 = vmatprep.subr.bf16.mxu0 0
          %2230 = vmatpush1.bf16.msra.mxu0 %v1851
          %2231 = vmatprep.subr.bf16.mxu0 0
          %2232 = vmatpush1.bf16.msra.mxu0 %v1848
          %2233 = vmatprep.subr.bf16.mxu0 0
          %2234 = vmatpush2.bf16.msra.mxu0 0
          %2235 = vmatprep.subr.bf16.mxu0 0
          %2236 = vmatpush2.bf16.msra.mxu0 0
          %2237 = vmatprep.subr.bf16.mxu0 0
          %2238 = vmatpush2.bf16.msra.mxu0 0
          %2239 = vmatprep.subr.bf16.mxu0 0
          %2240 = vmatpush2.bf16.msra.mxu0 0
          %2241 = vmatprep.subr.bf16.mxu0 0
          %2242 = vmatpush2.bf16.msra.mxu0 0
          %2243 = vmatprep.subr.bf16.mxu0 0
          %2244 = vmatpush2.bf16.msra.mxu0 0
          %2245 = vmatprep.subr.bf16.mxu0 0
          %2246 = vmatpush2.bf16.msra.mxu0 0
          %2247 = vmatprep.subr.bf16.mxu0 0
          %2248 = vmatpush2.bf16.msra.mxu0 0
          %2249 = vmatprep.mubr.bf16.mxu0 0
          %2250 = vmatmul.mubr.bf16.gmra.mxu0 %v2173
          %v2251 = vpop.f32.mrf.mxu0
          %v2252 = vadd.f32 0.0, %v2251
          %v2253 = vpop.f32.mrf.mxu0
          %v2254 = vpop.f32.mrf.mxu0
          %v2255 = vadd.f32 0.0, %v2254
          %v2256 = vpop.f32.mrf.mxu0
          %2257 = vdwg.mxu0
          %v2258 = vadd.f32 %v2167, %v2209
          %v2259 = vadd.f32 %v2168, %v2211
          %v2260 = vadd.f32 %v2170, %v2213
          %v2261 = vadd.f32 %v2171, %v2215
          %v2262 = vxor.u32 %v2258, 2147483648
          %v2263 = vxor.u32 %v2259, 2147483648
          %v2264 = vxor.u32 %v2260, 2147483648
          %v2265 = vxor.u32 %v2261, 2147483648
          %v2266 = vmul.f32 %v2262, 1.442695
          %v2267 = vpow.pop %v2266
          %v2268 = vmul.f32 %v2263, 1.442695
          %v2269 = vpow.pop %v2268
          %v2270 = vmul.f32 %v2264, 1.442695
          %v2271 = vpow.pop %v2270
          %v2272 = vmul.f32 %v2265, 1.442695
          %v2273 = vpow.pop %v2272
          %v2274 = vadd.f32 %v2267, 1.0
          %v2275 = vadd.f32 %v2269, 1.0
          %v2276 = vadd.f32 %v2271, 1.0
          %v2277 = vadd.f32 %v2273, 1.0
          %v2278 = vrcp.pop %v2274
          %v2279 = vmul.f32 1.0, %v2278
          %v2280 = vrcp.pop %v2275
          %v2281 = vmul.f32 1.0, %v2280
          %v2282 = vrcp.pop %v2276
          %v2283 = vmul.f32 1.0, %v2282
          %v2284 = vrcp.pop %v2277
          %v2285 = vmul.f32 1.0, %v2284
          %v2286 = vadd.f32 %v2252, %v2010
          %v2287 = vadd.f32 %v2255, %v2010
          %v2288 = vmul.f32 %v2279, %v2286
          %v2289 = vmul.f32 %v2283, %v2287
          %v2290 = vadd.f32 %v2169, %v2288
          %v2291 = vadd.f32 %v2172, %v2289
          %v2292 = vtanh.pop %v2290
          %v2293 = vtanh.pop %v2291
          %v2294 = vsub.f32 %v2161, %v2292
          %v2295 = vsub.f32 %v2162, %v2293
          %v2296 = vmul.f32 %v2281, %v2294
          %v2297 = vmul.f32 %v2285, %v2295
          %v2298 = vadd.f32 %v2292, %v2296
          %v2299 = vadd.f32 %v2293, %v2297
          %s2300 = sadd.s32 %s1692, 3
          %s2301 = smul.u32 %s2300, 6
          %s2302 = smul.addr %s2301, 8
          %s2303 = scalar_lea.vmem [#allocation3], %s2302
          %v2304 = vld [vmem:[%s2303] sm:$0xff]
          %v2305 = vld [vmem:[%s2303 + $0x8] sm:$0xff]
          %v2306 = vld [vmem:[%s2303 + $0x10] sm:$0xff]
          %v2307 = vld [vmem:[%s2303 + $0x18] sm:$0xff]
          %v2308 = vld [vmem:[%s2303 + $0x20] sm:$0xff]
          %v2309 = vld [vmem:[%s2303 + $0x28] sm:$0xff]
          %v2310 = vpack.c.bf16 %v2299, %v2298
          %2311 = vmatprep.subr.bf16.mxu0 %v1868
          %2312 = vmatpush1.bf16.msra.mxu0 %v1867
          %2313 = vmatprep.subr.bf16.mxu0 %v1865
          %2314 = vmatpush1.bf16.msra.mxu0 %v1864
          %2315 = vmatprep.subr.bf16.mxu0 %v1862
          %2316 = vmatpush1.bf16.msra.mxu0 %v1861
          %2317 = vmatprep.subr.bf16.mxu0 %v1859
          %2318 = vmatpush1.bf16.msra.mxu0 %v1858
          %2319 = vmatprep.subr.bf16.mxu0 %v1856
          %2320 = vmatpush1.bf16.msra.mxu0 %v1855
          %2321 = vmatprep.subr.bf16.mxu0 %v1853
          %2322 = vmatpush1.bf16.msra.mxu0 %v1852
          %2323 = vmatprep.subr.bf16.mxu0 %v1850
          %2324 = vmatpush1.bf16.msra.mxu0 %v1849
          %2325 = vmatprep.subr.bf16.mxu0 %v1847
          %2326 = vmatpush1.bf16.msra.mxu0 %v1846
          %2327 = vmatprep.subr.bf16.mxu0 0
          %2328 = vmatpush2.bf16.msra.mxu0 0
          %2329 = vmatprep.subr.bf16.mxu0 0
          %2330 = vmatpush2.bf16.msra.mxu0 0
          %2331 = vmatprep.subr.bf16.mxu0 0
          %2332 = vmatpush2.bf16.msra.mxu0 0
          %2333 = vmatprep.subr.bf16.mxu0 0
          %2334 = vmatpush2.bf16.msra.mxu0 0
          %2335 = vmatprep.subr.bf16.mxu0 0
          %2336 = vmatpush2.bf16.msra.mxu0 0
          %2337 = vmatprep.subr.bf16.mxu0 0
          %2338 = vmatpush2.bf16.msra.mxu0 0
          %2339 = vmatprep.subr.bf16.mxu0 0
          %2340 = vmatpush2.bf16.msra.mxu0 0
          %2341 = vmatprep.subr.bf16.mxu0 0
          %2342 = vmatpush2.bf16.msra.mxu0 0
          %2343 = vmatprep.mubr.bf16.mxu0 0
          %2344 = vmatmul.mubr.bf16.gmra.mxu0 %v2310
          %v2345 = vpop.f32.mrf.mxu0
          %v2346 = vadd.f32 0.0, %v2345
          %v2347 = vpop.f32.mrf.mxu0
          %v2348 = vadd.f32 0.0, %v2347
          %v2349 = vpop.f32.mrf.mxu0
          %v2350 = vadd.f32 0.0, %v2349
          %v2351 = vpop.f32.mrf.mxu0
          %v2352 = vadd.f32 0.0, %v2351
          %2353 = vdwg.mxu0
          %2354 = vmatprep.subr.bf16.mxu0 0
          %2355 = vmatpush1.bf16.msra.mxu0 %v1869
          %2356 = vmatprep.subr.bf16.mxu0 0
          %2357 = vmatpush1.bf16.msra.mxu0 %v1866
          %2358 = vmatprep.subr.bf16.mxu0 0
          %2359 = vmatpush1.bf16.msra.mxu0 %v1863
          %2360 = vmatprep.subr.bf16.mxu0 0
          %2361 = vmatpush1.bf16.msra.mxu0 %v1860
          %2362 = vmatprep.subr.bf16.mxu0 0
          %2363 = vmatpush1.bf16.msra.mxu0 %v1857
          %2364 = vmatprep.subr.bf16.mxu0 0
          %2365 = vmatpush1.bf16.msra.mxu0 %v1854
          %2366 = vmatprep.subr.bf16.mxu0 0
          %2367 = vmatpush1.bf16.msra.mxu0 %v1851
          %2368 = vmatprep.subr.bf16.mxu0 0
          %2369 = vmatpush1.bf16.msra.mxu0 %v1848
          %2370 = vmatprep.subr.bf16.mxu0 0
          %2371 = vmatpush2.bf16.msra.mxu0 0
          %2372 = vmatprep.subr.bf16.mxu0 0
          %2373 = vmatpush2.bf16.msra.mxu0 0
          %2374 = vmatprep.subr.bf16.mxu0 0
          %2375 = vmatpush2.bf16.msra.mxu0 0
          %2376 = vmatprep.subr.bf16.mxu0 0
          %2377 = vmatpush2.bf16.msra.mxu0 0
          %2378 = vmatprep.subr.bf16.mxu0 0
          %2379 = vmatpush2.bf16.msra.mxu0 0
          %2380 = vmatprep.subr.bf16.mxu0 0
          %2381 = vmatpush2.bf16.msra.mxu0 0
          %2382 = vmatprep.subr.bf16.mxu0 0
          %2383 = vmatpush2.bf16.msra.mxu0 0
          %2384 = vmatprep.subr.bf16.mxu0 0
          %2385 = vmatpush2.bf16.msra.mxu0 0
          %2386 = vmatprep.mubr.bf16.mxu0 0
          %2387 = vmatmul.mubr.bf16.gmra.mxu0 %v2310
          %v2388 = vpop.f32.mrf.mxu0
          %v2389 = vadd.f32 0.0, %v2388
          %v2390 = vpop.f32.mrf.mxu0
          %v2391 = vpop.f32.mrf.mxu0
          %v2392 = vadd.f32 0.0, %v2391
          %v2393 = vpop.f32.mrf.mxu0
          %2394 = vdwg.mxu0
          %v2395 = vadd.f32 %v2304, %v2346
          %v2396 = vadd.f32 %v2305, %v2348
          %v2397 = vadd.f32 %v2307, %v2350
          %v2398 = vadd.f32 %v2308, %v2352
          %v2399 = vxor.u32 %v2395, 2147483648
          %v2400 = vxor.u32 %v2396, 2147483648
          %v2401 = vxor.u32 %v2397, 2147483648
          %v2402 = vxor.u32 %v2398, 2147483648
          %v2403 = vmul.f32 %v2399, 1.442695
          %v2404 = vpow.pop %v2403
          %v2405 = vmul.f32 %v2400, 1.442695
          %v2406 = vpow.pop %v2405
          %v2407 = vmul.f32 %v2401, 1.442695
          %v2408 = vpow.pop %v2407
          %v2409 = vmul.f32 %v2402, 1.442695
          %v2410 = vpow.pop %v2409
          %v2411 = vadd.f32 %v2404, 1.0
          %v2412 = vadd.f32 %v2406, 1.0
          %v2413 = vadd.f32 %v2408, 1.0
          %v2414 = vadd.f32 %v2410, 1.0
          %v2415 = vrcp.pop %v2411
          %v2416 = vmul.f32 1.0, %v2415
          %v2417 = vrcp.pop %v2412
          %v2418 = vmul.f32 1.0, %v2417
          %v2419 = vrcp.pop %v2413
          %v2420 = vmul.f32 1.0, %v2419
          %v2421 = vrcp.pop %v2414
          %v2422 = vmul.f32 1.0, %v2421
          %v2423 = vadd.f32 %v2389, %v2010
          %v2424 = vadd.f32 %v2392, %v2010
          %v2425 = vmul.f32 %v2416, %v2423
          %v2426 = vmul.f32 %v2420, %v2424
          %v2427 = vadd.f32 %v2306, %v2425
          %v2428 = vadd.f32 %v2309, %v2426
          %v2429 = vtanh.pop %v2427
          %v2430 = vtanh.pop %v2428
          %v2431 = vsub.f32 %v2298, %v2429
          %v2432 = vsub.f32 %v2299, %v2430
          %v2433 = vmul.f32 %v2418, %v2431
          %v2434 = vmul.f32 %v2422, %v2432
          %v2435 = vadd.f32 %v2429, %v2433
          %v2436 = vadd.f32 %v2430, %v2434
          %2437 = vst [vmem:[#allocation2] sm:$0xff] %v2435
          %2438 = vst [vmem:[#allocation2 + $0x8] sm:$0xff] %v2436
          %v2439 = vld [vmem:[#allocation2] sm:$0xff]
          %v2440 = vld [vmem:[#allocation2 + $0x8] sm:$0xff]
          %2441 = vst [vmem:[#allocation14] sm:$0xff] %v2439
          %2442 = vst [vmem:[#allocation14 + $0x8] sm:$0xff] %v2440
          %v2443 = vpack.c.bf16 %v2440, %v2439
          %v2444 = vld [vmem:[#allocation12] sm:$0xf]
          %v2445 = vld [vmem:[#allocation12 + $0x4] sm:$0xf]
          %v2446 = vld [vmem:[#allocation12 + $0x8] sm:$0xf]
          %v2447 = vld [vmem:[#allocation12 + $0xc] sm:$0xf]
          %v2448 = vld [vmem:[#allocation12 + $0x10] sm:$0xf]
          %v2449 = vld [vmem:[#allocation12 + $0x14] sm:$0xf]
          %v2450 = vld [vmem:[#allocation12 + $0x18] sm:$0xf]
          %v2451 = vld [vmem:[#allocation12 + $0x1c] sm:$0xf]
          %v2452 = vld [vmem:[#allocation12 + $0x20] sm:$0xf]
          %v2453 = vld [vmem:[#allocation12 + $0x24] sm:$0xf]
          %v2454 = vld [vmem:[#allocation12 + $0x28] sm:$0xf]
          %v2455 = vld [vmem:[#allocation12 + $0x2c] sm:$0xf]
          %v2456 = vld [vmem:[#allocation12 + $0x30] sm:$0xf]
          %v2457 = vld [vmem:[#allocation12 + $0x34] sm:$0xf]
          %v2458 = vld [vmem:[#allocation12 + $0x38] sm:$0xf]
          %v2459 = vld [vmem:[#allocation12 + $0x3c] sm:$0xf]
          %v2460 = vld [vmem:[%s8] sm:$0x1]
          %v2462 = vlaneseq
          %v2463 = vshrl.u32 %v2462, 7
          %v2464 = vsub.s32 0, %v2463
          %v2465 = vrot.slane %v2460, %v2464
          %v2483 = vunpack.c.l.b16 %v2444
          %v2484 = vunpack.c.l.b16 %v2445
          %v2485 = vunpack.c.l.b16 %v2446
          %v2486 = vunpack.c.l.b16 %v2447
          %v2487 = vunpack.c.l.b16 %v2448
          %v2488 = vunpack.c.l.b16 %v2449
          %v2489 = vunpack.c.l.b16 %v2450
          %v2490 = vunpack.c.l.b16 %v2451
          %v2491 = vunpack.c.l.b16 %v2452
          %v2492 = vunpack.c.l.b16 %v2453
          %v2493 = vunpack.c.l.b16 %v2454
          %v2494 = vunpack.c.l.b16 %v2455
          %v2495 = vunpack.c.l.b16 %v2456
          %v2496 = vunpack.c.l.b16 %v2457
          %v2497 = vunpack.c.l.b16 %v2458
          %v2498 = vunpack.c.l.b16 %v2459
          %v2499 = vpack.c.b16 %v2484, %v2483
          %v2500 = vpack.c.b16 %v2486, %v2485
          %v2501 = vpack.c.b16 %v2488, %v2487
          %v2502 = vpack.c.b16 %v2490, %v2489
          %v2503 = vpack.c.b16 %v2492, %v2491
          %v2504 = vpack.c.b16 %v2494, %v2493
          %v2505 = vpack.c.b16 %v2496, %v2495
          %v2506 = vpack.c.b16 %v2498, %v2497
          %2515 = vmatprep.subr.bf16.mxu0 0
          %2516 = vmatpush1.bf16.msra.mxu0 %v2506
          %2517 = vmatprep.subr.bf16.mxu0 0
          %2518 = vmatpush1.bf16.msra.mxu0 %v2505
          %2519 = vmatprep.subr.bf16.mxu0 0
          %2520 = vmatpush1.bf16.msra.mxu0 %v2504
          %2521 = vmatprep.subr.bf16.mxu0 0
          %2522 = vmatpush1.bf16.msra.mxu0 %v2503
          %2523 = vmatprep.subr.bf16.mxu0 0
          %2524 = vmatpush1.bf16.msra.mxu0 %v2502
          %2525 = vmatprep.subr.bf16.mxu0 0
          %2526 = vmatpush1.bf16.msra.mxu0 %v2501
          %2527 = vmatprep.subr.bf16.mxu0 0
          %2528 = vmatpush1.bf16.msra.mxu0 %v2500
          %2529 = vmatprep.subr.bf16.mxu0 0
          %2530 = vmatpush1.bf16.msra.mxu0 %v2499
          %2531 = vmatprep.subr.bf16.mxu0 0
          %2532 = vmatpush2.bf16.msra.mxu0 0
          %2533 = vmatprep.subr.bf16.mxu0 0
          %2534 = vmatpush2.bf16.msra.mxu0 0
          %2535 = vmatprep.subr.bf16.mxu0 0
          %2536 = vmatpush2.bf16.msra.mxu0 0
          %2537 = vmatprep.subr.bf16.mxu0 0
          %2538 = vmatpush2.bf16.msra.mxu0 0
          %2539 = vmatprep.subr.bf16.mxu0 0
          %2540 = vmatpush2.bf16.msra.mxu0 0
          %2541 = vmatprep.subr.bf16.mxu0 0
          %2542 = vmatpush2.bf16.msra.mxu0 0
          %2543 = vmatprep.subr.bf16.mxu0 0
          %2544 = vmatpush2.bf16.msra.mxu0 0
          %2545 = vmatprep.subr.bf16.mxu0 0
          %2546 = vmatpush2.bf16.msra.mxu0 0
          %2547 = vmatprep.mubr.bf16.mxu0 0
          %2548 = vmatmul.mubr.bf16.gmra.mxu0 %v2443
          %v2549 = vpop.f32.mrf.mxu0
          %v2550 = vadd.f32 %v2465, %v2549
          %v2551 = vpop.f32.mrf.mxu0
          %v2552 = vpop.f32.mrf.mxu0
          %v2553 = vadd.f32 %v2465, %v2552
          %v2554 = vpop.f32.mrf.mxu0
          %2555 = vdwg.mxu0
          %2556 = vst [vmem:[#allocation13] sm:$0xff] %v2550
          %2557 = vst [vmem:[#allocation13 + $0x8] sm:$0xff] %v2553
        $region88: #{tpu_custom_call.1} parent=55 // pred_fallthru
          _
        // Predicated region
        $region89: #{tpu_custom_call.1} parent=55 // pred_check
          %p2558 = pneg %p255
        $region90: #{tpu_custom_call.1} parent=55 // pred_check_branch
          %2560 = sbr.rel (%p2558) target = $region92
        $region91: #{tpu_custom_call.1} parent=55 // pred_region
          %s2561 = smul.u32 2, %s33
          %s2563 = ssub.s32 256, 256
          %2564 = vsyncadd [#allocation6], %s2563
          %s2565 = smul.addr %s2561, 128
          %s2566 = scalar_lea.hbm %s9, %s2565
          %s2567 = sshll.u32 [#allocation13], 4
          %s2568 = int_to_ptr.vmem [resolvable:$true] %s2567
          %2573 = dma.vmem_to_hbm [thread:$0]  %s2568, 256, %s2566, [#allocation6], 128, 128, 8
        $region92: #{tpu_custom_call.1} parent=55 // pred_fallthru
          _
        // Predicated region
        $region93: #{tpu_custom_call.1} parent=55 // pred_check
          %p2574 = pneg %p281
        $region94: #{tpu_custom_call.1} parent=55 // pred_check_branch
          %2576 = sbr.rel (%p2574) target = $region96
        $region95: #{tpu_custom_call.1} parent=55 // pred_region
          %s2577 = smul.u32 2, %s33
          %s2579 = ssub.s32 256, 256
          %2580 = vsyncadd [#allocation15], %s2579
          %s2581 = smul.addr %s2577, 128
          %s2582 = scalar_lea.hbm %s10, %s2581
          %s2583 = sshll.u32 [#allocation14], 4
          %s2584 = int_to_ptr.vmem [resolvable:$true] %s2583
          %2589 = dma.vmem_to_hbm [thread:$0]  %s2584, 256, %s2582, [#allocation15], 128, 128, 8
        $region96: #{tpu_custom_call.1} parent=55 // pred_fallthru
          _
        // Predicated region
        $region97: #{tpu_custom_call.1} parent=55 // pred_check
          %p2590 = pneg %p255
        $region98: #{tpu_custom_call.1} parent=55 // pred_check_branch
          %2592 = sbr.rel (%p2590) target = $region100
        $region99: #{tpu_custom_call.1} parent=55 // pred_region
          %2593 = dma.done [#allocation6], 256
        $region100: #{tpu_custom_call.1} parent=55 // pred_fallthru
          _
        // Predicated region
        $region101: #{tpu_custom_call.1} parent=55 // pred_check
          %p2594 = pneg %p281
        $region102: #{tpu_custom_call.1} parent=55 // pred_check_branch
          %2596 = sbr.rel (%p2594) target = $region104
        $region103: #{tpu_custom_call.1} parent=55 // pred_region
          %2597 = dma.done [#allocation15], 256
        $region104: #{tpu_custom_call.1} parent=55 // pred_fallthru
          _
      $region56: #{tpu_custom_call.1} parent=5 // pred_fallthru
        _
      %p2598 = scmp.le.s32.totalorder 2, %s24
      // Predicated region
      $region105: #{tpu_custom_call.1} parent=5 // pred_check
        %p2599 = pneg %p2598
      $region106: #{tpu_custom_call.1} parent=5 // pred_check_branch
        %2601 = sbr.rel (%p2599) target = $region108
      $region107: #{tpu_custom_call.1} parent=5 // pred_region
        %s2602 = ssub.s32 %s24, 2
      $region108: #{tpu_custom_call.1} parent=5 // pred_fallthru
        _
    $region6: #{tpu_custom_call.1} parent=1 // loop_footer
      %s28 = sadd.s32 1, %s24
    $region7: #{tpu_custom_call.1} parent=1 // loop_footer_branch
      %23 = sbr.rel target = $region3
    $region8: #{tpu_custom_call.1} parent=1 // loop_exit
      _
    %2603 = vsyncpa [#allocation5], 1
    %s2604 = scalar_lea.sflag [#allocation5], 1
    %2605 = vsyncpa %s2604, 1
    %2606 = vsyncpa [#allocation8], 1
    %2607 = vsyncpa [#allocation11], 1
    %2608 = vsyncpa [#allocation6], 1
    %s2609 = scalar_lea.sflag [#allocation6], 1
    %2610 = vsyncpa %s2609, 1
    %2611 = vsyncpa [#allocation15], 1

</llo_original>
